<compile_context>
chip_gen: v5e
topology: v5e:2x2
jax: 0.10.0
libtpu: 0.0.40
codegen_flags: <defaults>
</compile_context>

<pallas_src>
import jax
import jax.numpy as jnp
from jax import lax
from jax.experimental import pallas as pl
from jax.experimental.pallas import tpu as pltpu

_EPS = 1e-5
_LANE = 128


def _pick_row_block(H, W, m_target=256):
    """Largest divisor of H keeping the matmul M-dim (HB*W) around <= m_target."""
    target = max(1, m_target // max(W, 1))
    hb = 1
    for d in range(1, H + 1):
        if H % d == 0 and d <= target:
            hb = d
    return hb


# ---------------- fused Pallas kernel ----------------

def _fused_dense_layer_kernel(x_ref, s1_ref, t1_ref, t2_ref,
                              w1_ref, w2_ref, o_ref, pad_ref):
    # x_ref  : (1, H, W, Cp)   bf16  one batch element
    # s1/t1  : (1, Cp)         f32   folded BN1 scale / shift
    # t2     : (1, Cp)         f32   folded BN2 shift (scale folded into w1)
    # w1_ref : (Cp, Cp)        bf16  1x1 conv weight (Cin, Cout) * s2
    # w2_ref : (3, 3*Cp, Cp)   bf16  3x3 weight, ky-major, row = kx*Cp + cin
    # o_ref  : (1, H, W, Cp)   bf16
    # pad_ref: (H+2, W, 3*Cp)  bf16  kx-packed, row-padded intermediate
    _, H, W, Cp = x_ref.shape
    HB = _pick_row_block(H, W)
    NB = H // HB
    M = HB * W
    C3 = 3 * Cp

    s1 = s1_ref[0]
    t1 = t1_ref[0]
    t2 = t2_ref[0]
    w1 = w1_ref[...]

    # Only the 2 halo rows need zeroing (interior is fully overwritten below).
    # Re-zeroed every grid step so results stay correct when the batch axis is
    # megacore-split (each core owns its own scratch).
    zrow = jnp.zeros((W, C3), pad_ref.dtype)
    pad_ref[0] = zrow
    pad_ref[H + 1] = zrow

    def stage1(hb):
        # BN1 -> ReLU -> 1x1 conv (s2 pre-folded) -> +t2 -> ReLU, then pack the
        # three kx taps along lanes of the bf16 scratch with lane-sliced stores.
        r0 = hb * HB
        xb = x_ref[0, r0:r0 + HB].astype(jnp.float32)          # (HB, W, Cp)
        a1 = jnp.maximum(xb * s1 + t1, 0.0)                    # BN1 + ReLU1
        y1 = jnp.dot(a1.reshape(M, Cp).astype(jnp.bfloat16), w1,
                     preferred_element_type=jnp.float32)       # 1x1 conv (MXU)
        a2 = jnp.maximum(y1 + t2, 0.0).reshape(HB, W, Cp)      # BN2 + ReLU2
        a2 = a2.astype(jnp.bfloat16)                           # cast once, early
        zc = jnp.zeros((HB, 1, Cp), jnp.bfloat16)
        pr = 1 + r0
        # lanes [kx*Cp:(kx+1)*Cp] hold a2 shifted by (kx-1) columns, zero-padded
        pad_ref[pr:pr + HB, :, 0:Cp] = jnp.concatenate(
            [zc, a2[:, :W - 1, :]], axis=1)                    # kx = 0
        pad_ref[pr:pr + HB, :, Cp:2 * Cp] = a2                 # kx = 1
        pad_ref[pr:pr + HB, :, 2 * Cp:3 * Cp] = jnp.concatenate(
            [a2[:, 1:, :], zc], axis=1)                        # kx = 2

    def stage2(hb):
        # 3x3 conv as 3 bf16 MXU matmuls with K = 3*Cp per row block.
        r0 = hb * HB
        acc = jnp.zeros((M, Cp), jnp.float32)
        for ky in range(3):                                    # static unroll
            patch = pad_ref[r0 + ky:r0 + ky + HB].reshape(M, C3)
            acc = acc + jnp.dot(patch, w2_ref[ky],
                                preferred_element_type=jnp.float32)
        o_ref[0, r0:r0 + HB] = acc.reshape(HB, W, Cp).astype(o_ref.dtype)

    # Skewed software pipeline: stage2(hb-1) only needs pad rows up to
    # hb*HB + 1, which stage1(hb) has just written, so the VPU/store-heavy
    # packing overlaps the MXU-heavy 3x3 matmuls.  NB is small -> static unroll.
    for hb in range(NB + 1):
        if hb < NB:
            stage1(hb)
        if hb >= 1:
            stage2(hb - 1)


# ---------------- wrapper ----------------

def dense_layer_forward(x_nchw, params, eps=_EPS):
    N, C, H, W = x_nchw.shape
    Cp = max(_LANE, ((C + _LANE - 1) // _LANE) * _LANE)   # lane-dense channels
    # TODO(synk): the spec's _DenseLayer is square (C -> C -> C); for a
    # bottleneck DenseLayer pad Cin/Cmid/Cout each to their own 128-multiple.

    x = jnp.transpose(x_nchw, (0, 2, 3, 1))               # NHWC
    if Cp != C:
        x = jnp.pad(x, ((0, 0), (0, 0), (0, 0), (0, Cp - C)))
    x = x.astype(jnp.bfloat16)                            # bf16 kernel I/O

    # Fold BN (eval mode) into per-channel scale / shift; zero-padded channels
    # stay exactly zero after BN+ReLU.
    def fold(g, b, m, v):
        s = g / jnp.sqrt(v + eps)
        return s, b - m * s

    s1, t1 = fold(params["g1"], params["b1"], params["m1"], params["v1"])
    s2, t2 = fold(params["g2"], params["b2"], params["m2"], params["v2"])

    def padc(v):
        return jnp.pad(v, (0, Cp - C)).reshape(1, Cp).astype(jnp.float32)

    s1p, t1p, t2p = padc(s1), padc(t1), padc(t2)

    # 1x1 conv weight -> (Cin, Cout) with BN2 scale folded into the columns.
    w1 = jnp.transpose(params["w1"][:, :, 0, 0]) * s2[None, :]
    w1p = jnp.pad(w1, ((0, Cp - C), (0, Cp - C))).astype(jnp.bfloat16)

    # 3x3 conv weight -> (ky, kx, Cin, Cout) -> (ky, 3*Cp, Cp), rows ordered
    # kx-major then cin (matches the lane packing in the kernel).
    w2 = jnp.transpose(params["w2"], (2, 3, 1, 0))
    w2p = jnp.pad(w2, ((0, 0), (0, 0), (0, Cp - C), (0, Cp - C)))
    w2p = w2p.reshape(3, 3 * Cp, Cp).astype(jnp.bfloat16)

    # Real VMEM footprint (bf16 I/O double-buffered, weights single-buffered,
    # pad scratch) + generous headroom, capped at 48 MiB for v7x safety.
    x_blk = H * W * Cp * 2
    o_blk = H * W * Cp * 2
    w1_b = Cp * Cp * 2
    w2_b = 3 * 3 * Cp * Cp * 2
    pad_b = (H + 2) * W * 3 * Cp * 2
    footprint = 2 * (x_blk + o_blk) + w1_b + w2_b + pad_b + 3 * Cp * 4
    vmem_limit = int(min(48 * 2 ** 20, max(32 * 2 ** 20, 2 * footprint)))

    out = pl.pallas_call(
        _fused_dense_layer_kernel,
        out_shape=jax.ShapeDtypeStruct((N, H, W, Cp), jnp.bfloat16),
        grid=(N,),
        in_specs=[
            pl.BlockSpec((1, H, W, Cp), lambda n: (n, 0, 0, 0)),
            pl.BlockSpec((1, Cp), lambda n: (0, 0)),
            pl.BlockSpec((1, Cp), lambda n: (0, 0)),
            pl.BlockSpec((1, Cp), lambda n: (0, 0)),
            # grid-invariant weights: single-buffer (no pointless 2x VMEM)
            pl.BlockSpec((Cp, Cp), lambda n: (0, 0),
                         pipeline_mode=pl.Buffered(1)),
            pl.BlockSpec((3, 3 * Cp, Cp), lambda n: (0, 0, 0),
                         pipeline_mode=pl.Buffered(1)),
        ],
        out_specs=pl.BlockSpec((1, H, W, Cp), lambda n: (n, 0, 0, 0)),
        scratch_shapes=[pltpu.VMEM((H + 2, W, 3 * Cp), jnp.bfloat16)],
        compiler_params=pltpu.CompilerParams(
            dimension_semantics=("parallel",),
            vmem_limit_bytes=vmem_limit,
        ),
    )(x, s1p, t1p, t2p, w1p, w2p)

    out = out[..., :C]
    return jnp.transpose(out, (0, 3, 1, 2)).astype(jnp.float32)   # NCHW f32


# ---------------- references (for verification) ----------------

def _reference(x_nchw, params, *, use_bf16, eps=_EPS):
    """use_bf16=True mirrors the kernel's quantization (bf16 I/O, bf16 conv
    inputs with f32 accumulation); use_bf16=False is pure-f32 PyTorch
    semantics."""
    x = x_nchw.astype(jnp.float32)
    if use_bf16:
        x = x.astype(jnp.bfloat16).astype(jnp.float32)
    dt = jnp.bfloat16 if use_bf16 else jnp.float32

    def bn(y, g, b, m, v):
        return ((y - m[None, :, None, None])
                / jnp.sqrt(v[None, :, None, None] + eps)
                * g[None, :, None, None] + b[None, :, None, None])

    a = jax.nn.relu(bn(x, params["g1"], params["b1"], params["m1"], params["v1"]))
    y = lax.conv_general_dilated(
        a.astype(dt), params["w1"].astype(dt), (1, 1), "VALID",
        dimension_numbers=("NCHW", "OIHW", "NCHW"),
        preferred_element_type=jnp.float32)
    a = jax.nn.relu(bn(y, params["g2"], params["b2"], params["m2"], params["v2"]))
    y = lax.conv_general_dilated(
        a.astype(dt), params["w2"].astype(dt), (1, 1), ((1, 1), (1, 1)),
        dimension_numbers=("NCHW", "OIHW", "NCHW"),
        preferred_element_type=jnp.float32)
    if use_bf16:
        y = y.astype(jnp.bfloat16).astype(jnp.float32)
    return y


# ---------------- main ----------------

if __name__ == "__main__":
    key = jax.random.PRNGKey(0)
    N, C, H, W = 2, 4, 16, 16
    ks = jax.random.split(key, 12)

    x = jax.random.normal(ks[0], (N, C, H, W), jnp.float32)

    params = {
        # conv1: (C_out, C_in, 1, 1), conv2: (C_out, C_in, 3, 3)  (no bias)
        "w1": jax.random.normal(ks[1], (C, C, 1, 1), jnp.float32) * 0.3,
        "w2": jax.random.normal(ks[2], (C, C, 3, 3), jnp.float32) * 0.1,
        # BatchNorm2d params + running stats (deterministic synthetic init)
        "g1": 1.0 + 0.1 * jax.random.normal(ks[3], (C,), jnp.float32),
        "b1": 0.1 * jax.random.normal(ks[4], (C,), jnp.float32),
        "m1": 0.1 * jax.random.normal(ks[5], (C,), jnp.float32),
        "v1": jax.random.uniform(ks[6], (C,), jnp.float32, 0.5, 1.5),
        "g2": 1.0 + 0.1 * jax.random.normal(ks[7], (C,), jnp.float32),
        "b2": 0.1 * jax.random.normal(ks[8], (C,), jnp.float32),
        "m2": 0.1 * jax.random.normal(ks[9], (C,), jnp.float32),
        "v2": jax.random.uniform(ks[10], (C,), jnp.float32, 0.5, 1.5),
    }

    fwd = jax.jit(dense_layer_forward)
    out = jax.block_until_ready(fwd(x, params))

    ref_bf16 = jax.block_until_ready(_reference(x, params, use_bf16=True))
    ref_f32 = jax.block_until_ready(_reference(x, params, use_bf16=False))

    assert out.shape == (N, C, H, W), out.shape
    # Tight check against a reference using the same bf16 quantization points.
    assert jnp.allclose(out, ref_bf16, atol=1e-2, rtol=1e-2), float(
        jnp.max(jnp.abs(out - ref_bf16)))
    # Coarse sanity bound against pure-f32 PyTorch semantics.
    assert jnp.allclose(out, ref_f32, atol=1e-1, rtol=1e-1), float(
        jnp.max(jnp.abs(out - ref_f32)))

    print("KERNEL_OK")
</pallas_src>

<mosaic_0001>
module attributes {stable_mosaic.version = 11 : i64} {
  func.func @_fused_dense_layer_kernel(%arg0: i32, %arg1: memref<1x16x16x128xbf16, #tpu.memory_space<vmem>>, %arg2: memref<1x128xf32, #tpu.memory_space<vmem>>, %arg3: memref<1x128xf32, #tpu.memory_space<vmem>>, %arg4: memref<1x128xf32, #tpu.memory_space<vmem>>, %arg5: memref<128x128xbf16, #tpu.memory_space<vmem>>, %arg6: memref<3x384x128xbf16, #tpu.memory_space<vmem>>, %arg7: memref<1x16x16x128xbf16, #tpu.memory_space<vmem>>, %arg8: memref<18x16x384xbf16, #tpu.memory_space<vmem>>) attributes {dimension_semantics = [#tpu.dimension_semantics<parallel>], iteration_bounds = array<i64: 2>, scalar_prefetch = 0 : i64, scratch_operands = 1 : i64, tpu.core_type = #tpu.core_type<tc>, window_params = [{transform_indices = @transform_0, window_bounds = array<i64: 1, 16, 16, 128>}, {pipeline_mode = #tpu.pipeline_mode<synchronous>, transform_indices = @transform_1, window_bounds = array<i64: 1, 128>}, {pipeline_mode = #tpu.pipeline_mode<synchronous>, transform_indices = @transform_2, window_bounds = array<i64: 1, 128>}, {pipeline_mode = #tpu.pipeline_mode<synchronous>, transform_indices = @transform_3, window_bounds = array<i64: 1, 128>}, {pipeline_mode = #tpu.pipeline_mode<synchronous>, transform_indices = @transform_4, window_bounds = array<i64: 128, 128>}, {pipeline_mode = #tpu.pipeline_mode<synchronous>, transform_indices = @transform_5, window_bounds = array<i64: 3, 384, 128>}, {transform_indices = @transform_6, window_bounds = array<i64: 1, 16, 16, 128>}]} {
    %c0 = arith.constant 0 : index
    %c0_0 = arith.constant 0 : index
    %0 = vector.load %arg2[%c0, %c0_0] : memref<1x128xf32, #tpu.memory_space<vmem>>, vector<1x128xf32>
    %1 = vector.shape_cast %0 : vector<1x128xf32> to vector<128xf32>
    %c0_1 = arith.constant 0 : index
    %c0_2 = arith.constant 0 : index
    %2 = vector.load %arg3[%c0_1, %c0_2] : memref<1x128xf32, #tpu.memory_space<vmem>>, vector<1x128xf32>
    %3 = vector.shape_cast %2 : vector<1x128xf32> to vector<128xf32>
    %c0_3 = arith.constant 0 : index
    %c0_4 = arith.constant 0 : index
    %4 = vector.load %arg4[%c0_3, %c0_4] : memref<1x128xf32, #tpu.memory_space<vmem>>, vector<1x128xf32>
    %5 = vector.shape_cast %4 : vector<1x128xf32> to vector<128xf32>
    %c0_5 = arith.constant 0 : index
    %c0_6 = arith.constant 0 : index
    %6 = vector.load %arg5[%c0_5, %c0_6] : memref<128x128xbf16, #tpu.memory_space<vmem>>, vector<128x128xbf16>
    %cst = arith.constant 0.000000e+00 : bf16
    %7 = vector.broadcast %cst : bf16 to vector<16x384xbf16>
    %c0_7 = arith.constant 0 : index
    %c0_8 = arith.constant 0 : index
    %c0_9 = arith.constant 0 : index
    %8 = vector.load %arg8[%c0_7, %c0_8, %c0_9] : memref<18x16x384xbf16, #tpu.memory_space<vmem>>, vector<1x16x384xbf16>
    %9 = vector.shape_cast %8 : vector<1x16x384xbf16> to vector<16x384xbf16>
    %10 = vector.shape_cast %7 : vector<16x384xbf16> to vector<1x16x384xbf16>
    tpu.vector_store %arg8[%c0_7, %c0_8, %c0_9], %10 {strides = array<i32>} : memref<18x16x384xbf16, #tpu.memory_space<vmem>>, vector<1x16x384xbf16>,
    %c17 = arith.constant 17 : index
    %c0_10 = arith.constant 0 : index
    %c0_11 = arith.constant 0 : index
    %11 = vector.load %arg8[%c17, %c0_10, %c0_11] : memref<18x16x384xbf16, #tpu.memory_space<vmem>>, vector<1x16x384xbf16>
    %12 = vector.shape_cast %11 : vector<1x16x384xbf16> to vector<16x384xbf16>
    %13 = vector.shape_cast %7 : vector<16x384xbf16> to vector<1x16x384xbf16>
    tpu.vector_store %arg8[%c17, %c0_10, %c0_11], %13 {strides = array<i32>} : memref<18x16x384xbf16, #tpu.memory_space<vmem>>, vector<1x16x384xbf16>,
    %c0_12 = arith.constant 0 : index
    %c0_13 = arith.constant 0 : index
    %c0_14 = arith.constant 0 : index
    %c0_15 = arith.constant 0 : index
    %14 = vector.load %arg1[%c0_12, %c0_13, %c0_14, %c0_15] : memref<1x16x16x128xbf16, #tpu.memory_space<vmem>>, vector<1x16x16x128xbf16>
    %15 = vector.shape_cast %14 : vector<1x16x16x128xbf16> to vector<16x16x128xbf16>
    %16 = arith.extf %15 : vector<16x16x128xbf16> to vector<16x16x128xf32>
    %17 = vector.shape_cast %1 : vector<128xf32> to vector<1x1x128xf32>
    %18 = vector.broadcast %17 : vector<1x1x128xf32> to vector<16x16x128xf32>
    %19 = arith.mulf %16, %18 : vector<16x16x128xf32>
    %20 = vector.shape_cast %3 : vector<128xf32> to vector<1x1x128xf32>
    %21 = vector.broadcast %20 : vector<1x1x128xf32> to vector<16x16x128xf32>
    %22 = arith.addf %19, %21 : vector<16x16x128xf32>
    %cst_16 = arith.constant 0.000000e+00 : f32
    %23 = vector.broadcast %cst_16 : f32 to vector<16x16x128xf32>
    %24 = arith.maximumf %22, %23 : vector<16x16x128xf32>
    %25 = vector.shape_cast %24 : vector<16x16x128xf32> to vector<256x128xf32>
    %26 = arith.truncf %25 : vector<256x128xf32> to vector<256x128xbf16>
    %cst_17 = arith.constant dense<0.000000e+00> : vector<256x128xf32>
    %27 = tpu.matmul %26, %6, %cst_17 {dimension_numbers = #tpu.dot_dimension_numbers<[1], [0], [0], [1], [0, 0, 1, 1], [], []>} : vector<256x128xbf16>, vector<128x128xbf16>, vector<256x128xf32> -> vector<256x128xf32>
    %28 = vector.shape_cast %5 : vector<128xf32> to vector<1x128xf32>
    %29 = vector.broadcast %28 : vector<1x128xf32> to vector<256x128xf32>
    %30 = arith.addf %27, %29 : vector<256x128xf32>
    %cst_18 = arith.constant 0.000000e+00 : f32
    %31 = vector.broadcast %cst_18 : f32 to vector<256x128xf32>
    %32 = arith.maximumf %30, %31 : vector<256x128xf32>
    %33 = vector.shape_cast %32 : vector<256x128xf32> to vector<16x16x128xf32>
    %34 = arith.truncf %33 : vector<16x16x128xf32> to vector<16x16x128xbf16>
    %cst_19 = arith.constant 0.000000e+00 : bf16
    %35 = vector.broadcast %cst_19 : bf16 to vector<16x1x128xbf16>
    %36 = vector.extract_strided_slice %34 {offsets = [0, 0, 0], sizes = [16, 15, 128], strides = [1, 1, 1]} : vector<16x16x128xbf16> to vector<16x15x128xbf16>
    %37 = tpu.concatenate %35, %36 in 1 : vector<16x1x128xbf16>, vector<16x15x128xbf16> -> vector<16x16x128xbf16>
    %c1 = arith.constant 1 : index
    %c0_20 = arith.constant 0 : index
    %c0_21 = arith.constant 0 : index
    %38 = vector.load %arg8[%c1, %c0_20, %c0_21] : memref<18x16x384xbf16, #tpu.memory_space<vmem>>, vector<16x16x128xbf16>
    tpu.vector_store %arg8[%c1, %c0_20, %c0_21], %37 {strides = array<i32>} : memref<18x16x384xbf16, #tpu.memory_space<vmem>>, vector<16x16x128xbf16>,
    %c1_22 = arith.constant 1 : index
    %c0_23 = arith.constant 0 : index
    %c128 = arith.constant 128 : index
    %39 = vector.load %arg8[%c1_22, %c0_23, %c128] : memref<18x16x384xbf16, #tpu.memory_space<vmem>>, vector<16x16x128xbf16>
    tpu.vector_store %arg8[%c1_22, %c0_23, %c128], %34 {strides = array<i32>} : memref<18x16x384xbf16, #tpu.memory_space<vmem>>, vector<16x16x128xbf16>,
    %40 = vector.extract_strided_slice %34 {offsets = [0, 1, 0], sizes = [16, 15, 128], strides = [1, 1, 1]} : vector<16x16x128xbf16> to vector<16x15x128xbf16>
    %41 = tpu.concatenate %40, %35 in 1 : vector<16x15x128xbf16>, vector<16x1x128xbf16> -> vector<16x16x128xbf16>
    %c1_24 = arith.constant 1 : index
    %c0_25 = arith.constant 0 : index
    %c256 = arith.constant 256 : index
    %42 = vector.load %arg8[%c1_24, %c0_25, %c256] : memref<18x16x384xbf16, #tpu.memory_space<vmem>>, vector<16x16x128xbf16>
    tpu.vector_store %arg8[%c1_24, %c0_25, %c256], %41 {strides = array<i32>} : memref<18x16x384xbf16, #tpu.memory_space<vmem>>, vector<16x16x128xbf16>,
    %cst_26 = arith.constant 0.000000e+00 : f32
    %43 = vector.broadcast %cst_26 : f32 to vector<256x128xf32>
    %c0_27 = arith.constant 0 : index
    %c0_28 = arith.constant 0 : index
    %c0_29 = arith.constant 0 : index
    %44 = vector.load %arg8[%c0_27, %c0_28, %c0_29] : memref<18x16x384xbf16, #tpu.memory_space<vmem>>, vector<16x16x384xbf16>
    %45 = vector.shape_cast %44 : vector<16x16x384xbf16> to vector<256x384xbf16>
    %c0_30 = arith.constant 0 : index
    %c0_31 = arith.constant 0 : index
    %c0_32 = arith.constant 0 : index
    %46 = vector.load %arg6[%c0_30, %c0_31, %c0_32] : memref<3x384x128xbf16, #tpu.memory_space<vmem>>, vector<1x384x128xbf16>
    %47 = vector.shape_cast %46 : vector<1x384x128xbf16> to vector<384x128xbf16>
    %cst_33 = arith.constant dense<0.000000e+00> : vector<256x128xf32>
    %48 = tpu.matmul %45, %47, %cst_33 {dimension_numbers = #tpu.dot_dimension_numbers<[1], [0], [0], [1], [0, 0, 1, 1], [], []>} : vector<256x384xbf16>, vector<384x128xbf16>, vector<256x128xf32> -> vector<256x128xf32>
    %49 = arith.addf %43, %48 : vector<256x128xf32>
    %c1_34 = arith.constant 1 : index
    %c0_35 = arith.constant 0 : index
    %c0_36 = arith.constant 0 : index
    %50 = vector.load %arg8[%c1_34, %c0_35, %c0_36] : memref<18x16x384xbf16, #tpu.memory_space<vmem>>, vector<16x16x384xbf16>
    %51 = vector.shape_cast %50 : vector<16x16x384xbf16> to vector<256x384xbf16>
    %c1_37 = arith.constant 1 : index
    %c0_38 = arith.constant 0 : index
    %c0_39 = arith.constant 0 : index
    %52 = vector.load %arg6[%c1_37, %c0_38, %c0_39] : memref<3x384x128xbf16, #tpu.memory_space<vmem>>, vector<1x384x128xbf16>
    %53 = vector.shape_cast %52 : vector<1x384x128xbf16> to vector<384x128xbf16>
    %cst_40 = arith.constant dense<0.000000e+00> : vector<256x128xf32>
    %54 = tpu.matmul %51, %53, %cst_40 {dimension_numbers = #tpu.dot_dimension_numbers<[1], [0], [0], [1], [0, 0, 1, 1], [], []>} : vector<256x384xbf16>, vector<384x128xbf16>, vector<256x128xf32> -> vector<256x128xf32>
    %55 = arith.addf %49, %54 : vector<256x128xf32>
    %c2 = arith.constant 2 : index
    %c0_41 = arith.constant 0 : index
    %c0_42 = arith.constant 0 : index
    %56 = vector.load %arg8[%c2, %c0_41, %c0_42] : memref<18x16x384xbf16, #tpu.memory_space<vmem>>, vector<16x16x384xbf16>
    %57 = vector.shape_cast %56 : vector<16x16x384xbf16> to vector<256x384xbf16>
    %c2_43 = arith.constant 2 : index
    %c0_44 = arith.constant 0 : index
    %c0_45 = arith.constant 0 : index
    %58 = vector.load %arg6[%c2_43, %c0_44, %c0_45] : memref<3x384x128xbf16, #tpu.memory_space<vmem>>, vector<1x384x128xbf16>
    %59 = vector.shape_cast %58 : vector<1x384x128xbf16> to vector<384x128xbf16>
    %cst_46 = arith.constant dense<0.000000e+00> : vector<256x128xf32>
    %60 = tpu.matmul %57, %59, %cst_46 {dimension_numbers = #tpu.dot_dimension_numbers<[1], [0], [0], [1], [0, 0, 1, 1], [], []>} : vector<256x384xbf16>, vector<384x128xbf16>, vector<256x128xf32> -> vector<256x128xf32>
    %61 = arith.addf %55, %60 : vector<256x128xf32>
    %62 = vector.shape_cast %61 : vector<256x128xf32> to vector<16x16x128xf32>
    %63 = arith.truncf %62 : vector<16x16x128xf32> to vector<16x16x128xbf16>
    %c0_47 = arith.constant 0 : index
    %c0_48 = arith.constant 0 : index
    %c0_49 = arith.constant 0 : index
    %c0_50 = arith.constant 0 : index
    %64 = vector.load %arg7[%c0_47, %c0_48, %c0_49, %c0_50] : memref<1x16x16x128xbf16, #tpu.memory_space<vmem>>, vector<1x16x16x128xbf16>
    %65 = vector.shape_cast %64 : vector<1x16x16x128xbf16> to vector<16x16x128xbf16>
    %66 = vector.shape_cast %63 : vector<16x16x128xbf16> to vector<1x16x16x128xbf16>
    tpu.vector_store %arg7[%c0_47, %c0_48, %c0_49, %c0_50], %66 {strides = array<i32>} : memref<1x16x16x128xbf16, #tpu.memory_space<vmem>>, vector<1x16x16x128xbf16>,
    return
  }
  func.func @transform_0(%arg0: i32) -> (i32, i32, i32, i32) {
    %c0_i32 = arith.constant 0 : i32
    %c0_i32_0 = arith.constant 0 : i32
    %c0_i32_1 = arith.constant 0 : i32
    %c0_i32_2 = arith.constant 0 : i32
    return %arg0, %c0_i32, %c0_i32_0, %c0_i32_1 : i32, i32, i32, i32
  }
  func.func @transform_1(%arg0: i32) -> (i32, i32) {
    %c0_i32 = arith.constant 0 : i32
    %c0_i32_0 = arith.constant 0 : i32
    %c0_i32_1 = arith.constant 0 : i32
    return %c0_i32, %c0_i32_0 : i32, i32
  }
  func.func @transform_2(%arg0: i32) -> (i32, i32) {
    %c0_i32 = arith.constant 0 : i32
    %c0_i32_0 = arith.constant 0 : i32
    %c0_i32_1 = arith.constant 0 : i32
    return %c0_i32, %c0_i32_0 : i32, i32
  }
  func.func @transform_3(%arg0: i32) -> (i32, i32) {
    %c0_i32 = arith.constant 0 : i32
    %c0_i32_0 = arith.constant 0 : i32
    %c0_i32_1 = arith.constant 0 : i32
    return %c0_i32, %c0_i32_0 : i32, i32
  }
  func.func @transform_4(%arg0: i32) -> (i32, i32) {
    %c0_i32 = arith.constant 0 : i32
    %c0_i32_0 = arith.constant 0 : i32
    %c0_i32_1 = arith.constant 0 : i32
    return %c0_i32, %c0_i32_0 : i32, i32
  }
  func.func @transform_5(%arg0: i32) -> (i32, i32, i32) {
    %c0_i32 = arith.constant 0 : i32
    %c0_i32_0 = arith.constant 0 : i32
    %c0_i32_1 = arith.constant 0 : i32
    %c0_i32_2 = arith.constant 0 : i32
    return %c0_i32, %c0_i32_0, %c0_i32_1 : i32, i32, i32
  }
  func.func @transform_6(%arg0: i32) -> (i32, i32, i32, i32) {
    %c0_i32 = arith.constant 0 : i32
    %c0_i32_0 = arith.constant 0 : i32
    %c0_i32_1 = arith.constant 0 : i32
    %c0_i32_2 = arith.constant 0 : i32
    return %arg0, %c0_i32, %c0_i32_0, %c0_i32_1 : i32, i32, i32, i32
  }
}

</mosaic_0001>

<llo_original>
// kernel: dense_layer_forward.1
$region0: #{dense_layer_forward.1}
  #allocation0 [shape = 'u32[]', space=smem, size = 0x4, offset = 0x4, fixed_abs, tag = 'smem constant byte address 0x4 - core index']
  #allocation1 [shape = 'u32[72,128]{1,0:T(1,128)}', space=vmem, size = 0x9000, scoped, tag = 'internal scratch']
  #allocation2 [shape = 'bf16[18,16,384]{2,1,0:T(8,128)(2,1)}', space=vmem, size = 0x36000, scoped, tag = 'scratch operand']
  %s0 = inlined_call_operand.vmem [shape: bf16[2,16,16,128], index: 0, kind: input, shape index: {}]
  %s1 = inlined_call_operand.vmem [shape: f32[1,128], index: 1, kind: input, shape index: {}]
  %s2 = inlined_call_operand.vmem [shape: f32[1,128], index: 2, kind: input, shape index: {}]
  %s3 = inlined_call_operand.vmem [shape: f32[1,128], index: 3, kind: input, shape index: {}]
  %s4 = inlined_call_operand.vmem [shape: bf16[128,128], index: 4, kind: input, shape index: {}]
  %s5 = inlined_call_operand.vmem [shape: bf16[3,384,128], index: 5, kind: input, shape index: {}]
  %s6 = inlined_call_operand.vmem [shape: bf16[2,16,16,128], index: 6, kind: output, shape index: {}]
  %s7 = sld [smem:[#allocation0]]
  $region57: #{dense_layer_forward.1} parent=0
    _
  %s9 = ssub.s32 1, %s7
  %s10 = scalar_select 0, %s9, %s7
  loop: start=0, step=1, limit=4
  $region2: #{dense_layer_forward.1} parent=0 // loop_pre_header
    _
  $region3: #{dense_layer_forward.1} parent=0 // loop_header
    %s12 = sphi 0, %s16
    %p13 = scmp.ge.s32.totalorder %s12, 4
    %s22 = sphi 0, %s24
    %s25 = sphi 0, %s22
    %s26 = sphi 0, %s25
    %s42 = sphi 0, %s26
    %s46 = sphi 0, %s46
    %s48 = sphi 0, %s46
    %s49 = sphi 0, %s48
    %s63 = sphi 0, %s49
    %s67 = sphi 0, %s67
    %s69 = sphi 0, %s67
    %s70 = sphi 0, %s69
    %s84 = sphi 0, %s70
    %s88 = sphi 0, %s88
    %s90 = sphi 0, %s88
    %s91 = sphi 0, %s90
    %s105 = sphi 0, %s91
    %s109 = sphi 0, %s109
    %s111 = sphi 0, %s109
    %s112 = sphi 0, %s111
    %s126 = sphi 0, %s112
    %s130 = sphi 0, %s130
    %s132 = sphi 0, %s130
    %s133 = sphi 0, %s132
    %s147 = sphi 0, %s133
    %s153 = sphi 0, %s155
    %s156 = sphi 0, %s153
    %s157 = sphi 0, %s156
    %s173 = sphi 0, %s157
  $region4: #{dense_layer_forward.1} parent=0 // loop_header_branch
    %15 = sbr.rel (%p13) target = $region8
  $region5: #{dense_layer_forward.1} parent=0 // loop_body
    %s17 = ssub.s32 %s12, 1
    %s18 = ssub.s32 %s12, 2
    %s19 = sadd.s32 %s12, 1
    %s20 = ssub.s32 %s12, %s19
    %p21 = scmp.eq.s32.totalorder %s20, 0
    %s23 = sadd.s32 %s22, 1
    %s24 = scalar_select %p21, %s22, %s23
    %p27 = pneg %p21
    %p28 = scmp.eq.s32.totalorder %s12, 1
    %p29 = por %p27, %p28
    %p30 = scmp.ne.s32.totalorder %s22, %s25
    %p31 = scmp.eq.s32.totalorder %s12, 0
    %p32 = por %p30, %p31
    %p33 = scmp.ne.s32.totalorder %s22, %s25
    %p34 = scmp.eq.s32.totalorder %s17, 1
    %p35 = por %p33, %p34
    %p36 = scmp.ne.s32.totalorder %s25, %s26
    %p37 = scmp.eq.s32.totalorder %s17, 0
    %p38 = por %p36, %p37
    %p39 = scmp.ne.s32.totalorder %s25, %s26
    %p40 = scmp.eq.s32.totalorder %s18, 1
    %p41 = por %p39, %p40
    %p43 = scmp.ne.s32.totalorder %s26, %s42
    %p44 = scmp.eq.s32.totalorder %s18, 0
    %p45 = por %p43, %p44
    %s47 = sadd.s32 %s46, 1
    %p50 = scmp.eq.s32.totalorder %s12, 1
    %p51 = scmp.ne.s32.totalorder %s46, %s48
    %p52 = scmp.eq.s32.totalorder %s12, 0
    %p53 = por %p51, %p52
    %p54 = scmp.ne.s32.totalorder %s46, %s48
    %p55 = scmp.eq.s32.totalorder %s17, 1
    %p56 = por %p54, %p55
    %p57 = scmp.ne.s32.totalorder %s48, %s49
    %p58 = scmp.eq.s32.totalorder %s17, 0
    %p59 = por %p57, %p58
    %p60 = scmp.ne.s32.totalorder %s48, %s49
    %p61 = scmp.eq.s32.totalorder %s18, 1
    %p62 = por %p60, %p61
    %p64 = scmp.ne.s32.totalorder %s49, %s63
    %p65 = scmp.eq.s32.totalorder %s18, 0
    %p66 = por %p64, %p65
    %s68 = sadd.s32 %s67, 1
    %p71 = scmp.eq.s32.totalorder %s12, 1
    %p72 = scmp.ne.s32.totalorder %s67, %s69
    %p73 = scmp.eq.s32.totalorder %s12, 0
    %p74 = por %p72, %p73
    %p75 = scmp.ne.s32.totalorder %s67, %s69
    %p76 = scmp.eq.s32.totalorder %s17, 1
    %p77 = por %p75, %p76
    %p78 = scmp.ne.s32.totalorder %s69, %s70
    %p79 = scmp.eq.s32.totalorder %s17, 0
    %p80 = por %p78, %p79
    %p81 = scmp.ne.s32.totalorder %s69, %s70
    %p82 = scmp.eq.s32.totalorder %s18, 1
    %p83 = por %p81, %p82
    %p85 = scmp.ne.s32.totalorder %s70, %s84
    %p86 = scmp.eq.s32.totalorder %s18, 0
    %p87 = por %p85, %p86
    %s89 = sadd.s32 %s88, 1
    %p92 = scmp.eq.s32.totalorder %s12, 1
    %p93 = scmp.ne.s32.totalorder %s88, %s90
    %p94 = scmp.eq.s32.totalorder %s12, 0
    %p95 = por %p93, %p94
    %p96 = scmp.ne.s32.totalorder %s88, %s90
    %p97 = scmp.eq.s32.totalorder %s17, 1
    %p98 = por %p96, %p97
    %p99 = scmp.ne.s32.totalorder %s90, %s91
    %p100 = scmp.eq.s32.totalorder %s17, 0
    %p101 = por %p99, %p100
    %p102 = scmp.ne.s32.totalorder %s90, %s91
    %p103 = scmp.eq.s32.totalorder %s18, 1
    %p104 = por %p102, %p103
    %p106 = scmp.ne.s32.totalorder %s91, %s105
    %p107 = scmp.eq.s32.totalorder %s18, 0
    %p108 = por %p106, %p107
    %s110 = sadd.s32 %s109, 1
    %p113 = scmp.eq.s32.totalorder %s12, 1
    %p114 = scmp.ne.s32.totalorder %s109, %s111
    %p115 = scmp.eq.s32.totalorder %s12, 0
    %p116 = por %p114, %p115
    %p117 = scmp.ne.s32.totalorder %s109, %s111
    %p118 = scmp.eq.s32.totalorder %s17, 1
    %p119 = por %p117, %p118
    %p120 = scmp.ne.s32.totalorder %s111, %s112
    %p121 = scmp.eq.s32.totalorder %s17, 0
    %p122 = por %p120, %p121
    %p123 = scmp.ne.s32.totalorder %s111, %s112
    %p124 = scmp.eq.s32.totalorder %s18, 1
    %p125 = por %p123, %p124
    %p127 = scmp.ne.s32.totalorder %s112, %s126
    %p128 = scmp.eq.s32.totalorder %s18, 0
    %p129 = por %p127, %p128
    %s131 = sadd.s32 %s130, 1
    %p134 = scmp.eq.s32.totalorder %s12, 1
    %p135 = scmp.ne.s32.totalorder %s130, %s132
    %p136 = scmp.eq.s32.totalorder %s12, 0
    %p137 = por %p135, %p136
    %p138 = scmp.ne.s32.totalorder %s130, %s132
    %p139 = scmp.eq.s32.totalorder %s17, 1
    %p140 = por %p138, %p139
    %p141 = scmp.ne.s32.totalorder %s132, %s133
    %p142 = scmp.eq.s32.totalorder %s17, 0
    %p143 = por %p141, %p142
    %p144 = scmp.ne.s32.totalorder %s132, %s133
    %p145 = scmp.eq.s32.totalorder %s18, 1
    %p146 = por %p144, %p145
    %p148 = scmp.ne.s32.totalorder %s133, %s147
    %p149 = scmp.eq.s32.totalorder %s18, 0
    %p150 = por %p148, %p149
    %s151 = ssub.s32 %s12, %s19
    %p152 = scmp.eq.s32.totalorder %s151, 0
    %s154 = sadd.s32 %s153, 1
    %s155 = scalar_select %p152, %s153, %s154
    %p158 = pneg %p152
    %p159 = scmp.eq.s32.totalorder %s12, 1
    %p160 = por %p158, %p159
    %p161 = scmp.ne.s32.totalorder %s153, %s156
    %p162 = scmp.eq.s32.totalorder %s12, 0
    %p163 = por %p161, %p162
    %p164 = scmp.ne.s32.totalorder %s153, %s156
    %p165 = scmp.eq.s32.totalorder %s17, 1
    %p166 = por %p164, %p165
    %p167 = scmp.ne.s32.totalorder %s156, %s157
    %p168 = scmp.eq.s32.totalorder %s17, 0
    %p169 = por %p167, %p168
    %p170 = scmp.ne.s32.totalorder %s156, %s157
    %p171 = scmp.eq.s32.totalorder %s18, 1
    %p172 = por %p170, %p171
    %p174 = scmp.ne.s32.totalorder %s157, %s173
    %p175 = scmp.eq.s32.totalorder %s18, 0
    %p176 = por %p174, %p175
    %p177 = scmp.le.s32.totalorder 1, %s12
    %p178 = scmp.lt.s32.totalorder %s12, 3
    %p179 = pnand %p177, %p178
    %p180 = pneg %p179
    // Predicated region
    $region9: #{dense_layer_forward.1} parent=5 // pred_check
      _
    $region10: #{dense_layer_forward.1} parent=5 // pred_check_branch
      %182 = sbr.rel (%p179) target = $region12
    $region11: #{dense_layer_forward.1} parent=5 // pred_region
      %s183 = ssub.s32 %s12, 1
      // Predicated region
      $region13: #{dense_layer_forward.1} parent=11 // pred_check
        %p184 = pneg %p59
      $region14: #{dense_layer_forward.1} parent=11 // pred_check_branch
        %186 = sbr.rel (%p184) target = $region16
      $region15: #{dense_layer_forward.1} parent=11 // pred_region
        _
      $region16: #{dense_layer_forward.1} parent=11 // pred_fallthru
        _
      // Predicated region
      $region17: #{dense_layer_forward.1} parent=11 // pred_check
        %p187 = pneg %p80
      $region18: #{dense_layer_forward.1} parent=11 // pred_check_branch
        %189 = sbr.rel (%p187) target = $region20
      $region19: #{dense_layer_forward.1} parent=11 // pred_region
        _
      $region20: #{dense_layer_forward.1} parent=11 // pred_fallthru
        _
      // Predicated region
      $region21: #{dense_layer_forward.1} parent=11 // pred_check
        %p190 = pneg %p101
      $region22: #{dense_layer_forward.1} parent=11 // pred_check_branch
        %192 = sbr.rel (%p190) target = $region24
      $region23: #{dense_layer_forward.1} parent=11 // pred_region
        _
      $region24: #{dense_layer_forward.1} parent=11 // pred_fallthru
        _
      // Predicated region
      $region25: #{dense_layer_forward.1} parent=11 // pred_check
        %p193 = pneg %p122
      $region26: #{dense_layer_forward.1} parent=11 // pred_check_branch
        %195 = sbr.rel (%p193) target = $region28
      $region27: #{dense_layer_forward.1} parent=11 // pred_region
        _
      $region28: #{dense_layer_forward.1} parent=11 // pred_fallthru
        _
      // Predicated region
      $region29: #{dense_layer_forward.1} parent=11 // pred_check
        %p196 = pneg %p143
      $region30: #{dense_layer_forward.1} parent=11 // pred_check_branch
        %198 = sbr.rel (%p196) target = $region32
      $region31: #{dense_layer_forward.1} parent=11 // pred_region
        _
      $region32: #{dense_layer_forward.1} parent=11 // pred_fallthru
        _
    $region12: #{dense_layer_forward.1} parent=5 // pred_fallthru
      _
    %p199 = scmp.lt.s32.totalorder %s12, 2
    // Predicated region
    $region33: #{dense_layer_forward.1} parent=5 // pred_check
      %p200 = pneg %p199
    $region34: #{dense_layer_forward.1} parent=5 // pred_check_branch
      %202 = sbr.rel (%p200) target = $region36
    $region35: #{dense_layer_forward.1} parent=5 // pred_region
      // Predicated region
      $region37: #{dense_layer_forward.1} parent=35 // pred_check
        %p203 = pneg %p32
      $region38: #{dense_layer_forward.1} parent=35 // pred_check_branch
        %205 = sbr.rel (%p203) target = $region40
      $region39: #{dense_layer_forward.1} parent=35 // pred_region
        %p206 = scmp.lt.s32.totalorder %s12, 1
        %s207 = scalar_select %p206, %s12, 1
        %s208 = smul.addr %s207, 32
        %s209 = smul.addr %s208, 4
        %s210 = scalar_lea.vmem %s0, %s209
      $region40: #{dense_layer_forward.1} parent=35 // pred_fallthru
        _
    $region36: #{dense_layer_forward.1} parent=5 // pred_fallthru
      _
    %p211 = scmp.le.s32.totalorder 1, %s12
    %p212 = scmp.lt.s32.totalorder %s12, 3
    %p213 = pnand %p211, %p212
    %p214 = pneg %p213
    // Predicated region
    $region41: #{dense_layer_forward.1} parent=5 // pred_check
      _
    $region42: #{dense_layer_forward.1} parent=5 // pred_check_branch
      %216 = sbr.rel (%p213) target = $region44
    $region43: #{dense_layer_forward.1} parent=5 // pred_region
      %s217 = ssub.s32 %s12, 1
      %p218 = scmp.lt.s32.totalorder %s17, 1
      %s219 = scalar_select %p218, %s17, 1
      %s220 = smul.addr %s219, 32
      %s221 = smul.addr %s220, 4
      %s222 = scalar_lea.vmem %s0, %s221
      %p223 = pneg %p38
      %p224 = pneg %p35
      %p225 = pneg %p59
      %p226 = pneg %p56
      %p227 = pneg %p80
      %p228 = pneg %p77
      %p229 = pneg %p101
      %p230 = pneg %p98
      %p231 = pneg %p122
      %p232 = pneg %p119
      %p233 = pneg %p143
      %p234 = pneg %p140
      %p235 = pneg %p169
      %p236 = pneg %p166
      %p237 = scmp.lt.s32.totalorder %s17, 1
      %s238 = scalar_select %p237, %s17, 1
      %s239 = smul.addr %s238, 32
      %s240 = smul.addr %s239, 4
      %s241 = scalar_lea.vmem %s6, %s240
      %p242 = scmp.lt.s32.totalorder %s17, 1
      %s243 = scalar_select %p242, %s17, 1
      %s244 = smul.addr %s243, 32
      %s245 = smul.addr %s244, 4
      %s246 = scalar_lea.vmem %s0, %s245
      %p247 = scmp.lt.s32.totalorder %s17, 1
      %s248 = scalar_select %p247, %s17, 1
      %s249 = smul.addr %s248, 32
      %s250 = smul.addr %s249, 4
      %s251 = scalar_lea.vmem %s6, %s250
      %v253 = vld [vmem:[%s1] sm:$0x1]
      %v254 = vld [vmem:[%s2] sm:$0x1]
      %v255 = vld [vmem:[%s3] sm:$0x1]
      %v256 = vld [vmem:[%s4] sm:$0xf]
      %v257 = vld [vmem:[%s4 + $0x4] sm:$0xf]
      %v258 = vld [vmem:[%s4 + $0x8] sm:$0xf]
      %v259 = vld [vmem:[%s4 + $0xc] sm:$0xf]
      %v260 = vld [vmem:[%s4 + $0x10] sm:$0xf]
      %v261 = vld [vmem:[%s4 + $0x14] sm:$0xf]
      %v262 = vld [vmem:[%s4 + $0x18] sm:$0xf]
      %v263 = vld [vmem:[%s4 + $0x1c] sm:$0xf]
      %v264 = vld [vmem:[%s4 + $0x20] sm:$0xf]
      %v265 = vld [vmem:[%s4 + $0x24] sm:$0xf]
      %v266 = vld [vmem:[%s4 + $0x28] sm:$0xf]
      %v267 = vld [vmem:[%s4 + $0x2c] sm:$0xf]
      %v268 = vld [vmem:[%s4 + $0x30] sm:$0xf]
      %v269 = vld [vmem:[%s4 + $0x34] sm:$0xf]
      %v270 = vld [vmem:[%s4 + $0x38] sm:$0xf]
      %v271 = vld [vmem:[%s4 + $0x3c] sm:$0xf]
      %272 = vst [vmem:[#allocation2] sm:$0xff] 0
      %273 = vst [vmem:[#allocation2 + $0x8] sm:$0xf] 0
      %274 = vst [vmem:[#allocation2 + $0xc] sm:$0xff] 0
      %275 = vst [vmem:[#allocation2 + $0x14] sm:$0xf] 0
      %s276 = scalar_lea.vmem [#allocation2], 408
      %277 = vst [vmem:[%s276] sm:$0xff] 0
      %278 = vst [vmem:[%s276 + $0x8] sm:$0xf] 0
      %279 = vst [vmem:[%s276 + $0xc] sm:$0xff] 0
      %280 = vst [vmem:[%s276 + $0x14] sm:$0xf] 0
      %v281 = vld [vmem:[%s246] sm:$0xf]
      %v282 = vld [vmem:[%s246 + $0x4] sm:$0xf]
      %v283 = vld [vmem:[%s246 + $0x8] sm:$0xf]
      %v284 = vld [vmem:[%s246 + $0xc] sm:$0xf]
      %v285 = vld [vmem:[%s246 + $0x10] sm:$0xf]
      %v286 = vld [vmem:[%s246 + $0x14] sm:$0xf]
      %v287 = vld [vmem:[%s246 + $0x18] sm:$0xf]
      %v288 = vld [vmem:[%s246 + $0x1c] sm:$0xf]
      %v289 = vld [vmem:[%s246 + $0x20] sm:$0xf]
      %v290 = vld [vmem:[%s246 + $0x24] sm:$0xf]
      %v291 = vld [vmem:[%s246 + $0x28] sm:$0xf]
      %v292 = vld [vmem:[%s246 + $0x2c] sm:$0xf]
      %v293 = vld [vmem:[%s246 + $0x30] sm:$0xf]
      %v294 = vld [vmem:[%s246 + $0x34] sm:$0xf]
      %v295 = vld [vmem:[%s246 + $0x38] sm:$0xf]
      %v296 = vld [vmem:[%s246 + $0x3c] sm:$0xf]
      %v297 = vld [vmem:[%s246 + $0x40] sm:$0xf]
      %v298 = vld [vmem:[%s246 + $0x44] sm:$0xf]
      %v299 = vld [vmem:[%s246 + $0x48] sm:$0xf]
      %v300 = vld [vmem:[%s246 + $0x4c] sm:$0xf]
      %v301 = vld [vmem:[%s246 + $0x50] sm:$0xf]
      %v302 = vld [vmem:[%s246 + $0x54] sm:$0xf]
      %v303 = vld [vmem:[%s246 + $0x58] sm:$0xf]
      %v304 = vld [vmem:[%s246 + $0x5c] sm:$0xf]
      %v305 = vld [vmem:[%s246 + $0x60] sm:$0xf]
      %v306 = vld [vmem:[%s246 + $0x64] sm:$0xf]
      %v307 = vld [vmem:[%s246 + $0x68] sm:$0xf]
      %v308 = vld [vmem:[%s246 + $0x6c] sm:$0xf]
      %v309 = vld [vmem:[%s246 + $0x70] sm:$0xf]
      %v310 = vld [vmem:[%s246 + $0x74] sm:$0xf]
      %v311 = vld [vmem:[%s246 + $0x78] sm:$0xf]
      %v312 = vld [vmem:[%s246 + $0x7c] sm:$0xf]
      %v313 = vunpack.c.l.bf16 %v281
      %v314 = vunpack.c.l.bf16 %v282
      %v315 = vunpack.c.l.bf16 %v283
      %v316 = vunpack.c.l.bf16 %v284
      %v317 = vunpack.c.l.bf16 %v285
      %v318 = vunpack.c.l.bf16 %v286
      %v319 = vunpack.c.l.bf16 %v287
      %v320 = vunpack.c.l.bf16 %v288
      %v321 = vunpack.c.l.bf16 %v289
      %v322 = vunpack.c.l.bf16 %v290
      %v323 = vunpack.c.l.bf16 %v291
      %v324 = vunpack.c.l.bf16 %v292
      %v325 = vunpack.c.l.bf16 %v293
      %v326 = vunpack.c.l.bf16 %v294
      %v327 = vunpack.c.l.bf16 %v295
      %v328 = vunpack.c.l.bf16 %v296
      %v329 = vunpack.c.l.bf16 %v297
      %v330 = vunpack.c.l.bf16 %v298
      %v331 = vunpack.c.l.bf16 %v299
      %v332 = vunpack.c.l.bf16 %v300
      %v333 = vunpack.c.l.bf16 %v301
      %v334 = vunpack.c.l.bf16 %v302
      %v335 = vunpack.c.l.bf16 %v303
      %v336 = vunpack.c.l.bf16 %v304
      %v337 = vunpack.c.l.bf16 %v305
      %v338 = vunpack.c.l.bf16 %v306
      %v339 = vunpack.c.l.bf16 %v307
      %v340 = vunpack.c.l.bf16 %v308
      %v341 = vunpack.c.l.bf16 %v309
      %v342 = vunpack.c.l.bf16 %v310
      %v343 = vunpack.c.l.bf16 %v311
      %v344 = vunpack.c.l.bf16 %v312
      %v346 = vperm.slane %v253, 0
      %v348 = vmul.f32 %v313, %v346
      %v349 = vmul.f32 %v314, %v346
      %v350 = vmul.f32 %v315, %v346
      %v351 = vmul.f32 %v316, %v346
      %v352 = vmul.f32 %v317, %v346
      %v353 = vmul.f32 %v318, %v346
      %v354 = vmul.f32 %v319, %v346
      %v355 = vmul.f32 %v320, %v346
      %v356 = vmul.f32 %v321, %v346
      %v357 = vmul.f32 %v322, %v346
      %v358 = vmul.f32 %v323, %v346
      %v359 = vmul.f32 %v324, %v346
      %v360 = vmul.f32 %v325, %v346
      %v361 = vmul.f32 %v326, %v346
      %v362 = vmul.f32 %v327, %v346
      %v363 = vmul.f32 %v328, %v346
      %v364 = vmul.f32 %v329, %v346
      %v365 = vmul.f32 %v330, %v346
      %v366 = vmul.f32 %v331, %v346
      %v367 = vmul.f32 %v332, %v346
      %v368 = vmul.f32 %v333, %v346
      %v369 = vmul.f32 %v334, %v346
      %v370 = vmul.f32 %v335, %v346
      %v371 = vmul.f32 %v336, %v346
      %v372 = vmul.f32 %v337, %v346
      %v373 = vmul.f32 %v338, %v346
      %v374 = vmul.f32 %v339, %v346
      %v375 = vmul.f32 %v340, %v346
      %v376 = vmul.f32 %v341, %v346
      %v377 = vmul.f32 %v342, %v346
      %v378 = vmul.f32 %v343, %v346
      %v379 = vmul.f32 %v344, %v346
      %v381 = vperm.slane %v254, 0
      %v383 = vadd.f32 %v348, %v381
      %v384 = vadd.f32 %v349, %v381
      %v385 = vadd.f32 %v350, %v381
      %v386 = vadd.f32 %v351, %v381
      %v387 = vadd.f32 %v352, %v381
      %v388 = vadd.f32 %v353, %v381
      %v389 = vadd.f32 %v354, %v381
      %v390 = vadd.f32 %v355, %v381
      %v391 = vadd.f32 %v356, %v381
      %v392 = vadd.f32 %v357, %v381
      %v393 = vadd.f32 %v358, %v381
      %v394 = vadd.f32 %v359, %v381
      %v395 = vadd.f32 %v360, %v381
      %v396 = vadd.f32 %v361, %v381
      %v397 = vadd.f32 %v362, %v381
      %v398 = vadd.f32 %v363, %v381
      %v399 = vadd.f32 %v364, %v381
      %v400 = vadd.f32 %v365, %v381
      %v401 = vadd.f32 %v366, %v381
      %v402 = vadd.f32 %v367, %v381
      %v403 = vadd.f32 %v368, %v381
      %v404 = vadd.f32 %v369, %v381
      %v405 = vadd.f32 %v370, %v381
      %v406 = vadd.f32 %v371, %v381
      %v407 = vadd.f32 %v372, %v381
      %v408 = vadd.f32 %v373, %v381
      %v409 = vadd.f32 %v374, %v381
      %v410 = vadd.f32 %v375, %v381
      %v411 = vadd.f32 %v376, %v381
      %v412 = vadd.f32 %v377, %v381
      %v413 = vadd.f32 %v378, %v381
      %v414 = vadd.f32 %v379, %v381
      %v415 = vmax.f32 %v383, 0.0
      %v416 = vmax.f32 %v384, 0.0
      %v417 = vmax.f32 %v385, 0.0
      %v418 = vmax.f32 %v386, 0.0
      %v419 = vmax.f32 %v387, 0.0
      %v420 = vmax.f32 %v388, 0.0
      %v421 = vmax.f32 %v389, 0.0
      %v422 = vmax.f32 %v390, 0.0
      %v423 = vmax.f32 %v391, 0.0
      %v424 = vmax.f32 %v392, 0.0
      %v425 = vmax.f32 %v393, 0.0
      %v426 = vmax.f32 %v394, 0.0
      %v427 = vmax.f32 %v395, 0.0
      %v428 = vmax.f32 %v396, 0.0
      %v429 = vmax.f32 %v397, 0.0
      %v430 = vmax.f32 %v398, 0.0
      %v431 = vmax.f32 %v399, 0.0
      %v432 = vmax.f32 %v400, 0.0
      %v433 = vmax.f32 %v401, 0.0
      %v434 = vmax.f32 %v402, 0.0
      %v435 = vmax.f32 %v403, 0.0
      %v436 = vmax.f32 %v404, 0.0
      %v437 = vmax.f32 %v405, 0.0
      %v438 = vmax.f32 %v406, 0.0
      %v439 = vmax.f32 %v407, 0.0
      %v440 = vmax.f32 %v408, 0.0
      %v441 = vmax.f32 %v409, 0.0
      %v442 = vmax.f32 %v410, 0.0
      %v443 = vmax.f32 %v411, 0.0
      %v444 = vmax.f32 %v412, 0.0
      %v445 = vmax.f32 %v413, 0.0
      %v446 = vmax.f32 %v414, 0.0
      %v447 = vpack.c.bf16 %v416, %v415
      %v448 = vpack.c.bf16 %v418, %v417
      %v449 = vpack.c.bf16 %v420, %v419
      %v450 = vpack.c.bf16 %v422, %v421
      %v451 = vpack.c.bf16 %v424, %v423
      %v452 = vpack.c.bf16 %v426, %v425
      %v453 = vpack.c.bf16 %v428, %v427
      %v454 = vpack.c.bf16 %v430, %v429
      %v455 = vpack.c.bf16 %v432, %v431
      %v456 = vpack.c.bf16 %v434, %v433
      %v457 = vpack.c.bf16 %v436, %v435
      %v458 = vpack.c.bf16 %v438, %v437
      %v459 = vpack.c.bf16 %v440, %v439
      %v460 = vpack.c.bf16 %v442, %v441
      %v461 = vpack.c.bf16 %v444, %v443
      %v462 = vpack.c.bf16 %v446, %v445
      %v464 = vperm.slane %v255, 0
      %v482 = vunpack.c.l.b16 %v256
      %v483 = vunpack.c.l.b16 %v257
      %v484 = vunpack.c.l.b16 %v258
      %v485 = vunpack.c.l.b16 %v259
      %v486 = vunpack.c.l.b16 %v260
      %v487 = vunpack.c.l.b16 %v261
      %v488 = vunpack.c.l.b16 %v262
      %v489 = vunpack.c.l.b16 %v263
      %v490 = vunpack.c.l.b16 %v264
      %v491 = vunpack.c.l.b16 %v265
      %v492 = vunpack.c.l.b16 %v266
      %v493 = vunpack.c.l.b16 %v267
      %v494 = vunpack.c.l.b16 %v268
      %v495 = vunpack.c.l.b16 %v269
      %v496 = vunpack.c.l.b16 %v270
      %v497 = vunpack.c.l.b16 %v271
      %v498 = vpack.c.b16 %v483, %v482
      %v499 = vpack.c.b16 %v485, %v484
      %v500 = vpack.c.b16 %v487, %v486
      %v501 = vpack.c.b16 %v489, %v488
      %v502 = vpack.c.b16 %v491, %v490
      %v503 = vpack.c.b16 %v493, %v492
      %v504 = vpack.c.b16 %v495, %v494
      %v505 = vpack.c.b16 %v497, %v496
      %514 = vmatpush.bf16.msra.mxu0 %v505
      %515 = vmatpush.bf16.msra.mxu0 %v504
      %516 = vmatpush.bf16.msra.mxu0 %v503
      %517 = vmatpush.bf16.msra.mxu0 %v502
      %518 = vmatpush.bf16.msra.mxu0 %v501
      %519 = vmatpush.bf16.msra.mxu0 %v500
      %520 = vmatpush.bf16.msra.mxu0 %v499
      %521 = vmatpush.bf16.msra.mxu0 %v498
      %522 = vmatmul.bf16.gmra.mxu0 %v447
      %v523 = vpop.f32.mrf.mxu0
      %v524 = vadd.f32 %v464, %v523
      %v525 = vpop.f32.mrf.mxu0
      %v526 = vadd.f32 %v464, %v525
      %527 = vmatmul.bf16.gmra.mxu0 %v448
      %v528 = vpop.f32.mrf.mxu0
      %v529 = vadd.f32 %v464, %v528
      %v530 = vpop.f32.mrf.mxu0
      %v531 = vadd.f32 %v464, %v530
      %532 = vmatmul.bf16.gmra.mxu0 %v449
      %v533 = vpop.f32.mrf.mxu0
      %v534 = vadd.f32 %v464, %v533
      %v535 = vpop.f32.mrf.mxu0
      %v536 = vadd.f32 %v464, %v535
      %537 = vmatmul.bf16.gmra.mxu0 %v450
      %v538 = vpop.f32.mrf.mxu0
      %v539 = vadd.f32 %v464, %v538
      %v540 = vpop.f32.mrf.mxu0
      %v541 = vadd.f32 %v464, %v540
      %542 = vmatmul.bf16.gmra.mxu0 %v451
      %v543 = vpop.f32.mrf.mxu0
      %v544 = vadd.f32 %v464, %v543
      %v545 = vpop.f32.mrf.mxu0
      %v546 = vadd.f32 %v464, %v545
      %547 = vmatmul.bf16.gmra.mxu0 %v452
      %v548 = vpop.f32.mrf.mxu0
      %v549 = vadd.f32 %v464, %v548
      %v550 = vpop.f32.mrf.mxu0
      %v551 = vadd.f32 %v464, %v550
      %552 = vmatmul.bf16.gmra.mxu0 %v453
      %v553 = vpop.f32.mrf.mxu0
      %v554 = vadd.f32 %v464, %v553
      %v555 = vpop.f32.mrf.mxu0
      %v556 = vadd.f32 %v464, %v555
      %557 = vmatmul.bf16.gmra.mxu0 %v454
      %v558 = vpop.f32.mrf.mxu0
      %v559 = vadd.f32 %v464, %v558
      %v560 = vpop.f32.mrf.mxu0
      %v561 = vadd.f32 %v464, %v560
      %562 = vmatmul.bf16.gmra.mxu0 %v455
      %v563 = vpop.f32.mrf.mxu0
      %v564 = vadd.f32 %v464, %v563
      %v565 = vpop.f32.mrf.mxu0
      %v566 = vadd.f32 %v464, %v565
      %567 = vmatmul.bf16.gmra.mxu0 %v456
      %v568 = vpop.f32.mrf.mxu0
      %v569 = vadd.f32 %v464, %v568
      %v570 = vpop.f32.mrf.mxu0
      %v571 = vadd.f32 %v464, %v570
      %572 = vmatmul.bf16.gmra.mxu0 %v457
      %v573 = vpop.f32.mrf.mxu0
      %v574 = vadd.f32 %v464, %v573
      %v575 = vpop.f32.mrf.mxu0
      %v576 = vadd.f32 %v464, %v575
      %577 = vmatmul.bf16.gmra.mxu0 %v458
      %v578 = vpop.f32.mrf.mxu0
      %v579 = vadd.f32 %v464, %v578
      %v580 = vpop.f32.mrf.mxu0
      %v581 = vadd.f32 %v464, %v580
      %582 = vmatmul.bf16.gmra.mxu0 %v459
      %v583 = vpop.f32.mrf.mxu0
      %v584 = vadd.f32 %v464, %v583
      %v585 = vpop.f32.mrf.mxu0
      %v586 = vadd.f32 %v464, %v585
      %587 = vmatmul.bf16.gmra.mxu0 %v460
      %v588 = vpop.f32.mrf.mxu0
      %v589 = vadd.f32 %v464, %v588
      %v590 = vpop.f32.mrf.mxu0
      %v591 = vadd.f32 %v464, %v590
      %592 = vmatmul.bf16.gmra.mxu0 %v461
      %v593 = vpop.f32.mrf.mxu0
      %v594 = vadd.f32 %v464, %v593
      %v595 = vpop.f32.mrf.mxu0
      %v596 = vadd.f32 %v464, %v595
      %597 = vmatmul.bf16.gmra.mxu0 %v462
      %v598 = vpop.f32.mrf.mxu0
      %v599 = vadd.f32 %v464, %v598
      %v600 = vpop.f32.mrf.mxu0
      %v601 = vadd.f32 %v464, %v600
      %602 = vdwg.mxu0
      %v603 = vmax.f32 %v524, 0.0
      %v604 = vmax.f32 %v526, 0.0
      %v605 = vmax.f32 %v529, 0.0
      %v606 = vmax.f32 %v531, 0.0
      %v607 = vmax.f32 %v534, 0.0
      %v608 = vmax.f32 %v536, 0.0
      %v609 = vmax.f32 %v539, 0.0
      %v610 = vmax.f32 %v541, 0.0
      %v611 = vmax.f32 %v544, 0.0
      %v612 = vmax.f32 %v546, 0.0
      %v613 = vmax.f32 %v549, 0.0
      %v614 = vmax.f32 %v551, 0.0
      %v615 = vmax.f32 %v554, 0.0
      %v616 = vmax.f32 %v556, 0.0
      %v617 = vmax.f32 %v559, 0.0
      %v618 = vmax.f32 %v561, 0.0
      %v619 = vmax.f32 %v564, 0.0
      %v620 = vmax.f32 %v566, 0.0
      %v621 = vmax.f32 %v569, 0.0
      %v622 = vmax.f32 %v571, 0.0
      %v623 = vmax.f32 %v574, 0.0
      %v624 = vmax.f32 %v576, 0.0
      %v625 = vmax.f32 %v579, 0.0
      %v626 = vmax.f32 %v581, 0.0
      %v627 = vmax.f32 %v584, 0.0
      %v628 = vmax.f32 %v586, 0.0
      %v629 = vmax.f32 %v589, 0.0
      %v630 = vmax.f32 %v591, 0.0
      %v631 = vmax.f32 %v594, 0.0
      %v632 = vmax.f32 %v596, 0.0
      %v633 = vmax.f32 %v599, 0.0
      %v634 = vmax.f32 %v601, 0.0
      %v635 = vpack.c.bf16 %v603, %v603
      %v636 = vpack.c.bf16 %v604, %v604
      %v637 = vpack.c.bf16 %v605, %v605
      %v638 = vpack.c.bf16 %v606, %v606
      %v639 = vpack.c.bf16 %v607, %v607
      %v640 = vpack.c.bf16 %v608, %v608
      %v641 = vpack.c.bf16 %v609, %v609
      %v642 = vpack.c.bf16 %v610, %v610
      %v643 = vpack.c.bf16 %v611, %v611
      %v644 = vpack.c.bf16 %v612, %v612
      %v645 = vpack.c.bf16 %v613, %v613
      %v646 = vpack.c.bf16 %v614, %v614
      %v647 = vpack.c.bf16 %v615, %v615
      %v648 = vpack.c.bf16 %v616, %v616
      %v649 = vpack.c.bf16 %v617, %v617
      %v650 = vpack.c.bf16 %v618, %v618
      %v651 = vpack.c.bf16 %v619, %v619
      %v652 = vpack.c.bf16 %v620, %v620
      %v653 = vpack.c.bf16 %v621, %v621
      %v654 = vpack.c.bf16 %v622, %v622
      %v655 = vpack.c.bf16 %v623, %v623
      %v656 = vpack.c.bf16 %v624, %v624
      %v657 = vpack.c.bf16 %v625, %v625
      %v658 = vpack.c.bf16 %v626, %v626
      %v659 = vpack.c.bf16 %v627, %v627
      %v660 = vpack.c.bf16 %v628, %v628
      %v661 = vpack.c.bf16 %v629, %v629
      %v662 = vpack.c.bf16 %v630, %v630
      %v663 = vpack.c.bf16 %v631, %v631
      %v664 = vpack.c.bf16 %v632, %v632
      %v665 = vpack.c.bf16 %v633, %v633
      %v666 = vpack.c.bf16 %v634, %v634
      %v699 = vunpack.c.l.b16 %v635
      %v700 = vunpack.c.l.b16 %v636
      %v701 = vunpack.c.l.b16 %v637
      %v702 = vunpack.c.l.b16 %v638
      %v703 = vunpack.c.l.b16 %v639
      %v704 = vunpack.c.l.b16 %v640
      %v705 = vunpack.c.l.b16 %v641
      %v706 = vunpack.c.l.b16 %v642
      %v707 = vunpack.c.l.b16 %v643
      %v708 = vunpack.c.l.b16 %v644
      %v709 = vunpack.c.l.b16 %v645
      %v710 = vunpack.c.l.b16 %v646
      %v711 = vunpack.c.l.b16 %v647
      %v712 = vunpack.c.l.b16 %v648
      %v713 = vunpack.c.l.b16 %v649
      %v714 = vunpack.c.l.b16 %v650
      %v715 = vunpack.c.l.b16 %v651
      %v716 = vunpack.c.l.b16 %v652
      %v717 = vunpack.c.l.b16 %v653
      %v718 = vunpack.c.l.b16 %v654
      %v719 = vunpack.c.l.b16 %v655
      %v720 = vunpack.c.l.b16 %v656
      %v721 = vunpack.c.l.b16 %v657
      %v722 = vunpack.c.l.b16 %v658
      %v723 = vunpack.c.l.b16 %v659
      %v724 = vunpack.c.l.b16 %v660
      %v725 = vunpack.c.l.b16 %v661
      %v726 = vunpack.c.l.b16 %v662
      %v727 = vunpack.c.l.b16 %v663
      %v728 = vunpack.c.l.b16 %v664
      %v729 = vunpack.c.l.b16 %v665
      %v730 = vunpack.c.l.b16 %v666
      %v731 = vpack.c.b16 %v700, %v699
      %v732 = vpack.c.b16 %v702, %v701
      %v733 = vpack.c.b16 %v704, %v703
      %v734 = vpack.c.b16 %v706, %v705
      %v735 = vpack.c.b16 %v708, %v707
      %v736 = vpack.c.b16 %v710, %v709
      %v737 = vpack.c.b16 %v712, %v711
      %v738 = vpack.c.b16 %v714, %v713
      %v739 = vpack.c.b16 %v716, %v715
      %v740 = vpack.c.b16 %v718, %v717
      %v741 = vpack.c.b16 %v720, %v719
      %v742 = vpack.c.b16 %v722, %v721
      %v743 = vpack.c.b16 %v724, %v723
      %v744 = vpack.c.b16 %v726, %v725
      %v745 = vpack.c.b16 %v728, %v727
      %v746 = vpack.c.b16 %v730, %v729
      %v748 = vshrl.u32 %v731, 16
      %v750 = vrot.slane %v748, 7
      %v751 = vshll.u32 %v731, 16
      %v753 = vor.u32 %v750, %v751
      %v755 = vshrl.u32 %v732, 16
      %v757 = vrot.slane %v755, 7
      %v758 = vshll.u32 %v732, 16
      %v760 = vor.u32 %v757, %v758
      %v762 = vshrl.u32 %v733, 16
      %v764 = vrot.slane %v762, 7
      %v765 = vshll.u32 %v733, 16
      %v767 = vor.u32 %v764, %v765
      %v769 = vshrl.u32 %v734, 16
      %v771 = vrot.slane %v769, 7
      %v772 = vshll.u32 %v734, 16
      %v774 = vor.u32 %v771, %v772
      %v776 = vshrl.u32 %v735, 16
      %v778 = vrot.slane %v776, 7
      %v779 = vshll.u32 %v735, 16
      %v781 = vor.u32 %v778, %v779
      %v783 = vshrl.u32 %v736, 16
      %v785 = vrot.slane %v783, 7
      %v786 = vshll.u32 %v736, 16
      %v788 = vor.u32 %v785, %v786
      %v790 = vshrl.u32 %v737, 16
      %v792 = vrot.slane %v790, 7
      %v793 = vshll.u32 %v737, 16
      %v795 = vor.u32 %v792, %v793
      %v797 = vshrl.u32 %v738, 16
      %v799 = vrot.slane %v797, 7
      %v800 = vshll.u32 %v738, 16
      %v802 = vor.u32 %v799, %v800
      %v804 = vshrl.u32 %v739, 16
      %v806 = vrot.slane %v804, 7
      %v807 = vshll.u32 %v739, 16
      %v809 = vor.u32 %v806, %v807
      %v811 = vshrl.u32 %v740, 16
      %v813 = vrot.slane %v811, 7
      %v814 = vshll.u32 %v740, 16
      %v816 = vor.u32 %v813, %v814
      %v818 = vshrl.u32 %v741, 16
      %v820 = vrot.slane %v818, 7
      %v821 = vshll.u32 %v741, 16
      %v823 = vor.u32 %v820, %v821
      %v825 = vshrl.u32 %v742, 16
      %v827 = vrot.slane %v825, 7
      %v828 = vshll.u32 %v742, 16
      %v830 = vor.u32 %v827, %v828
      %v832 = vshrl.u32 %v743, 16
      %v834 = vrot.slane %v832, 7
      %v835 = vshll.u32 %v743, 16
      %v837 = vor.u32 %v834, %v835
      %v839 = vshrl.u32 %v744, 16
      %v841 = vrot.slane %v839, 7
      %v842 = vshll.u32 %v744, 16
      %v844 = vor.u32 %v841, %v842
      %v846 = vshrl.u32 %v745, 16
      %v848 = vrot.slane %v846, 7
      %v849 = vshll.u32 %v745, 16
      %v851 = vor.u32 %v848, %v849
      %v853 = vshrl.u32 %v746, 16
      %v855 = vrot.slane %v853, 7
      %v856 = vshll.u32 %v746, 16
      %v858 = vor.u32 %v855, %v856
      %vm875 = vcmask 1040384
      %vm876 = vsmask.f32 256
      %vm877 = vmand %vm875, %vm876
      %v878 = vsel %vm877, 0, %v753
      %v879 = vsel %vm877, 0, %v760
      %v880 = vsel %vm877, 0, %v767
      %v881 = vsel %vm877, 0, %v774
      %v882 = vsel %vm877, 0, %v781
      %v883 = vsel %vm877, 0, %v788
      %v884 = vsel %vm877, 0, %v795
      %v885 = vsel %vm877, 0, %v802
      %v886 = vsel %vm877, 0, %v809
      %v887 = vsel %vm877, 0, %v816
      %v888 = vsel %vm877, 0, %v823
      %v889 = vsel %vm877, 0, %v830
      %v890 = vsel %vm877, 0, %v837
      %v891 = vsel %vm877, 0, %v844
      %v892 = vsel %vm877, 0, %v851
      %v893 = vsel %vm877, 0, %v858
      %v910 = vunpack.c.l.b16 %v878
      %v911 = vunpack.c.h.b16 %v878
      %v912 = vunpack.c.l.b16 %v879
      %v913 = vunpack.c.h.b16 %v879
      %v914 = vunpack.c.l.b16 %v880
      %v915 = vunpack.c.h.b16 %v880
      %v916 = vunpack.c.l.b16 %v881
      %v917 = vunpack.c.h.b16 %v881
      %v918 = vunpack.c.l.b16 %v882
      %v919 = vunpack.c.h.b16 %v882
      %v920 = vunpack.c.l.b16 %v883
      %v921 = vunpack.c.h.b16 %v883
      %v922 = vunpack.c.l.b16 %v884
      %v923 = vunpack.c.h.b16 %v884
      %v924 = vunpack.c.l.b16 %v885
      %v925 = vunpack.c.h.b16 %v885
      %v926 = vunpack.c.l.b16 %v886
      %v927 = vunpack.c.h.b16 %v886
      %v928 = vunpack.c.l.b16 %v887
      %v929 = vunpack.c.h.b16 %v887
      %v930 = vunpack.c.l.b16 %v888
      %v931 = vunpack.c.h.b16 %v888
      %v932 = vunpack.c.l.b16 %v889
      %v933 = vunpack.c.h.b16 %v889
      %v934 = vunpack.c.l.b16 %v890
      %v935 = vunpack.c.h.b16 %v890
      %v936 = vunpack.c.l.b16 %v891
      %v937 = vunpack.c.h.b16 %v891
      %v938 = vunpack.c.l.b16 %v892
      %v939 = vunpack.c.h.b16 %v892
      %v940 = vunpack.c.l.b16 %v893
      %v941 = vunpack.c.h.b16 %v893
      %v942 = vpack.c.b16 %v910, %v910
      %v943 = vpack.c.b16 %v911, %v911
      %v944 = vpack.c.b16 %v912, %v912
      %v945 = vpack.c.b16 %v913, %v913
      %v946 = vpack.c.b16 %v914, %v914
      %v947 = vpack.c.b16 %v915, %v915
      %v948 = vpack.c.b16 %v916, %v916
      %v949 = vpack.c.b16 %v917, %v917
      %v950 = vpack.c.b16 %v918, %v918
      %v951 = vpack.c.b16 %v919, %v919
      %v952 = vpack.c.b16 %v920, %v920
      %v953 = vpack.c.b16 %v921, %v921
      %v954 = vpack.c.b16 %v922, %v922
      %v955 = vpack.c.b16 %v923, %v923
      %v956 = vpack.c.b16 %v924, %v924
      %v957 = vpack.c.b16 %v925, %v925
      %v958 = vpack.c.b16 %v926, %v926
      %v959 = vpack.c.b16 %v927, %v927
      %v960 = vpack.c.b16 %v928, %v928
      %v961 = vpack.c.b16 %v929, %v929
      %v962 = vpack.c.b16 %v930, %v930
      %v963 = vpack.c.b16 %v931, %v931
      %v964 = vpack.c.b16 %v932, %v932
      %v965 = vpack.c.b16 %v933, %v933
      %v966 = vpack.c.b16 %v934, %v934
      %v967 = vpack.c.b16 %v935, %v935
      %v968 = vpack.c.b16 %v936, %v936
      %v969 = vpack.c.b16 %v937, %v937
      %v970 = vpack.c.b16 %v938, %v938
      %v971 = vpack.c.b16 %v939, %v939
      %v972 = vpack.c.b16 %v940, %v940
      %v973 = vpack.c.b16 %v941, %v941
      %s1006 = scalar_lea.vmem [#allocation2], 24
      %1007 = vst [vmem:[%s1006] sm:$0xf] %v942
      %1008 = vst [vmem:[%s1006 + $0xc] sm:$0xf] %v943
      %1009 = vst [vmem:[%s1006 + $0x18] sm:$0xf] %v944
      %1010 = vst [vmem:[%s1006 + $0x24] sm:$0xf] %v945
      %1011 = vst [vmem:[%s1006 + $0x30] sm:$0xf] %v946
      %1012 = vst [vmem:[%s1006 + $0x3c] sm:$0xf] %v947
      %1013 = vst [vmem:[%s1006 + $0x48] sm:$0xf] %v948
      %1014 = vst [vmem:[%s1006 + $0x54] sm:$0xf] %v949
      %1015 = vst [vmem:[%s1006 + $0x60] sm:$0xf] %v950
      %1016 = vst [vmem:[%s1006 + $0x6c] sm:$0xf] %v951
      %1017 = vst [vmem:[%s1006 + $0x78] sm:$0xf] %v952
      %1018 = vst [vmem:[%s1006 + $0x84] sm:$0xf] %v953
      %1019 = vst [vmem:[%s1006 + $0x90] sm:$0xf] %v954
      %1020 = vst [vmem:[%s1006 + $0x9c] sm:$0xf] %v955
      %1021 = vst [vmem:[%s1006 + $0xa8] sm:$0xf] %v956
      %1022 = vst [vmem:[%s1006 + $0xb4] sm:$0xf] %v957
      %1023 = vst [vmem:[%s1006 + $0xc0] sm:$0xf] %v958
      %1024 = vst [vmem:[%s1006 + $0xcc] sm:$0xf] %v959
      %1025 = vst [vmem:[%s1006 + $0xd8] sm:$0xf] %v960
      %1026 = vst [vmem:[%s1006 + $0xe4] sm:$0xf] %v961
      %1027 = vst [vmem:[%s1006 + $0xf0] sm:$0xf] %v962
      %1028 = vst [vmem:[%s1006 + $0xfc] sm:$0xf] %v963
      %1029 = vst [vmem:[%s1006 + $0x108] sm:$0xf] %v964
      %1030 = vst [vmem:[%s1006 + $0x114] sm:$0xf] %v965
      %1031 = vst [vmem:[%s1006 + $0x120] sm:$0xf] %v966
      %1032 = vst [vmem:[%s1006 + $0x12c] sm:$0xf] %v967
      %1033 = vst [vmem:[%s1006 + $0x138] sm:$0xf] %v968
      %1034 = vst [vmem:[%s1006 + $0x144] sm:$0xf] %v969
      %1035 = vst [vmem:[%s1006 + $0x150] sm:$0xf] %v970
      %1036 = vst [vmem:[%s1006 + $0x15c] sm:$0xf] %v971
      %1037 = vst [vmem:[%s1006 + $0x168] sm:$0xf] %v972
      %1038 = vst [vmem:[%s1006 + $0x174] sm:$0xf] %v973
      %1039 = vst [vmem:[%s1006 + $0x4] sm:$0xf] %v635
      %1040 = vst [vmem:[%s1006 + $0x10] sm:$0xf] %v636
      %1041 = vst [vmem:[%s1006 + $0x1c] sm:$0xf] %v637
      %1042 = vst [vmem:[%s1006 + $0x28] sm:$0xf] %v638
      %1043 = vst [vmem:[%s1006 + $0x34] sm:$0xf] %v639
      %1044 = vst [vmem:[%s1006 + $0x40] sm:$0xf] %v640
      %1045 = vst [vmem:[%s1006 + $0x4c] sm:$0xf] %v641
      %1046 = vst [vmem:[%s1006 + $0x58] sm:$0xf] %v642
      %1047 = vst [vmem:[%s1006 + $0x64] sm:$0xf] %v643
      %1048 = vst [vmem:[%s1006 + $0x70] sm:$0xf] %v644
      %1049 = vst [vmem:[%s1006 + $0x7c] sm:$0xf] %v645
      %1050 = vst [vmem:[%s1006 + $0x88] sm:$0xf] %v646
      %1051 = vst [vmem:[%s1006 + $0x94] sm:$0xf] %v647
      %1052 = vst [vmem:[%s1006 + $0xa0] sm:$0xf] %v648
      %1053 = vst [vmem:[%s1006 + $0xac] sm:$0xf] %v649
      %1054 = vst [vmem:[%s1006 + $0xb8] sm:$0xf] %v650
      %1055 = vst [vmem:[%s1006 + $0xc4] sm:$0xf] %v651
      %1056 = vst [vmem:[%s1006 + $0xd0] sm:$0xf] %v652
      %1057 = vst [vmem:[%s1006 + $0xdc] sm:$0xf] %v653
      %1058 = vst [vmem:[%s1006 + $0xe8] sm:$0xf] %v654
      %1059 = vst [vmem:[%s1006 + $0xf4] sm:$0xf] %v655
      %1060 = vst [vmem:[%s1006 + $0x100] sm:$0xf] %v656
      %1061 = vst [vmem:[%s1006 + $0x10c] sm:$0xf] %v657
      %1062 = vst [vmem:[%s1006 + $0x118] sm:$0xf] %v658
      %1063 = vst [vmem:[%s1006 + $0x124] sm:$0xf] %v659
      %1064 = vst [vmem:[%s1006 + $0x130] sm:$0xf] %v660
      %1065 = vst [vmem:[%s1006 + $0x13c] sm:$0xf] %v661
      %1066 = vst [vmem:[%s1006 + $0x148] sm:$0xf] %v662
      %1067 = vst [vmem:[%s1006 + $0x154] sm:$0xf] %v663
      %1068 = vst [vmem:[%s1006 + $0x160] sm:$0xf] %v664
      %1069 = vst [vmem:[%s1006 + $0x16c] sm:$0xf] %v665
      %1070 = vst [vmem:[%s1006 + $0x178] sm:$0xf] %v666
      %v1071 = vrot.slane %v751, 1
      %v1072 = vor.u32 %v748, %v1071
      %v1073 = vrot.slane %v758, 1
      %v1074 = vor.u32 %v755, %v1073
      %v1075 = vrot.slane %v765, 1
      %v1076 = vor.u32 %v762, %v1075
      %v1077 = vrot.slane %v772, 1
      %v1078 = vor.u32 %v769, %v1077
      %v1079 = vrot.slane %v779, 1
      %v1080 = vor.u32 %v776, %v1079
      %v1081 = vrot.slane %v786, 1
      %v1082 = vor.u32 %v783, %v1081
      %v1083 = vrot.slane %v793, 1
      %v1084 = vor.u32 %v790, %v1083
      %v1085 = vrot.slane %v800, 1
      %v1086 = vor.u32 %v797, %v1085
      %v1087 = vrot.slane %v807, 1
      %v1088 = vor.u32 %v804, %v1087
      %v1089 = vrot.slane %v814, 1
      %v1090 = vor.u32 %v811, %v1089
      %v1091 = vrot.slane %v821, 1
      %v1092 = vor.u32 %v818, %v1091
      %v1093 = vrot.slane %v828, 1
      %v1094 = vor.u32 %v825, %v1093
      %v1095 = vrot.slane %v835, 1
      %v1096 = vor.u32 %v832, %v1095
      %v1097 = vrot.slane %v842, 1
      %v1098 = vor.u32 %v839, %v1097
      %v1099 = vrot.slane %v849, 1
      %v1100 = vor.u32 %v846, %v1099
      %v1101 = vrot.slane %v856, 1
      %v1102 = vor.u32 %v853, %v1101
      %vm1119 = vcmask 1047552
      %vm1120 = vsmask.f32 7424
      %vm1121 = vmand %vm1119, %vm1120
      %v1122 = vsel %vm1121, %v1072, 0
      %v1123 = vsel %vm1121, %v1074, 0
      %v1124 = vsel %vm1121, %v1076, 0
      %v1125 = vsel %vm1121, %v1078, 0
      %v1126 = vsel %vm1121, %v1080, 0
      %v1127 = vsel %vm1121, %v1082, 0
      %v1128 = vsel %vm1121, %v1084, 0
      %v1129 = vsel %vm1121, %v1086, 0
      %v1130 = vsel %vm1121, %v1088, 0
      %v1131 = vsel %vm1121, %v1090, 0
      %v1132 = vsel %vm1121, %v1092, 0
      %v1133 = vsel %vm1121, %v1094, 0
      %v1134 = vsel %vm1121, %v1096, 0
      %v1135 = vsel %vm1121, %v1098, 0
      %v1136 = vsel %vm1121, %v1100, 0
      %v1137 = vsel %vm1121, %v1102, 0
      %v1154 = vunpack.c.l.b16 %v1122
      %v1155 = vunpack.c.h.b16 %v1122
      %v1156 = vunpack.c.l.b16 %v1123
      %v1157 = vunpack.c.h.b16 %v1123
      %v1158 = vunpack.c.l.b16 %v1124
      %v1159 = vunpack.c.h.b16 %v1124
      %v1160 = vunpack.c.l.b16 %v1125
      %v1161 = vunpack.c.h.b16 %v1125
      %v1162 = vunpack.c.l.b16 %v1126
      %v1163 = vunpack.c.h.b16 %v1126
      %v1164 = vunpack.c.l.b16 %v1127
      %v1165 = vunpack.c.h.b16 %v1127
      %v1166 = vunpack.c.l.b16 %v1128
      %v1167 = vunpack.c.h.b16 %v1128
      %v1168 = vunpack.c.l.b16 %v1129
      %v1169 = vunpack.c.h.b16 %v1129
      %v1170 = vunpack.c.l.b16 %v1130
      %v1171 = vunpack.c.h.b16 %v1130
      %v1172 = vunpack.c.l.b16 %v1131
      %v1173 = vunpack.c.h.b16 %v1131
      %v1174 = vunpack.c.l.b16 %v1132
      %v1175 = vunpack.c.h.b16 %v1132
      %v1176 = vunpack.c.l.b16 %v1133
      %v1177 = vunpack.c.h.b16 %v1133
      %v1178 = vunpack.c.l.b16 %v1134
      %v1179 = vunpack.c.h.b16 %v1134
      %v1180 = vunpack.c.l.b16 %v1135
      %v1181 = vunpack.c.h.b16 %v1135
      %v1182 = vunpack.c.l.b16 %v1136
      %v1183 = vunpack.c.h.b16 %v1136
      %v1184 = vunpack.c.l.b16 %v1137
      %v1185 = vunpack.c.h.b16 %v1137
      %v1186 = vpack.c.b16 %v1154, %v1154
      %v1187 = vpack.c.b16 %v1155, %v1155
      %v1188 = vpack.c.b16 %v1156, %v1156
      %v1189 = vpack.c.b16 %v1157, %v1157
      %v1190 = vpack.c.b16 %v1158, %v1158
      %v1191 = vpack.c.b16 %v1159, %v1159
      %v1192 = vpack.c.b16 %v1160, %v1160
      %v1193 = vpack.c.b16 %v1161, %v1161
      %v1194 = vpack.c.b16 %v1162, %v1162
      %v1195 = vpack.c.b16 %v1163, %v1163
      %v1196 = vpack.c.b16 %v1164, %v1164
      %v1197 = vpack.c.b16 %v1165, %v1165
      %v1198 = vpack.c.b16 %v1166, %v1166
      %v1199 = vpack.c.b16 %v1167, %v1167
      %v1200 = vpack.c.b16 %v1168, %v1168
      %v1201 = vpack.c.b16 %v1169, %v1169
      %v1202 = vpack.c.b16 %v1170, %v1170
      %v1203 = vpack.c.b16 %v1171, %v1171
      %v1204 = vpack.c.b16 %v1172, %v1172
      %v1205 = vpack.c.b16 %v1173, %v1173
      %v1206 = vpack.c.b16 %v1174, %v1174
      %v1207 = vpack.c.b16 %v1175, %v1175
      %v1208 = vpack.c.b16 %v1176, %v1176
      %v1209 = vpack.c.b16 %v1177, %v1177
      %v1210 = vpack.c.b16 %v1178, %v1178
      %v1211 = vpack.c.b16 %v1179, %v1179
      %v1212 = vpack.c.b16 %v1180, %v1180
      %v1213 = vpack.c.b16 %v1181, %v1181
      %v1214 = vpack.c.b16 %v1182, %v1182
      %v1215 = vpack.c.b16 %v1183, %v1183
      %v1216 = vpack.c.b16 %v1184, %v1184
      %v1217 = vpack.c.b16 %v1185, %v1185
      %1250 = vst [vmem:[%s1006 + $0x8] sm:$0xf] %v1186
      %1251 = vst [vmem:[%s1006 + $0x14] sm:$0xf] %v1187
      %1252 = vst [vmem:[%s1006 + $0x20] sm:$0xf] %v1188
      %1253 = vst [vmem:[%s1006 + $0x2c] sm:$0xf] %v1189
      %1254 = vst [vmem:[%s1006 + $0x38] sm:$0xf] %v1190
      %1255 = vst [vmem:[%s1006 + $0x44] sm:$0xf] %v1191
      %1256 = vst [vmem:[%s1006 + $0x50] sm:$0xf] %v1192
      %1257 = vst [vmem:[%s1006 + $0x5c] sm:$0xf] %v1193
      %1258 = vst [vmem:[%s1006 + $0x68] sm:$0xf] %v1194
      %1259 = vst [vmem:[%s1006 + $0x74] sm:$0xf] %v1195
      %1260 = vst [vmem:[%s1006 + $0x80] sm:$0xf] %v1196
      %1261 = vst [vmem:[%s1006 + $0x8c] sm:$0xf] %v1197
      %1262 = vst [vmem:[%s1006 + $0x98] sm:$0xf] %v1198
      %1263 = vst [vmem:[%s1006 + $0xa4] sm:$0xf] %v1199
      %1264 = vst [vmem:[%s1006 + $0xb0] sm:$0xf] %v1200
      %1265 = vst [vmem:[%s1006 + $0xbc] sm:$0xf] %v1201
      %1266 = vst [vmem:[%s1006 + $0xc8] sm:$0xf] %v1202
      %1267 = vst [vmem:[%s1006 + $0xd4] sm:$0xf] %v1203
      %1268 = vst [vmem:[%s1006 + $0xe0] sm:$0xf] %v1204
      %1269 = vst [vmem:[%s1006 + $0xec] sm:$0xf] %v1205
      %1270 = vst [vmem:[%s1006 + $0xf8] sm:$0xf] %v1206
      %1271 = vst [vmem:[%s1006 + $0x104] sm:$0xf] %v1207
      %1272 = vst [vmem:[%s1006 + $0x110] sm:$0xf] %v1208
      %1273 = vst [vmem:[%s1006 + $0x11c] sm:$0xf] %v1209
      %1274 = vst [vmem:[%s1006 + $0x128] sm:$0xf] %v1210
      %1275 = vst [vmem:[%s1006 + $0x134] sm:$0xf] %v1211
      %1276 = vst [vmem:[%s1006 + $0x140] sm:$0xf] %v1212
      %1277 = vst [vmem:[%s1006 + $0x14c] sm:$0xf] %v1213
      %1278 = vst [vmem:[%s1006 + $0x158] sm:$0xf] %v1214
      %1279 = vst [vmem:[%s1006 + $0x164] sm:$0xf] %v1215
      %1280 = vst [vmem:[%s1006 + $0x170] sm:$0xf] %v1216
      %1281 = vst [vmem:[%s1006 + $0x17c] sm:$0xf] %v1217
      %v1282 = vld [vmem:[#allocation2] sm:$0xff]
      %v1283 = vld [vmem:[#allocation2 + $0x8] sm:$0xf]
      %v1284 = vld [vmem:[#allocation2 + $0xc] sm:$0xff]
      %v1285 = vld [vmem:[#allocation2 + $0x14] sm:$0xf]
      %v1286 = vld [vmem:[#allocation2 + $0x18] sm:$0xff]
      %v1287 = vld [vmem:[#allocation2 + $0x20] sm:$0xf]
      %v1288 = vld [vmem:[#allocation2 + $0x24] sm:$0xff]
      %v1289 = vld [vmem:[#allocation2 + $0x2c] sm:$0xf]
      %v1290 = vld [vmem:[#allocation2 + $0x30] sm:$0xff]
      %v1291 = vld [vmem:[#allocation2 + $0x38] sm:$0xf]
      %v1292 = vld [vmem:[#allocation2 + $0x3c] sm:$0xff]
      %v1293 = vld [vmem:[#allocation2 + $0x44] sm:$0xf]
      %v1294 = vld [vmem:[#allocation2 + $0x48] sm:$0xff]
      %v1295 = vld [vmem:[#allocation2 + $0x50] sm:$0xf]
      %v1296 = vld [vmem:[#allocation2 + $0x54] sm:$0xff]
      %v1297 = vld [vmem:[#allocation2 + $0x5c] sm:$0xf]
      %v1298 = vld [vmem:[#allocation2 + $0x60] sm:$0xff]
      %v1299 = vld [vmem:[#allocation2 + $0x68] sm:$0xf]
      %v1300 = vld [vmem:[#allocation2 + $0x6c] sm:$0xff]
      %v1301 = vld [vmem:[#allocation2 + $0x74] sm:$0xf]
      %v1302 = vld [vmem:[#allocation2 + $0x78] sm:$0xff]
      %v1303 = vld [vmem:[#allocation2 + $0x80] sm:$0xf]
      %v1304 = vld [vmem:[#allocation2 + $0x84] sm:$0xff]
      %v1305 = vld [vmem:[#allocation2 + $0x8c] sm:$0xf]
      %v1306 = vld [vmem:[#allocation2 + $0x90] sm:$0xff]
      %v1307 = vld [vmem:[#allocation2 + $0x98] sm:$0xf]
      %v1308 = vld [vmem:[#allocation2 + $0x9c] sm:$0xff]
      %v1309 = vld [vmem:[#allocation2 + $0xa4] sm:$0xf]
      %v1310 = vld [vmem:[#allocation2 + $0xa8] sm:$0xff]
      %v1311 = vld [vmem:[#allocation2 + $0xb0] sm:$0xf]
      %v1312 = vld [vmem:[#allocation2 + $0xb4] sm:$0xff]
      %v1313 = vld [vmem:[#allocation2 + $0xbc] sm:$0xf]
      %v1314 = vld [vmem:[#allocation2 + $0xc0] sm:$0xff]
      %v1315 = vld [vmem:[#allocation2 + $0xc8] sm:$0xf]
      %v1316 = vld [vmem:[#allocation2 + $0xcc] sm:$0xff]
      %v1317 = vld [vmem:[#allocation2 + $0xd4] sm:$0xf]
      %v1318 = vld [vmem:[#allocation2 + $0xd8] sm:$0xff]
      %v1319 = vld [vmem:[#allocation2 + $0xe0] sm:$0xf]
      %v1320 = vld [vmem:[#allocation2 + $0xe4] sm:$0xff]
      %v1321 = vld [vmem:[#allocation2 + $0xec] sm:$0xf]
      %v1322 = vld [vmem:[#allocation2 + $0xf0] sm:$0xff]
      %v1323 = vld [vmem:[#allocation2 + $0xf8] sm:$0xf]
      %v1324 = vld [vmem:[#allocation2 + $0xfc] sm:$0xff]
      %v1325 = vld [vmem:[#allocation2 + $0x104] sm:$0xf]
      %v1326 = vld [vmem:[#allocation2 + $0x108] sm:$0xff]
      %v1327 = vld [vmem:[#allocation2 + $0x110] sm:$0xf]
      %v1328 = vld [vmem:[#allocation2 + $0x114] sm:$0xff]
      %v1329 = vld [vmem:[#allocation2 + $0x11c] sm:$0xf]
      %v1330 = vld [vmem:[#allocation2 + $0x120] sm:$0xff]
      %v1331 = vld [vmem:[#allocation2 + $0x128] sm:$0xf]
      %v1332 = vld [vmem:[#allocation2 + $0x12c] sm:$0xff]
      %v1333 = vld [vmem:[#allocation2 + $0x134] sm:$0xf]
      %v1334 = vld [vmem:[#allocation2 + $0x138] sm:$0xff]
      %v1335 = vld [vmem:[#allocation2 + $0x140] sm:$0xf]
      %v1336 = vld [vmem:[#allocation2 + $0x144] sm:$0xff]
      %v1337 = vld [vmem:[#allocation2 + $0x14c] sm:$0xf]
      %v1338 = vld [vmem:[#allocation2 + $0x150] sm:$0xff]
      %v1339 = vld [vmem:[#allocation2 + $0x158] sm:$0xf]
      %v1340 = vld [vmem:[#allocation2 + $0x15c] sm:$0xff]
      %v1341 = vld [vmem:[#allocation2 + $0x164] sm:$0xf]
      %v1342 = vld [vmem:[#allocation2 + $0x168] sm:$0xff]
      %v1343 = vld [vmem:[#allocation2 + $0x170] sm:$0xf]
      %v1344 = vld [vmem:[#allocation2 + $0x174] sm:$0xff]
      %v1345 = vld [vmem:[#allocation2 + $0x17c] sm:$0xf]
      %v1346 = vld [vmem:[%s5] sm:$0xf]
      %v1347 = vld [vmem:[%s5 + $0x4] sm:$0xf]
      %v1348 = vld [vmem:[%s5 + $0x8] sm:$0xf]
      %v1349 = vld [vmem:[%s5 + $0xc] sm:$0xf]
      %v1350 = vld [vmem:[%s5 + $0x10] sm:$0xf]
      %v1351 = vld [vmem:[%s5 + $0x14] sm:$0xf]
      %v1352 = vld [vmem:[%s5 + $0x18] sm:$0xf]
      %v1353 = vld [vmem:[%s5 + $0x1c] sm:$0xf]
      %v1354 = vld [vmem:[%s5 + $0x20] sm:$0xf]
      %v1355 = vld [vmem:[%s5 + $0x24] sm:$0xf]
      %v1356 = vld [vmem:[%s5 + $0x28] sm:$0xf]
      %v1357 = vld [vmem:[%s5 + $0x2c] sm:$0xf]
      %v1358 = vld [vmem:[%s5 + $0x30] sm:$0xf]
      %v1359 = vld [vmem:[%s5 + $0x34] sm:$0xf]
      %v1360 = vld [vmem:[%s5 + $0x38] sm:$0xf]
      %v1361 = vld [vmem:[%s5 + $0x3c] sm:$0xf]
      %v1362 = vld [vmem:[%s5 + $0x40] sm:$0xf]
      %v1363 = vld [vmem:[%s5 + $0x44] sm:$0xf]
      %v1364 = vld [vmem:[%s5 + $0x48] sm:$0xf]
      %v1365 = vld [vmem:[%s5 + $0x4c] sm:$0xf]
      %v1366 = vld [vmem:[%s5 + $0x50] sm:$0xf]
      %v1367 = vld [vmem:[%s5 + $0x54] sm:$0xf]
      %v1368 = vld [vmem:[%s5 + $0x58] sm:$0xf]
      %v1369 = vld [vmem:[%s5 + $0x5c] sm:$0xf]
      %v1370 = vld [vmem:[%s5 + $0x60] sm:$0xf]
      %v1371 = vld [vmem:[%s5 + $0x64] sm:$0xf]
      %v1372 = vld [vmem:[%s5 + $0x68] sm:$0xf]
      %v1373 = vld [vmem:[%s5 + $0x6c] sm:$0xf]
      %v1374 = vld [vmem:[%s5 + $0x70] sm:$0xf]
      %v1375 = vld [vmem:[%s5 + $0x74] sm:$0xf]
      %v1376 = vld [vmem:[%s5 + $0x78] sm:$0xf]
      %v1377 = vld [vmem:[%s5 + $0x7c] sm:$0xf]
      %v1378 = vld [vmem:[%s5 + $0x80] sm:$0xf]
      %v1379 = vld [vmem:[%s5 + $0x84] sm:$0xf]
      %v1380 = vld [vmem:[%s5 + $0x88] sm:$0xf]
      %v1381 = vld [vmem:[%s5 + $0x8c] sm:$0xf]
      %v1382 = vld [vmem:[%s5 + $0x90] sm:$0xf]
      %v1383 = vld [vmem:[%s5 + $0x94] sm:$0xf]
      %v1384 = vld [vmem:[%s5 + $0x98] sm:$0xf]
      %v1385 = vld [vmem:[%s5 + $0x9c] sm:$0xf]
      %v1386 = vld [vmem:[%s5 + $0xa0] sm:$0xf]
      %v1387 = vld [vmem:[%s5 + $0xa4] sm:$0xf]
      %v1388 = vld [vmem:[%s5 + $0xa8] sm:$0xf]
      %v1389 = vld [vmem:[%s5 + $0xac] sm:$0xf]
      %v1390 = vld [vmem:[%s5 + $0xb0] sm:$0xf]
      %v1391 = vld [vmem:[%s5 + $0xb4] sm:$0xf]
      %v1392 = vld [vmem:[%s5 + $0xb8] sm:$0xf]
      %v1393 = vld [vmem:[%s5 + $0xbc] sm:$0xf]
      %v1394 = vld [vmem:[%s1006] sm:$0xff]
      %v1395 = vld [vmem:[%s1006 + $0x8] sm:$0xf]
      %v1396 = vld [vmem:[%s1006 + $0xc] sm:$0xff]
      %v1397 = vld [vmem:[%s1006 + $0x14] sm:$0xf]
      %v1398 = vld [vmem:[%s1006 + $0x18] sm:$0xff]
      %v1399 = vld [vmem:[%s1006 + $0x20] sm:$0xf]
      %v1400 = vld [vmem:[%s1006 + $0x24] sm:$0xff]
      %v1401 = vld [vmem:[%s1006 + $0x2c] sm:$0xf]
      %v1402 = vld [vmem:[%s1006 + $0x30] sm:$0xff]
      %v1403 = vld [vmem:[%s1006 + $0x38] sm:$0xf]
      %v1404 = vld [vmem:[%s1006 + $0x3c] sm:$0xff]
      %v1405 = vld [vmem:[%s1006 + $0x44] sm:$0xf]
      %v1406 = vld [vmem:[%s1006 + $0x48] sm:$0xff]
      %v1407 = vld [vmem:[%s1006 + $0x50] sm:$0xf]
      %v1408 = vld [vmem:[%s1006 + $0x54] sm:$0xff]
      %v1409 = vld [vmem:[%s1006 + $0x5c] sm:$0xf]
      %v1410 = vld [vmem:[%s1006 + $0x60] sm:$0xff]
      %v1411 = vld [vmem:[%s1006 + $0x68] sm:$0xf]
      %v1412 = vld [vmem:[%s1006 + $0x6c] sm:$0xff]
      %v1413 = vld [vmem:[%s1006 + $0x74] sm:$0xf]
      %v1414 = vld [vmem:[%s1006 + $0x78] sm:$0xff]
      %v1415 = vld [vmem:[%s1006 + $0x80] sm:$0xf]
      %v1416 = vld [vmem:[%s1006 + $0x84] sm:$0xff]
      %v1417 = vld [vmem:[%s1006 + $0x8c] sm:$0xf]
      %v1418 = vld [vmem:[%s1006 + $0x90] sm:$0xff]
      %v1419 = vld [vmem:[%s1006 + $0x98] sm:$0xf]
      %v1420 = vld [vmem:[%s1006 + $0x9c] sm:$0xff]
      %v1421 = vld [vmem:[%s1006 + $0xa4] sm:$0xf]
      %v1422 = vld [vmem:[%s1006 + $0xa8] sm:$0xff]
      %v1423 = vld [vmem:[%s1006 + $0xb0] sm:$0xf]
      %v1424 = vld [vmem:[%s1006 + $0xb4] sm:$0xff]
      %v1425 = vld [vmem:[%s1006 + $0xbc] sm:$0xf]
      %v1426 = vld [vmem:[%s1006 + $0xc0] sm:$0xff]
      %v1427 = vld [vmem:[%s1006 + $0xc8] sm:$0xf]
      %v1428 = vld [vmem:[%s1006 + $0xcc] sm:$0xff]
      %v1429 = vld [vmem:[%s1006 + $0xd4] sm:$0xf]
      %v1430 = vld [vmem:[%s1006 + $0xd8] sm:$0xff]
      %v1431 = vld [vmem:[%s1006 + $0xe0] sm:$0xf]
      %v1432 = vld [vmem:[%s1006 + $0xe4] sm:$0xff]
      %v1433 = vld [vmem:[%s1006 + $0xec] sm:$0xf]
      %v1434 = vld [vmem:[%s1006 + $0xf0] sm:$0xff]
      %v1435 = vld [vmem:[%s1006 + $0xf8] sm:$0xf]
      %v1436 = vld [vmem:[%s1006 + $0xfc] sm:$0xff]
      %v1437 = vld [vmem:[%s1006 + $0x104] sm:$0xf]
      %v1438 = vld [vmem:[%s1006 + $0x108] sm:$0xff]
      %v1439 = vld [vmem:[%s1006 + $0x110] sm:$0xf]
      %v1440 = vld [vmem:[%s1006 + $0x114] sm:$0xff]
      %v1441 = vld [vmem:[%s1006 + $0x11c] sm:$0xf]
      %v1442 = vld [vmem:[%s1006 + $0x120] sm:$0xff]
      %v1443 = vld [vmem:[%s1006 + $0x128] sm:$0xf]
      %v1444 = vld [vmem:[%s1006 + $0x12c] sm:$0xff]
      %v1445 = vld [vmem:[%s1006 + $0x134] sm:$0xf]
      %v1446 = vld [vmem:[%s1006 + $0x138] sm:$0xff]
      %v1447 = vld [vmem:[%s1006 + $0x140] sm:$0xf]
      %v1448 = vld [vmem:[%s1006 + $0x144] sm:$0xff]
      %v1449 = vld [vmem:[%s1006 + $0x14c] sm:$0xf]
      %v1450 = vld [vmem:[%s1006 + $0x150] sm:$0xff]
      %v1451 = vld [vmem:[%s1006 + $0x158] sm:$0xf]
      %v1452 = vld [vmem:[%s1006 + $0x15c] sm:$0xff]
      %v1453 = vld [vmem:[%s1006 + $0x164] sm:$0xf]
      %v1454 = vld [vmem:[%s1006 + $0x168] sm:$0xff]
      %v1455 = vld [vmem:[%s1006 + $0x170] sm:$0xf]
      %v1456 = vld [vmem:[%s1006 + $0x174] sm:$0xff]
      %v1457 = vld [vmem:[%s1006 + $0x17c] sm:$0xf]
      %s1458 = scalar_lea.vmem %s5, 192
      %v1459 = vld [vmem:[%s1458] sm:$0xf]
      %v1460 = vld [vmem:[%s1458 + $0x4] sm:$0xf]
      %v1461 = vld [vmem:[%s1458 + $0x8] sm:$0xf]
      %v1462 = vld [vmem:[%s1458 + $0xc] sm:$0xf]
      %v1463 = vld [vmem:[%s1458 + $0x10] sm:$0xf]
      %v1464 = vld [vmem:[%s1458 + $0x14] sm:$0xf]
      %v1465 = vld [vmem:[%s1458 + $0x18] sm:$0xf]
      %v1466 = vld [vmem:[%s1458 + $0x1c] sm:$0xf]
      %v1467 = vld [vmem:[%s1458 + $0x20] sm:$0xf]
      %v1468 = vld [vmem:[%s1458 + $0x24] sm:$0xf]
      %v1469 = vld [vmem:[%s1458 + $0x28] sm:$0xf]
      %v1470 = vld [vmem:[%s1458 + $0x2c] sm:$0xf]
      %v1471 = vld [vmem:[%s1458 + $0x30] sm:$0xf]
      %v1472 = vld [vmem:[%s1458 + $0x34] sm:$0xf]
      %v1473 = vld [vmem:[%s1458 + $0x38] sm:$0xf]
      %v1474 = vld [vmem:[%s1458 + $0x3c] sm:$0xf]
      %v1475 = vld [vmem:[%s1458 + $0x40] sm:$0xf]
      %v1476 = vld [vmem:[%s1458 + $0x44] sm:$0xf]
      %v1477 = vld [vmem:[%s1458 + $0x48] sm:$0xf]
      %v1478 = vld [vmem:[%s1458 + $0x4c] sm:$0xf]
      %v1479 = vld [vmem:[%s1458 + $0x50] sm:$0xf]
      %v1480 = vld [vmem:[%s1458 + $0x54] sm:$0xf]
      %v1481 = vld [vmem:[%s1458 + $0x58] sm:$0xf]
      %v1482 = vld [vmem:[%s1458 + $0x5c] sm:$0xf]
      %v1483 = vld [vmem:[%s1458 + $0x60] sm:$0xf]
      %v1484 = vld [vmem:[%s1458 + $0x64] sm:$0xf]
      %v1485 = vld [vmem:[%s1458 + $0x68] sm:$0xf]
      %v1486 = vld [vmem:[%s1458 + $0x6c] sm:$0xf]
      %v1487 = vld [vmem:[%s1458 + $0x70] sm:$0xf]
      %v1488 = vld [vmem:[%s1458 + $0x74] sm:$0xf]
      %v1489 = vld [vmem:[%s1458 + $0x78] sm:$0xf]
      %v1490 = vld [vmem:[%s1458 + $0x7c] sm:$0xf]
      %v1491 = vld [vmem:[%s1458 + $0x80] sm:$0xf]
      %v1492 = vld [vmem:[%s1458 + $0x84] sm:$0xf]
      %v1493 = vld [vmem:[%s1458 + $0x88] sm:$0xf]
      %v1494 = vld [vmem:[%s1458 + $0x8c] sm:$0xf]
      %v1495 = vld [vmem:[%s1458 + $0x90] sm:$0xf]
      %v1496 = vld [vmem:[%s1458 + $0x94] sm:$0xf]
      %v1497 = vld [vmem:[%s1458 + $0x98] sm:$0xf]
      %v1498 = vld [vmem:[%s1458 + $0x9c] sm:$0xf]
      %v1499 = vld [vmem:[%s1458 + $0xa0] sm:$0xf]
      %v1500 = vld [vmem:[%s1458 + $0xa4] sm:$0xf]
      %v1501 = vld [vmem:[%s1458 + $0xa8] sm:$0xf]
      %v1502 = vld [vmem:[%s1458 + $0xac] sm:$0xf]
      %v1503 = vld [vmem:[%s1458 + $0xb0] sm:$0xf]
      %v1504 = vld [vmem:[%s1458 + $0xb4] sm:$0xf]
      %v1505 = vld [vmem:[%s1458 + $0xb8] sm:$0xf]
      %v1506 = vld [vmem:[%s1458 + $0xbc] sm:$0xf]
      %v1571 = vunpack.c.l.b16 %v1394
      %v1572 = vunpack.c.h.b16 %v1394
      %v1573 = vunpack.c.l.b16 %v1395
      %v1574 = vunpack.c.l.b16 %v1396
      %v1575 = vunpack.c.h.b16 %v1396
      %v1576 = vunpack.c.l.b16 %v1397
      %v1577 = vunpack.c.l.b16 %v1398
      %v1578 = vunpack.c.h.b16 %v1398
      %v1579 = vunpack.c.l.b16 %v1399
      %v1580 = vunpack.c.l.b16 %v1400
      %v1581 = vunpack.c.h.b16 %v1400
      %v1582 = vunpack.c.l.b16 %v1401
      %v1583 = vunpack.c.l.b16 %v1402
      %v1584 = vunpack.c.h.b16 %v1402
      %v1585 = vunpack.c.l.b16 %v1403
      %v1586 = vunpack.c.l.b16 %v1404
      %v1587 = vunpack.c.h.b16 %v1404
      %v1588 = vunpack.c.l.b16 %v1405
      %v1589 = vunpack.c.l.b16 %v1406
      %v1590 = vunpack.c.h.b16 %v1406
      %v1591 = vunpack.c.l.b16 %v1407
      %v1592 = vunpack.c.l.b16 %v1408
      %v1593 = vunpack.c.h.b16 %v1408
      %v1594 = vunpack.c.l.b16 %v1409
      %v1595 = vunpack.c.l.b16 %v1410
      %v1596 = vunpack.c.h.b16 %v1410
      %v1597 = vunpack.c.l.b16 %v1411
      %v1598 = vunpack.c.l.b16 %v1412
      %v1599 = vunpack.c.h.b16 %v1412
      %v1600 = vunpack.c.l.b16 %v1413
      %v1601 = vunpack.c.l.b16 %v1414
      %v1602 = vunpack.c.h.b16 %v1414
      %v1603 = vunpack.c.l.b16 %v1415
      %v1604 = vunpack.c.l.b16 %v1416
      %v1605 = vunpack.c.h.b16 %v1416
      %v1606 = vunpack.c.l.b16 %v1417
      %v1607 = vunpack.c.l.b16 %v1418
      %v1608 = vunpack.c.h.b16 %v1418
      %v1609 = vunpack.c.l.b16 %v1419
      %v1610 = vunpack.c.l.b16 %v1420
      %v1611 = vunpack.c.h.b16 %v1420
      %v1612 = vunpack.c.l.b16 %v1421
      %v1613 = vunpack.c.l.b16 %v1422
      %v1614 = vunpack.c.h.b16 %v1422
      %v1615 = vunpack.c.l.b16 %v1423
      %v1616 = vunpack.c.l.b16 %v1424
      %v1617 = vunpack.c.h.b16 %v1424
      %v1618 = vunpack.c.l.b16 %v1425
      %v1619 = vunpack.c.l.b16 %v1426
      %v1620 = vunpack.c.h.b16 %v1426
      %v1621 = vunpack.c.l.b16 %v1427
      %v1622 = vunpack.c.l.b16 %v1428
      %v1623 = vunpack.c.h.b16 %v1428
      %v1624 = vunpack.c.l.b16 %v1429
      %v1625 = vunpack.c.l.b16 %v1430
      %v1626 = vunpack.c.h.b16 %v1430
      %v1627 = vunpack.c.l.b16 %v1431
      %v1628 = vunpack.c.l.b16 %v1432
      %v1629 = vunpack.c.h.b16 %v1432
      %v1630 = vunpack.c.l.b16 %v1433
      %v1631 = vunpack.c.l.b16 %v1434
      %v1632 = vunpack.c.h.b16 %v1434
      %v1633 = vunpack.c.l.b16 %v1435
      %v1634 = vunpack.c.l.b16 %v1436
      %v1635 = vunpack.c.h.b16 %v1436
      %v1636 = vunpack.c.l.b16 %v1437
      %v1637 = vunpack.c.l.b16 %v1438
      %v1638 = vunpack.c.h.b16 %v1438
      %v1639 = vunpack.c.l.b16 %v1439
      %v1640 = vunpack.c.l.b16 %v1440
      %v1641 = vunpack.c.h.b16 %v1440
      %v1642 = vunpack.c.l.b16 %v1441
      %v1643 = vunpack.c.l.b16 %v1442
      %v1644 = vunpack.c.h.b16 %v1442
      %v1645 = vunpack.c.l.b16 %v1443
      %v1646 = vunpack.c.l.b16 %v1444
      %v1647 = vunpack.c.h.b16 %v1444
      %v1648 = vunpack.c.l.b16 %v1445
      %v1649 = vunpack.c.l.b16 %v1446
      %v1650 = vunpack.c.h.b16 %v1446
      %v1651 = vunpack.c.l.b16 %v1447
      %v1652 = vunpack.c.l.b16 %v1448
      %v1653 = vunpack.c.h.b16 %v1448
      %v1654 = vunpack.c.l.b16 %v1449
      %v1655 = vunpack.c.l.b16 %v1450
      %v1656 = vunpack.c.h.b16 %v1450
      %v1657 = vunpack.c.l.b16 %v1451
      %v1658 = vunpack.c.l.b16 %v1452
      %v1659 = vunpack.c.h.b16 %v1452
      %v1660 = vunpack.c.l.b16 %v1453
      %v1661 = vunpack.c.l.b16 %v1454
      %v1662 = vunpack.c.h.b16 %v1454
      %v1663 = vunpack.c.l.b16 %v1455
      %v1664 = vunpack.c.l.b16 %v1456
      %v1665 = vunpack.c.h.b16 %v1456
      %v1666 = vunpack.c.l.b16 %v1457
      %v1667 = vpack.c.b16 %v1574, %v1571
      %v1668 = vpack.c.b16 %v1575, %v1572
      %v1669 = vpack.c.b16 %v1576, %v1573
      %v1670 = vpack.c.b16 %v1580, %v1577
      %v1671 = vpack.c.b16 %v1581, %v1578
      %v1672 = vpack.c.b16 %v1582, %v1579
      %v1673 = vpack.c.b16 %v1586, %v1583
      %v1674 = vpack.c.b16 %v1587, %v1584
      %v1675 = vpack.c.b16 %v1588, %v1585
      %v1676 = vpack.c.b16 %v1592, %v1589
      %v1677 = vpack.c.b16 %v1593, %v1590
      %v1678 = vpack.c.b16 %v1594, %v1591
      %v1679 = vpack.c.b16 %v1598, %v1595
      %v1680 = vpack.c.b16 %v1599, %v1596
      %v1681 = vpack.c.b16 %v1600, %v1597
      %v1682 = vpack.c.b16 %v1604, %v1601
      %v1683 = vpack.c.b16 %v1605, %v1602
      %v1684 = vpack.c.b16 %v1606, %v1603
      %v1685 = vpack.c.b16 %v1610, %v1607
      %v1686 = vpack.c.b16 %v1611, %v1608
      %v1687 = vpack.c.b16 %v1612, %v1609
      %v1688 = vpack.c.b16 %v1616, %v1613
      %v1689 = vpack.c.b16 %v1617, %v1614
      %v1690 = vpack.c.b16 %v1618, %v1615
      %v1691 = vpack.c.b16 %v1622, %v1619
      %v1692 = vpack.c.b16 %v1623, %v1620
      %v1693 = vpack.c.b16 %v1624, %v1621
      %v1694 = vpack.c.b16 %v1628, %v1625
      %v1695 = vpack.c.b16 %v1629, %v1626
      %v1696 = vpack.c.b16 %v1630, %v1627
      %v1697 = vpack.c.b16 %v1634, %v1631
      %v1698 = vpack.c.b16 %v1635, %v1632
      %v1699 = vpack.c.b16 %v1636, %v1633
      %v1700 = vpack.c.b16 %v1640, %v1637
      %v1701 = vpack.c.b16 %v1641, %v1638
      %v1702 = vpack.c.b16 %v1642, %v1639
      %v1703 = vpack.c.b16 %v1646, %v1643
      %v1704 = vpack.c.b16 %v1647, %v1644
      %v1705 = vpack.c.b16 %v1648, %v1645
      %v1706 = vpack.c.b16 %v1652, %v1649
      %v1707 = vpack.c.b16 %v1653, %v1650
      %v1708 = vpack.c.b16 %v1654, %v1651
      %v1709 = vpack.c.b16 %v1658, %v1655
      %v1710 = vpack.c.b16 %v1659, %v1656
      %v1711 = vpack.c.b16 %v1660, %v1657
      %v1712 = vpack.c.b16 %v1664, %v1661
      %v1713 = vpack.c.b16 %v1665, %v1662
      %v1714 = vpack.c.b16 %v1666, %v1663
      %v1811 = vunpack.c.l.b16 %v1459
      %v1812 = vunpack.c.l.b16 %v1460
      %v1813 = vunpack.c.l.b16 %v1461
      %v1814 = vunpack.c.l.b16 %v1462
      %v1815 = vunpack.c.l.b16 %v1463
      %v1816 = vunpack.c.l.b16 %v1464
      %v1817 = vunpack.c.l.b16 %v1465
      %v1818 = vunpack.c.l.b16 %v1466
      %v1819 = vunpack.c.l.b16 %v1467
      %v1820 = vunpack.c.l.b16 %v1468
      %v1821 = vunpack.c.l.b16 %v1469
      %v1822 = vunpack.c.l.b16 %v1470
      %v1823 = vunpack.c.l.b16 %v1471
      %v1824 = vunpack.c.l.b16 %v1472
      %v1825 = vunpack.c.l.b16 %v1473
      %v1826 = vunpack.c.l.b16 %v1474
      %v1827 = vunpack.c.l.b16 %v1475
      %v1828 = vunpack.c.l.b16 %v1476
      %v1829 = vunpack.c.l.b16 %v1477
      %v1830 = vunpack.c.l.b16 %v1478
      %v1831 = vunpack.c.l.b16 %v1479
      %v1832 = vunpack.c.l.b16 %v1480
      %v1833 = vunpack.c.l.b16 %v1481
      %v1834 = vunpack.c.l.b16 %v1482
      %v1835 = vunpack.c.l.b16 %v1483
      %v1836 = vunpack.c.l.b16 %v1484
      %v1837 = vunpack.c.l.b16 %v1485
      %v1838 = vunpack.c.l.b16 %v1486
      %v1839 = vunpack.c.l.b16 %v1487
      %v1840 = vunpack.c.l.b16 %v1488
      %v1841 = vunpack.c.l.b16 %v1489
      %v1842 = vunpack.c.l.b16 %v1490
      %v1843 = vunpack.c.l.b16 %v1491
      %v1844 = vunpack.c.l.b16 %v1492
      %v1845 = vunpack.c.l.b16 %v1493
      %v1846 = vunpack.c.l.b16 %v1494
      %v1847 = vunpack.c.l.b16 %v1495
      %v1848 = vunpack.c.l.b16 %v1496
      %v1849 = vunpack.c.l.b16 %v1497
      %v1850 = vunpack.c.l.b16 %v1498
      %v1851 = vunpack.c.l.b16 %v1499
      %v1852 = vunpack.c.l.b16 %v1500
      %v1853 = vunpack.c.l.b16 %v1501
      %v1854 = vunpack.c.l.b16 %v1502
      %v1855 = vunpack.c.l.b16 %v1503
      %v1856 = vunpack.c.l.b16 %v1504
      %v1857 = vunpack.c.l.b16 %v1505
      %v1858 = vunpack.c.l.b16 %v1506
      %v1859 = vpack.c.b16 %v1812, %v1811
      %v1860 = vpack.c.b16 %v1814, %v1813
      %v1861 = vpack.c.b16 %v1816, %v1815
      %v1862 = vpack.c.b16 %v1818, %v1817
      %v1863 = vpack.c.b16 %v1820, %v1819
      %v1864 = vpack.c.b16 %v1822, %v1821
      %v1865 = vpack.c.b16 %v1824, %v1823
      %v1866 = vpack.c.b16 %v1826, %v1825
      %v1867 = vpack.c.b16 %v1828, %v1827
      %v1868 = vpack.c.b16 %v1830, %v1829
      %v1869 = vpack.c.b16 %v1832, %v1831
      %v1870 = vpack.c.b16 %v1834, %v1833
      %v1871 = vpack.c.b16 %v1836, %v1835
      %v1872 = vpack.c.b16 %v1838, %v1837
      %v1873 = vpack.c.b16 %v1840, %v1839
      %v1874 = vpack.c.b16 %v1842, %v1841
      %v1875 = vpack.c.b16 %v1844, %v1843
      %v1876 = vpack.c.b16 %v1846, %v1845
      %v1877 = vpack.c.b16 %v1848, %v1847
      %v1878 = vpack.c.b16 %v1850, %v1849
      %v1879 = vpack.c.b16 %v1852, %v1851
      %v1880 = vpack.c.b16 %v1854, %v1853
      %v1881 = vpack.c.b16 %v1856, %v1855
      %v1882 = vpack.c.b16 %v1858, %v1857
      %1907 = vmatpush.bf16.msra.mxu0 %v1866
      %1908 = vmatpush.bf16.msra.mxu0 %v1865
      %1909 = vmatpush.bf16.msra.mxu0 %v1864
      %1910 = vmatpush.bf16.msra.mxu0 %v1863
      %1911 = vmatpush.bf16.msra.mxu0 %v1862
      %1912 = vmatpush.bf16.msra.mxu0 %v1861
      %1913 = vmatpush.bf16.msra.mxu0 %v1860
      %1914 = vmatpush.bf16.msra.mxu0 %v1859
      %1915 = vmatmul.bf16.gmra.mxu0 %v1667
      %v1916 = vpop.f32.mrf.mxu0
      %v1917 = vadd.f32 0.0, %v1916
      %v1918 = vpop.f32.mrf.mxu0
      %v1919 = vadd.f32 0.0, %v1918
      %1920 = vmatmul.bf16.gmra.mxu0 %v1670
      %v1921 = vpop.f32.mrf.mxu0
      %v1922 = vadd.f32 0.0, %v1921
      %v1923 = vpop.f32.mrf.mxu0
      %v1924 = vadd.f32 0.0, %v1923
      %1925 = vmatmul.bf16.gmra.mxu0 %v1673
      %v1926 = vpop.f32.mrf.mxu0
      %v1927 = vadd.f32 0.0, %v1926
      %v1928 = vpop.f32.mrf.mxu0
      %v1929 = vadd.f32 0.0, %v1928
      %1930 = vmatmul.bf16.gmra.mxu0 %v1676
      %v1931 = vpop.f32.mrf.mxu0
      %v1932 = vadd.f32 0.0, %v1931
      %v1933 = vpop.f32.mrf.mxu0
      %v1934 = vadd.f32 0.0, %v1933
      %1935 = vmatmul.bf16.gmra.mxu0 %v1679
      %v1936 = vpop.f32.mrf.mxu0
      %v1937 = vadd.f32 0.0, %v1936
      %v1938 = vpop.f32.mrf.mxu0
      %v1939 = vadd.f32 0.0, %v1938
      %1940 = vmatmul.bf16.gmra.mxu0 %v1682
      %v1941 = vpop.f32.mrf.mxu0
      %v1942 = vadd.f32 0.0, %v1941
      %v1943 = vpop.f32.mrf.mxu0
      %v1944 = vadd.f32 0.0, %v1943
      %1945 = vmatmul.bf16.gmra.mxu0 %v1685
      %v1946 = vpop.f32.mrf.mxu0
      %v1947 = vadd.f32 0.0, %v1946
      %v1948 = vpop.f32.mrf.mxu0
      %v1949 = vadd.f32 0.0, %v1948
      %1950 = vmatmul.bf16.gmra.mxu0 %v1688
      %v1951 = vpop.f32.mrf.mxu0
      %v1952 = vadd.f32 0.0, %v1951
      %v1953 = vpop.f32.mrf.mxu0
      %v1954 = vadd.f32 0.0, %v1953
      %1955 = vmatmul.bf16.gmra.mxu0 %v1691
      %v1956 = vpop.f32.mrf.mxu0
      %v1957 = vadd.f32 0.0, %v1956
      %v1958 = vpop.f32.mrf.mxu0
      %v1959 = vadd.f32 0.0, %v1958
      %1960 = vmatmul.bf16.gmra.mxu0 %v1694
      %v1961 = vpop.f32.mrf.mxu0
      %v1962 = vadd.f32 0.0, %v1961
      %v1963 = vpop.f32.mrf.mxu0
      %v1964 = vadd.f32 0.0, %v1963
      %1965 = vmatmul.bf16.gmra.mxu0 %v1697
      %v1966 = vpop.f32.mrf.mxu0
      %v1967 = vadd.f32 0.0, %v1966
      %v1968 = vpop.f32.mrf.mxu0
      %v1969 = vadd.f32 0.0, %v1968
      %1970 = vmatmul.bf16.gmra.mxu0 %v1700
      %v1971 = vpop.f32.mrf.mxu0
      %v1972 = vadd.f32 0.0, %v1971
      %v1973 = vpop.f32.mrf.mxu0
      %v1974 = vadd.f32 0.0, %v1973
      %1975 = vmatmul.bf16.gmra.mxu0 %v1703
      %v1976 = vpop.f32.mrf.mxu0
      %v1977 = vadd.f32 0.0, %v1976
      %v1978 = vpop.f32.mrf.mxu0
      %v1979 = vadd.f32 0.0, %v1978
      %1980 = vmatmul.bf16.gmra.mxu0 %v1706
      %v1981 = vpop.f32.mrf.mxu0
      %v1982 = vadd.f32 0.0, %v1981
      %v1983 = vpop.f32.mrf.mxu0
      %v1984 = vadd.f32 0.0, %v1983
      %1985 = vmatmul.bf16.gmra.mxu0 %v1709
      %v1986 = vpop.f32.mrf.mxu0
      %v1987 = vadd.f32 0.0, %v1986
      %v1988 = vpop.f32.mrf.mxu0
      %v1989 = vadd.f32 0.0, %v1988
      %1990 = vmatmul.bf16.gmra.mxu0 %v1712
      %v1991 = vpop.f32.mrf.mxu0
      %v1992 = vadd.f32 0.0, %v1991
      %v1993 = vpop.f32.mrf.mxu0
      %v1994 = vadd.f32 0.0, %v1993
      %1995 = vdwg.mxu0
      %1996 = vmatpush.bf16.msra.mxu0 %v1874
      %1997 = vmatpush.bf16.msra.mxu0 %v1873
      %1998 = vmatpush.bf16.msra.mxu0 %v1872
      %1999 = vmatpush.bf16.msra.mxu0 %v1871
      %2000 = vmatpush.bf16.msra.mxu0 %v1870
      %2001 = vmatpush.bf16.msra.mxu0 %v1869
      %2002 = vmatpush.bf16.msra.mxu0 %v1868
      %2003 = vmatpush.bf16.msra.mxu0 %v1867
      %2004 = vmatmul.bf16.gmra.mxu0 %v1668
      %v2005 = vpop.f32.mrf.mxu0
      %v2006 = vadd.f32 %v1917, %v2005
      %v2007 = vpop.f32.mrf.mxu0
      %v2008 = vadd.f32 %v1919, %v2007
      %2009 = vmatmul.bf16.gmra.mxu0 %v1671
      %v2010 = vpop.f32.mrf.mxu0
      %v2011 = vadd.f32 %v1922, %v2010
      %v2012 = vpop.f32.mrf.mxu0
      %v2013 = vadd.f32 %v1924, %v2012
      %2014 = vmatmul.bf16.gmra.mxu0 %v1674
      %v2015 = vpop.f32.mrf.mxu0
      %v2016 = vadd.f32 %v1927, %v2015
      %v2017 = vpop.f32.mrf.mxu0
      %v2018 = vadd.f32 %v1929, %v2017
      %2019 = vmatmul.bf16.gmra.mxu0 %v1677
      %v2020 = vpop.f32.mrf.mxu0
      %v2021 = vadd.f32 %v1932, %v2020
      %v2022 = vpop.f32.mrf.mxu0
      %v2023 = vadd.f32 %v1934, %v2022
      %2024 = vmatmul.bf16.gmra.mxu0 %v1680
      %v2025 = vpop.f32.mrf.mxu0
      %v2026 = vadd.f32 %v1937, %v2025
      %v2027 = vpop.f32.mrf.mxu0
      %v2028 = vadd.f32 %v1939, %v2027
      %2029 = vmatmul.bf16.gmra.mxu0 %v1683
      %v2030 = vpop.f32.mrf.mxu0
      %v2031 = vadd.f32 %v1942, %v2030
      %v2032 = vpop.f32.mrf.mxu0
      %v2033 = vadd.f32 %v1944, %v2032
      %2034 = vmatmul.bf16.gmra.mxu0 %v1686
      %v2035 = vpop.f32.mrf.mxu0
      %v2036 = vadd.f32 %v1947, %v2035
      %v2037 = vpop.f32.mrf.mxu0
      %v2038 = vadd.f32 %v1949, %v2037
      %2039 = vmatmul.bf16.gmra.mxu0 %v1689
      %v2040 = vpop.f32.mrf.mxu0
      %v2041 = vadd.f32 %v1952, %v2040
      %v2042 = vpop.f32.mrf.mxu0
      %v2043 = vadd.f32 %v1954, %v2042
      %2044 = vmatmul.bf16.gmra.mxu0 %v1692
      %v2045 = vpop.f32.mrf.mxu0
      %v2046 = vadd.f32 %v1957, %v2045
      %v2047 = vpop.f32.mrf.mxu0
      %v2048 = vadd.f32 %v1959, %v2047
      %2049 = vmatmul.bf16.gmra.mxu0 %v1695
      %v2050 = vpop.f32.mrf.mxu0
      %v2051 = vadd.f32 %v1962, %v2050
      %v2052 = vpop.f32.mrf.mxu0
      %v2053 = vadd.f32 %v1964, %v2052
      %2054 = vmatmul.bf16.gmra.mxu0 %v1698
      %v2055 = vpop.f32.mrf.mxu0
      %v2056 = vadd.f32 %v1967, %v2055
      %v2057 = vpop.f32.mrf.mxu0
      %v2058 = vadd.f32 %v1969, %v2057
      %2059 = vmatmul.bf16.gmra.mxu0 %v1701
      %v2060 = vpop.f32.mrf.mxu0
      %v2061 = vadd.f32 %v1972, %v2060
      %v2062 = vpop.f32.mrf.mxu0
      %v2063 = vadd.f32 %v1974, %v2062
      %2064 = vmatmul.bf16.gmra.mxu0 %v1704
      %v2065 = vpop.f32.mrf.mxu0
      %v2066 = vadd.f32 %v1977, %v2065
      %v2067 = vpop.f32.mrf.mxu0
      %v2068 = vadd.f32 %v1979, %v2067
      %2069 = vmatmul.bf16.gmra.mxu0 %v1707
      %v2070 = vpop.f32.mrf.mxu0
      %v2071 = vadd.f32 %v1982, %v2070
      %v2072 = vpop.f32.mrf.mxu0
      %v2073 = vadd.f32 %v1984, %v2072
      %2074 = vmatmul.bf16.gmra.mxu0 %v1710
      %v2075 = vpop.f32.mrf.mxu0
      %v2076 = vadd.f32 %v1987, %v2075
      %v2077 = vpop.f32.mrf.mxu0
      %v2078 = vadd.f32 %v1989, %v2077
      %2079 = vmatmul.bf16.gmra.mxu0 %v1713
      %v2080 = vpop.f32.mrf.mxu0
      %v2081 = vadd.f32 %v1992, %v2080
      %v2082 = vpop.f32.mrf.mxu0
      %v2083 = vadd.f32 %v1994, %v2082
      %2084 = vdwg.mxu0
      %2085 = vmatpush.bf16.msra.mxu0 %v1882
      %2086 = vmatpush.bf16.msra.mxu0 %v1881
      %2087 = vmatpush.bf16.msra.mxu0 %v1880
      %2088 = vmatpush.bf16.msra.mxu0 %v1879
      %2089 = vmatpush.bf16.msra.mxu0 %v1878
      %2090 = vmatpush.bf16.msra.mxu0 %v1877
      %2091 = vmatpush.bf16.msra.mxu0 %v1876
      %2092 = vmatpush.bf16.msra.mxu0 %v1875
      %2093 = vmatmul.bf16.gmra.mxu0 %v1669
      %v2094 = vpop.f32.mrf.mxu0
      %v2095 = vadd.f32 %v2006, %v2094
      %v2096 = vpop.f32.mrf.mxu0
      %v2097 = vadd.f32 %v2008, %v2096
      %2098 = vmatmul.bf16.gmra.mxu0 %v1672
      %v2099 = vpop.f32.mrf.mxu0
      %v2100 = vadd.f32 %v2011, %v2099
      %v2101 = vpop.f32.mrf.mxu0
      %v2102 = vadd.f32 %v2013, %v2101
      %2103 = vmatmul.bf16.gmra.mxu0 %v1675
      %v2104 = vpop.f32.mrf.mxu0
      %v2105 = vadd.f32 %v2016, %v2104
      %v2106 = vpop.f32.mrf.mxu0
      %v2107 = vadd.f32 %v2018, %v2106
      %2108 = vmatmul.bf16.gmra.mxu0 %v1678
      %v2109 = vpop.f32.mrf.mxu0
      %v2110 = vadd.f32 %v2021, %v2109
      %v2111 = vpop.f32.mrf.mxu0
      %v2112 = vadd.f32 %v2023, %v2111
      %2113 = vmatmul.bf16.gmra.mxu0 %v1681
      %v2114 = vpop.f32.mrf.mxu0
      %v2115 = vadd.f32 %v2026, %v2114
      %v2116 = vpop.f32.mrf.mxu0
      %v2117 = vadd.f32 %v2028, %v2116
      %2118 = vmatmul.bf16.gmra.mxu0 %v1684
      %v2119 = vpop.f32.mrf.mxu0
      %v2120 = vadd.f32 %v2031, %v2119
      %v2121 = vpop.f32.mrf.mxu0
      %v2122 = vadd.f32 %v2033, %v2121
      %2123 = vmatmul.bf16.gmra.mxu0 %v1687
      %v2124 = vpop.f32.mrf.mxu0
      %v2125 = vadd.f32 %v2036, %v2124
      %v2126 = vpop.f32.mrf.mxu0
      %v2127 = vadd.f32 %v2038, %v2126
      %2128 = vmatmul.bf16.gmra.mxu0 %v1690
      %v2129 = vpop.f32.mrf.mxu0
      %v2130 = vadd.f32 %v2041, %v2129
      %v2131 = vpop.f32.mrf.mxu0
      %v2132 = vadd.f32 %v2043, %v2131
      %2133 = vmatmul.bf16.gmra.mxu0 %v1693
      %v2134 = vpop.f32.mrf.mxu0
      %v2135 = vadd.f32 %v2046, %v2134
      %v2136 = vpop.f32.mrf.mxu0
      %v2137 = vadd.f32 %v2048, %v2136
      %2138 = vmatmul.bf16.gmra.mxu0 %v1696
      %v2139 = vpop.f32.mrf.mxu0
      %v2140 = vadd.f32 %v2051, %v2139
      %v2141 = vpop.f32.mrf.mxu0
      %v2142 = vadd.f32 %v2053, %v2141
      %2143 = vmatmul.bf16.gmra.mxu0 %v1699
      %v2144 = vpop.f32.mrf.mxu0
      %v2145 = vadd.f32 %v2056, %v2144
      %v2146 = vpop.f32.mrf.mxu0
      %v2147 = vadd.f32 %v2058, %v2146
      %2148 = vmatmul.bf16.gmra.mxu0 %v1702
      %v2149 = vpop.f32.mrf.mxu0
      %v2150 = vadd.f32 %v2061, %v2149
      %v2151 = vpop.f32.mrf.mxu0
      %v2152 = vadd.f32 %v2063, %v2151
      %2153 = vmatmul.bf16.gmra.mxu0 %v1705
      %v2154 = vpop.f32.mrf.mxu0
      %v2155 = vadd.f32 %v2066, %v2154
      %v2156 = vpop.f32.mrf.mxu0
      %v2157 = vadd.f32 %v2068, %v2156
      %2158 = vmatmul.bf16.gmra.mxu0 %v1708
      %v2159 = vpop.f32.mrf.mxu0
      %v2160 = vadd.f32 %v2071, %v2159
      %v2161 = vpop.f32.mrf.mxu0
      %v2162 = vadd.f32 %v2073, %v2161
      %2163 = vmatmul.bf16.gmra.mxu0 %v1711
      %v2164 = vpop.f32.mrf.mxu0
      %v2165 = vadd.f32 %v2076, %v2164
      %v2166 = vpop.f32.mrf.mxu0
      %v2167 = vadd.f32 %v2078, %v2166
      %2168 = vmatmul.bf16.gmra.mxu0 %v1714
      %v2169 = vpop.f32.mrf.mxu0
      %v2170 = vadd.f32 %v2081, %v2169
      %v2171 = vpop.f32.mrf.mxu0
      %v2172 = vadd.f32 %v2083, %v2171
      %2173 = vdwg.mxu0
      %v2238 = vunpack.c.l.b16 %v1282
      %v2239 = vunpack.c.h.b16 %v1282
      %v2240 = vunpack.c.l.b16 %v1283
      %v2241 = vunpack.c.l.b16 %v1284
      %v2242 = vunpack.c.h.b16 %v1284
      %v2243 = vunpack.c.l.b16 %v1285
      %v2244 = vunpack.c.l.b16 %v1286
      %v2245 = vunpack.c.h.b16 %v1286
      %v2246 = vunpack.c.l.b16 %v1287
      %v2247 = vunpack.c.l.b16 %v1288
      %v2248 = vunpack.c.h.b16 %v1288
      %v2249 = vunpack.c.l.b16 %v1289
      %v2250 = vunpack.c.l.b16 %v1290
      %v2251 = vunpack.c.h.b16 %v1290
      %v2252 = vunpack.c.l.b16 %v1291
      %v2253 = vunpack.c.l.b16 %v1292
      %v2254 = vunpack.c.h.b16 %v1292
      %v2255 = vunpack.c.l.b16 %v1293
      %v2256 = vunpack.c.l.b16 %v1294
      %v2257 = vunpack.c.h.b16 %v1294
      %v2258 = vunpack.c.l.b16 %v1295
      %v2259 = vunpack.c.l.b16 %v1296
      %v2260 = vunpack.c.h.b16 %v1296
      %v2261 = vunpack.c.l.b16 %v1297
      %v2262 = vunpack.c.l.b16 %v1298
      %v2263 = vunpack.c.h.b16 %v1298
      %v2264 = vunpack.c.l.b16 %v1299
      %v2265 = vunpack.c.l.b16 %v1300
      %v2266 = vunpack.c.h.b16 %v1300
      %v2267 = vunpack.c.l.b16 %v1301
      %v2268 = vunpack.c.l.b16 %v1302
      %v2269 = vunpack.c.h.b16 %v1302
      %v2270 = vunpack.c.l.b16 %v1303
      %v2271 = vunpack.c.l.b16 %v1304
      %v2272 = vunpack.c.h.b16 %v1304
      %v2273 = vunpack.c.l.b16 %v1305
      %v2274 = vunpack.c.l.b16 %v1306
      %v2275 = vunpack.c.h.b16 %v1306
      %v2276 = vunpack.c.l.b16 %v1307
      %v2277 = vunpack.c.l.b16 %v1308
      %v2278 = vunpack.c.h.b16 %v1308
      %v2279 = vunpack.c.l.b16 %v1309
      %v2280 = vunpack.c.l.b16 %v1310
      %v2281 = vunpack.c.h.b16 %v1310
      %v2282 = vunpack.c.l.b16 %v1311
      %v2283 = vunpack.c.l.b16 %v1312
      %v2284 = vunpack.c.h.b16 %v1312
      %v2285 = vunpack.c.l.b16 %v1313
      %v2286 = vunpack.c.l.b16 %v1314
      %v2287 = vunpack.c.h.b16 %v1314
      %v2288 = vunpack.c.l.b16 %v1315
      %v2289 = vunpack.c.l.b16 %v1316
      %v2290 = vunpack.c.h.b16 %v1316
      %v2291 = vunpack.c.l.b16 %v1317
      %v2292 = vunpack.c.l.b16 %v1318
      %v2293 = vunpack.c.h.b16 %v1318
      %v2294 = vunpack.c.l.b16 %v1319
      %v2295 = vunpack.c.l.b16 %v1320
      %v2296 = vunpack.c.h.b16 %v1320
      %v2297 = vunpack.c.l.b16 %v1321
      %v2298 = vunpack.c.l.b16 %v1322
      %v2299 = vunpack.c.h.b16 %v1322
      %v2300 = vunpack.c.l.b16 %v1323
      %v2301 = vunpack.c.l.b16 %v1324
      %v2302 = vunpack.c.h.b16 %v1324
      %v2303 = vunpack.c.l.b16 %v1325
      %v2304 = vunpack.c.l.b16 %v1326
      %v2305 = vunpack.c.h.b16 %v1326
      %v2306 = vunpack.c.l.b16 %v1327
      %v2307 = vunpack.c.l.b16 %v1328
      %v2308 = vunpack.c.h.b16 %v1328
      %v2309 = vunpack.c.l.b16 %v1329
      %v2310 = vunpack.c.l.b16 %v1330
      %v2311 = vunpack.c.h.b16 %v1330
      %v2312 = vunpack.c.l.b16 %v1331
      %v2313 = vunpack.c.l.b16 %v1332
      %v2314 = vunpack.c.h.b16 %v1332
      %v2315 = vunpack.c.l.b16 %v1333
      %v2316 = vunpack.c.l.b16 %v1334
      %v2317 = vunpack.c.h.b16 %v1334
      %v2318 = vunpack.c.l.b16 %v1335
      %v2319 = vunpack.c.l.b16 %v1336
      %v2320 = vunpack.c.h.b16 %v1336
      %v2321 = vunpack.c.l.b16 %v1337
      %v2322 = vunpack.c.l.b16 %v1338
      %v2323 = vunpack.c.h.b16 %v1338
      %v2324 = vunpack.c.l.b16 %v1339
      %v2325 = vunpack.c.l.b16 %v1340
      %v2326 = vunpack.c.h.b16 %v1340
      %v2327 = vunpack.c.l.b16 %v1341
      %v2328 = vunpack.c.l.b16 %v1342
      %v2329 = vunpack.c.h.b16 %v1342
      %v2330 = vunpack.c.l.b16 %v1343
      %v2331 = vunpack.c.l.b16 %v1344
      %v2332 = vunpack.c.h.b16 %v1344
      %v2333 = vunpack.c.l.b16 %v1345
      %v2334 = vpack.c.b16 %v2241, %v2238
      %v2335 = vpack.c.b16 %v2242, %v2239
      %v2336 = vpack.c.b16 %v2243, %v2240
      %v2337 = vpack.c.b16 %v2247, %v2244
      %v2338 = vpack.c.b16 %v2248, %v2245
      %v2339 = vpack.c.b16 %v2249, %v2246
      %v2340 = vpack.c.b16 %v2253, %v2250
      %v2341 = vpack.c.b16 %v2254, %v2251
      %v2342 = vpack.c.b16 %v2255, %v2252
      %v2343 = vpack.c.b16 %v2259, %v2256
      %v2344 = vpack.c.b16 %v2260, %v2257
      %v2345 = vpack.c.b16 %v2261, %v2258
      %v2346 = vpack.c.b16 %v2265, %v2262
      %v2347 = vpack.c.b16 %v2266, %v2263
      %v2348 = vpack.c.b16 %v2267, %v2264
      %v2349 = vpack.c.b16 %v2271, %v2268
      %v2350 = vpack.c.b16 %v2272, %v2269
      %v2351 = vpack.c.b16 %v2273, %v2270
      %v2352 = vpack.c.b16 %v2277, %v2274
      %v2353 = vpack.c.b16 %v2278, %v2275
      %v2354 = vpack.c.b16 %v2279, %v2276
      %v2355 = vpack.c.b16 %v2283, %v2280
      %v2356 = vpack.c.b16 %v2284, %v2281
      %v2357 = vpack.c.b16 %v2285, %v2282
      %v2358 = vpack.c.b16 %v2289, %v2286
      %v2359 = vpack.c.b16 %v2290, %v2287
      %v2360 = vpack.c.b16 %v2291, %v2288
      %v2361 = vpack.c.b16 %v2295, %v2292
      %v2362 = vpack.c.b16 %v2296, %v2293
      %v2363 = vpack.c.b16 %v2297, %v2294
      %v2364 = vpack.c.b16 %v2301, %v2298
      %v2365 = vpack.c.b16 %v2302, %v2299
      %v2366 = vpack.c.b16 %v2303, %v2300
      %v2367 = vpack.c.b16 %v2307, %v2304
      %v2368 = vpack.c.b16 %v2308, %v2305
      %v2369 = vpack.c.b16 %v2309, %v2306
      %v2370 = vpack.c.b16 %v2313, %v2310
      %v2371 = vpack.c.b16 %v2314, %v2311
      %v2372 = vpack.c.b16 %v2315, %v2312
      %v2373 = vpack.c.b16 %v2319, %v2316
      %v2374 = vpack.c.b16 %v2320, %v2317
      %v2375 = vpack.c.b16 %v2321, %v2318
      %v2376 = vpack.c.b16 %v2325, %v2322
      %v2377 = vpack.c.b16 %v2326, %v2323
      %v2378 = vpack.c.b16 %v2327, %v2324
      %v2379 = vpack.c.b16 %v2331, %v2328
      %v2380 = vpack.c.b16 %v2332, %v2329
      %v2381 = vpack.c.b16 %v2333, %v2330
      %v2478 = vunpack.c.l.b16 %v1346
      %v2479 = vunpack.c.l.b16 %v1347
      %v2480 = vunpack.c.l.b16 %v1348
      %v2481 = vunpack.c.l.b16 %v1349
      %v2482 = vunpack.c.l.b16 %v1350
      %v2483 = vunpack.c.l.b16 %v1351
      %v2484 = vunpack.c.l.b16 %v1352
      %v2485 = vunpack.c.l.b16 %v1353
      %v2486 = vunpack.c.l.b16 %v1354
      %v2487 = vunpack.c.l.b16 %v1355
      %v2488 = vunpack.c.l.b16 %v1356
      %v2489 = vunpack.c.l.b16 %v1357
      %v2490 = vunpack.c.l.b16 %v1358
      %v2491 = vunpack.c.l.b16 %v1359
      %v2492 = vunpack.c.l.b16 %v1360
      %v2493 = vunpack.c.l.b16 %v1361
      %v2494 = vunpack.c.l.b16 %v1362
      %v2495 = vunpack.c.l.b16 %v1363
      %v2496 = vunpack.c.l.b16 %v1364
      %v2497 = vunpack.c.l.b16 %v1365
      %v2498 = vunpack.c.l.b16 %v1366
      %v2499 = vunpack.c.l.b16 %v1367
      %v2500 = vunpack.c.l.b16 %v1368
      %v2501 = vunpack.c.l.b16 %v1369
      %v2502 = vunpack.c.l.b16 %v1370
      %v2503 = vunpack.c.l.b16 %v1371
      %v2504 = vunpack.c.l.b16 %v1372
      %v2505 = vunpack.c.l.b16 %v1373
      %v2506 = vunpack.c.l.b16 %v1374
      %v2507 = vunpack.c.l.b16 %v1375
      %v2508 = vunpack.c.l.b16 %v1376
      %v2509 = vunpack.c.l.b16 %v1377
      %v2510 = vunpack.c.l.b16 %v1378
      %v2511 = vunpack.c.l.b16 %v1379
      %v2512 = vunpack.c.l.b16 %v1380
      %v2513 = vunpack.c.l.b16 %v1381
      %v2514 = vunpack.c.l.b16 %v1382
      %v2515 = vunpack.c.l.b16 %v1383
      %v2516 = vunpack.c.l.b16 %v1384
      %v2517 = vunpack.c.l.b16 %v1385
      %v2518 = vunpack.c.l.b16 %v1386
      %v2519 = vunpack.c.l.b16 %v1387
      %v2520 = vunpack.c.l.b16 %v1388
      %v2521 = vunpack.c.l.b16 %v1389
      %v2522 = vunpack.c.l.b16 %v1390
      %v2523 = vunpack.c.l.b16 %v1391
      %v2524 = vunpack.c.l.b16 %v1392
      %v2525 = vunpack.c.l.b16 %v1393
      %v2526 = vpack.c.b16 %v2479, %v2478
      %v2527 = vpack.c.b16 %v2481, %v2480
      %v2528 = vpack.c.b16 %v2483, %v2482
      %v2529 = vpack.c.b16 %v2485, %v2484
      %v2530 = vpack.c.b16 %v2487, %v2486
      %v2531 = vpack.c.b16 %v2489, %v2488
      %v2532 = vpack.c.b16 %v2491, %v2490
      %v2533 = vpack.c.b16 %v2493, %v2492
      %v2534 = vpack.c.b16 %v2495, %v2494
      %v2535 = vpack.c.b16 %v2497, %v2496
      %v2536 = vpack.c.b16 %v2499, %v2498
      %v2537 = vpack.c.b16 %v2501, %v2500
      %v2538 = vpack.c.b16 %v2503, %v2502
      %v2539 = vpack.c.b16 %v2505, %v2504
      %v2540 = vpack.c.b16 %v2507, %v2506
      %v2541 = vpack.c.b16 %v2509, %v2508
      %v2542 = vpack.c.b16 %v2511, %v2510
      %v2543 = vpack.c.b16 %v2513, %v2512
      %v2544 = vpack.c.b16 %v2515, %v2514
      %v2545 = vpack.c.b16 %v2517, %v2516
      %v2546 = vpack.c.b16 %v2519, %v2518
      %v2547 = vpack.c.b16 %v2521, %v2520
      %v2548 = vpack.c.b16 %v2523, %v2522
      %v2549 = vpack.c.b16 %v2525, %v2524
      %2574 = vmatpush.bf16.msra.mxu0 %v2533
      %2575 = vmatpush.bf16.msra.mxu0 %v2532
      %2576 = vmatpush.bf16.msra.mxu0 %v2531
      %2577 = vmatpush.bf16.msra.mxu0 %v2530
      %2578 = vmatpush.bf16.msra.mxu0 %v2529
      %2579 = vmatpush.bf16.msra.mxu0 %v2528
      %2580 = vmatpush.bf16.msra.mxu0 %v2527
      %2581 = vmatpush.bf16.msra.mxu0 %v2526
      %2582 = vmatmul.bf16.gmra.mxu0 %v2334
      %v2583 = vpop.f32.mrf.mxu0
      %v2584 = vadd.f32 %v2095, %v2583
      %v2585 = vpop.f32.mrf.mxu0
      %v2586 = vadd.f32 %v2097, %v2585
      %2587 = vmatmul.bf16.gmra.mxu0 %v2337
      %v2588 = vpop.f32.mrf.mxu0
      %v2589 = vadd.f32 %v2100, %v2588
      %v2590 = vpop.f32.mrf.mxu0
      %v2591 = vadd.f32 %v2102, %v2590
      %2592 = vmatmul.bf16.gmra.mxu0 %v2340
      %v2593 = vpop.f32.mrf.mxu0
      %v2594 = vadd.f32 %v2105, %v2593
      %v2595 = vpop.f32.mrf.mxu0
      %v2596 = vadd.f32 %v2107, %v2595
      %2597 = vmatmul.bf16.gmra.mxu0 %v2343
      %v2598 = vpop.f32.mrf.mxu0
      %v2599 = vadd.f32 %v2110, %v2598
      %v2600 = vpop.f32.mrf.mxu0
      %v2601 = vadd.f32 %v2112, %v2600
      %2602 = vmatmul.bf16.gmra.mxu0 %v2346
      %v2603 = vpop.f32.mrf.mxu0
      %v2604 = vadd.f32 %v2115, %v2603
      %v2605 = vpop.f32.mrf.mxu0
      %v2606 = vadd.f32 %v2117, %v2605
      %2607 = vmatmul.bf16.gmra.mxu0 %v2349
      %v2608 = vpop.f32.mrf.mxu0
      %v2609 = vadd.f32 %v2120, %v2608
      %v2610 = vpop.f32.mrf.mxu0
      %v2611 = vadd.f32 %v2122, %v2610
      %2612 = vmatmul.bf16.gmra.mxu0 %v2352
      %v2613 = vpop.f32.mrf.mxu0
      %v2614 = vadd.f32 %v2125, %v2613
      %v2615 = vpop.f32.mrf.mxu0
      %v2616 = vadd.f32 %v2127, %v2615
      %2617 = vmatmul.bf16.gmra.mxu0 %v2355
      %v2618 = vpop.f32.mrf.mxu0
      %v2619 = vadd.f32 %v2130, %v2618
      %v2620 = vpop.f32.mrf.mxu0
      %v2621 = vadd.f32 %v2132, %v2620
      %2622 = vmatmul.bf16.gmra.mxu0 %v2358
      %v2623 = vpop.f32.mrf.mxu0
      %v2624 = vadd.f32 %v2135, %v2623
      %v2625 = vpop.f32.mrf.mxu0
      %v2626 = vadd.f32 %v2137, %v2625
      %2627 = vmatmul.bf16.gmra.mxu0 %v2361
      %v2628 = vpop.f32.mrf.mxu0
      %v2629 = vadd.f32 %v2140, %v2628
      %v2630 = vpop.f32.mrf.mxu0
      %v2631 = vadd.f32 %v2142, %v2630
      %2632 = vmatmul.bf16.gmra.mxu0 %v2364
      %v2633 = vpop.f32.mrf.mxu0
      %v2634 = vadd.f32 %v2145, %v2633
      %v2635 = vpop.f32.mrf.mxu0
      %v2636 = vadd.f32 %v2147, %v2635
      %2637 = vmatmul.bf16.gmra.mxu0 %v2367
      %v2638 = vpop.f32.mrf.mxu0
      %v2639 = vadd.f32 %v2150, %v2638
      %v2640 = vpop.f32.mrf.mxu0
      %v2641 = vadd.f32 %v2152, %v2640
      %2642 = vmatmul.bf16.gmra.mxu0 %v2370
      %v2643 = vpop.f32.mrf.mxu0
      %v2644 = vadd.f32 %v2155, %v2643
      %v2645 = vpop.f32.mrf.mxu0
      %v2646 = vadd.f32 %v2157, %v2645
      %2647 = vmatmul.bf16.gmra.mxu0 %v2373
      %v2648 = vpop.f32.mrf.mxu0
      %v2649 = vadd.f32 %v2160, %v2648
      %v2650 = vpop.f32.mrf.mxu0
      %v2651 = vadd.f32 %v2162, %v2650
      %2652 = vmatmul.bf16.gmra.mxu0 %v2376
      %v2653 = vpop.f32.mrf.mxu0
      %v2654 = vadd.f32 %v2165, %v2653
      %v2655 = vpop.f32.mrf.mxu0
      %v2656 = vadd.f32 %v2167, %v2655
      %2657 = vmatmul.bf16.gmra.mxu0 %v2379
      %v2658 = vpop.f32.mrf.mxu0
      %v2659 = vadd.f32 %v2170, %v2658
      %v2660 = vpop.f32.mrf.mxu0
      %v2661 = vadd.f32 %v2172, %v2660
      %2662 = vdwg.mxu0
      %2663 = vmatpush.bf16.msra.mxu0 %v2541
      %2664 = vmatpush.bf16.msra.mxu0 %v2540
      %2665 = vmatpush.bf16.msra.mxu0 %v2539
      %2666 = vmatpush.bf16.msra.mxu0 %v2538
      %2667 = vmatpush.bf16.msra.mxu0 %v2537
      %2668 = vmatpush.bf16.msra.mxu0 %v2536
      %2669 = vmatpush.bf16.msra.mxu0 %v2535
      %2670 = vmatpush.bf16.msra.mxu0 %v2534
      %2671 = vmatmul.bf16.gmra.mxu0 %v2335
      %v2672 = vpop.f32.mrf.mxu0
      %v2673 = vadd.f32 %v2584, %v2672
      %v2674 = vpop.f32.mrf.mxu0
      %v2675 = vadd.f32 %v2586, %v2674
      %2676 = vmatmul.bf16.gmra.mxu0 %v2338
      %v2677 = vpop.f32.mrf.mxu0
      %v2678 = vadd.f32 %v2589, %v2677
      %v2679 = vpop.f32.mrf.mxu0
      %v2680 = vadd.f32 %v2591, %v2679
      %2681 = vmatmul.bf16.gmra.mxu0 %v2341
      %v2682 = vpop.f32.mrf.mxu0
      %v2683 = vadd.f32 %v2594, %v2682
      %v2684 = vpop.f32.mrf.mxu0
      %v2685 = vadd.f32 %v2596, %v2684
      %2686 = vmatmul.bf16.gmra.mxu0 %v2344
      %v2687 = vpop.f32.mrf.mxu0
      %v2688 = vadd.f32 %v2599, %v2687
      %v2689 = vpop.f32.mrf.mxu0
      %v2690 = vadd.f32 %v2601, %v2689
      %2691 = vmatmul.bf16.gmra.mxu0 %v2347
      %v2692 = vpop.f32.mrf.mxu0
      %v2693 = vadd.f32 %v2604, %v2692
      %v2694 = vpop.f32.mrf.mxu0
      %v2695 = vadd.f32 %v2606, %v2694
      %2696 = vmatmul.bf16.gmra.mxu0 %v2350
      %v2697 = vpop.f32.mrf.mxu0
      %v2698 = vadd.f32 %v2609, %v2697
      %v2699 = vpop.f32.mrf.mxu0
      %v2700 = vadd.f32 %v2611, %v2699
      %2701 = vmatmul.bf16.gmra.mxu0 %v2353
      %v2702 = vpop.f32.mrf.mxu0
      %v2703 = vadd.f32 %v2614, %v2702
      %v2704 = vpop.f32.mrf.mxu0
      %v2705 = vadd.f32 %v2616, %v2704
      %2706 = vmatmul.bf16.gmra.mxu0 %v2356
      %v2707 = vpop.f32.mrf.mxu0
      %v2708 = vadd.f32 %v2619, %v2707
      %v2709 = vpop.f32.mrf.mxu0
      %v2710 = vadd.f32 %v2621, %v2709
      %2711 = vmatmul.bf16.gmra.mxu0 %v2359
      %v2712 = vpop.f32.mrf.mxu0
      %v2713 = vadd.f32 %v2624, %v2712
      %v2714 = vpop.f32.mrf.mxu0
      %v2715 = vadd.f32 %v2626, %v2714
      %2716 = vmatmul.bf16.gmra.mxu0 %v2362
      %v2717 = vpop.f32.mrf.mxu0
      %v2718 = vadd.f32 %v2629, %v2717
      %v2719 = vpop.f32.mrf.mxu0
      %v2720 = vadd.f32 %v2631, %v2719
      %2721 = vmatmul.bf16.gmra.mxu0 %v2365
      %v2722 = vpop.f32.mrf.mxu0
      %v2723 = vadd.f32 %v2634, %v2722
      %v2724 = vpop.f32.mrf.mxu0
      %v2725 = vadd.f32 %v2636, %v2724
      %2726 = vmatmul.bf16.gmra.mxu0 %v2368
      %v2727 = vpop.f32.mrf.mxu0
      %v2728 = vadd.f32 %v2639, %v2727
      %v2729 = vpop.f32.mrf.mxu0
      %v2730 = vadd.f32 %v2641, %v2729
      %2731 = vmatmul.bf16.gmra.mxu0 %v2371
      %v2732 = vpop.f32.mrf.mxu0
      %v2733 = vadd.f32 %v2644, %v2732
      %v2734 = vpop.f32.mrf.mxu0
      %v2735 = vadd.f32 %v2646, %v2734
      %2736 = vmatmul.bf16.gmra.mxu0 %v2374
      %v2737 = vpop.f32.mrf.mxu0
      %v2738 = vadd.f32 %v2649, %v2737
      %v2739 = vpop.f32.mrf.mxu0
      %v2740 = vadd.f32 %v2651, %v2739
      %2741 = vmatmul.bf16.gmra.mxu0 %v2377
      %v2742 = vpop.f32.mrf.mxu0
      %v2743 = vadd.f32 %v2654, %v2742
      %v2744 = vpop.f32.mrf.mxu0
      %v2745 = vadd.f32 %v2656, %v2744
      %2746 = vmatmul.bf16.gmra.mxu0 %v2380
      %v2747 = vpop.f32.mrf.mxu0
      %v2748 = vadd.f32 %v2659, %v2747
      %v2749 = vpop.f32.mrf.mxu0
      %v2750 = vadd.f32 %v2661, %v2749
      %2751 = vdwg.mxu0
      %2752 = vmatpush.bf16.msra.mxu0 %v2549
      %2753 = vmatpush.bf16.msra.mxu0 %v2548
      %2754 = vmatpush.bf16.msra.mxu0 %v2547
      %2755 = vmatpush.bf16.msra.mxu0 %v2546
      %2756 = vmatpush.bf16.msra.mxu0 %v2545
      %2757 = vmatpush.bf16.msra.mxu0 %v2544
      %2758 = vmatpush.bf16.msra.mxu0 %v2543
      %2759 = vmatpush.bf16.msra.mxu0 %v2542
      %2760 = vmatmul.bf16.gmra.mxu0 %v2336
      %v2761 = vpop.f32.mrf.mxu0
      %v2762 = vadd.f32 %v2673, %v2761
      %v2763 = vpop.f32.mrf.mxu0
      %v2764 = vadd.f32 %v2675, %v2763
      %2765 = vmatmul.bf16.gmra.mxu0 %v2339
      %v2766 = vpop.f32.mrf.mxu0
      %v2767 = vadd.f32 %v2678, %v2766
      %v2768 = vpop.f32.mrf.mxu0
      %v2769 = vadd.f32 %v2680, %v2768
      %2770 = vmatmul.bf16.gmra.mxu0 %v2342
      %v2771 = vpop.f32.mrf.mxu0
      %v2772 = vadd.f32 %v2683, %v2771
      %v2773 = vpop.f32.mrf.mxu0
      %v2774 = vadd.f32 %v2685, %v2773
      %2775 = vmatmul.bf16.gmra.mxu0 %v2345
      %v2776 = vpop.f32.mrf.mxu0
      %v2777 = vadd.f32 %v2688, %v2776
      %v2778 = vpop.f32.mrf.mxu0
      %v2779 = vadd.f32 %v2690, %v2778
      %2780 = vmatmul.bf16.gmra.mxu0 %v2348
      %v2781 = vpop.f32.mrf.mxu0
      %v2782 = vadd.f32 %v2693, %v2781
      %v2783 = vpop.f32.mrf.mxu0
      %v2784 = vadd.f32 %v2695, %v2783
      %2785 = vmatmul.bf16.gmra.mxu0 %v2351
      %v2786 = vpop.f32.mrf.mxu0
      %v2787 = vadd.f32 %v2698, %v2786
      %v2788 = vpop.f32.mrf.mxu0
      %v2789 = vadd.f32 %v2700, %v2788
      %2790 = vmatmul.bf16.gmra.mxu0 %v2354
      %v2791 = vpop.f32.mrf.mxu0
      %v2792 = vadd.f32 %v2703, %v2791
      %v2793 = vpop.f32.mrf.mxu0
      %v2794 = vadd.f32 %v2705, %v2793
      %2795 = vmatmul.bf16.gmra.mxu0 %v2357
      %v2796 = vpop.f32.mrf.mxu0
      %v2797 = vadd.f32 %v2708, %v2796
      %v2798 = vpop.f32.mrf.mxu0
      %v2799 = vadd.f32 %v2710, %v2798
      %2800 = vmatmul.bf16.gmra.mxu0 %v2360
      %v2801 = vpop.f32.mrf.mxu0
      %v2802 = vadd.f32 %v2713, %v2801
      %v2803 = vpop.f32.mrf.mxu0
      %v2804 = vadd.f32 %v2715, %v2803
      %2805 = vmatmul.bf16.gmra.mxu0 %v2363
      %v2806 = vpop.f32.mrf.mxu0
      %v2807 = vadd.f32 %v2718, %v2806
      %v2808 = vpop.f32.mrf.mxu0
      %v2809 = vadd.f32 %v2720, %v2808
      %2810 = vmatmul.bf16.gmra.mxu0 %v2366
      %v2811 = vpop.f32.mrf.mxu0
      %v2812 = vadd.f32 %v2723, %v2811
      %v2813 = vpop.f32.mrf.mxu0
      %v2814 = vadd.f32 %v2725, %v2813
      %2815 = vmatmul.bf16.gmra.mxu0 %v2369
      %v2816 = vpop.f32.mrf.mxu0
      %v2817 = vadd.f32 %v2728, %v2816
      %v2818 = vpop.f32.mrf.mxu0
      %v2819 = vadd.f32 %v2730, %v2818
      %2820 = vmatmul.bf16.gmra.mxu0 %v2372
      %v2821 = vpop.f32.mrf.mxu0
      %v2822 = vadd.f32 %v2733, %v2821
      %v2823 = vpop.f32.mrf.mxu0
      %v2824 = vadd.f32 %v2735, %v2823
      %2825 = vmatmul.bf16.gmra.mxu0 %v2375
      %v2826 = vpop.f32.mrf.mxu0
      %v2827 = vadd.f32 %v2738, %v2826
      %v2828 = vpop.f32.mrf.mxu0
      %v2829 = vadd.f32 %v2740, %v2828
      %2830 = vmatmul.bf16.gmra.mxu0 %v2378
      %v2831 = vpop.f32.mrf.mxu0
      %v2832 = vadd.f32 %v2743, %v2831
      %v2833 = vpop.f32.mrf.mxu0
      %v2834 = vadd.f32 %v2745, %v2833
      %2835 = vmatmul.bf16.gmra.mxu0 %v2381
      %v2836 = vpop.f32.mrf.mxu0
      %v2837 = vadd.f32 %v2748, %v2836
      %v2838 = vpop.f32.mrf.mxu0
      %v2839 = vadd.f32 %v2750, %v2838
      %2840 = vdwg.mxu0
      %s2841 = scalar_lea.vmem [#allocation2], 48
      %v2842 = vld [vmem:[%s2841] sm:$0xff]
      %v2843 = vld [vmem:[%s2841 + $0x8] sm:$0xf]
      %v2844 = vld [vmem:[%s2841 + $0xc] sm:$0xff]
      %v2845 = vld [vmem:[%s2841 + $0x14] sm:$0xf]
      %v2846 = vld [vmem:[%s2841 + $0x18] sm:$0xff]
      %v2847 = vld [vmem:[%s2841 + $0x20] sm:$0xf]
      %v2848 = vld [vmem:[%s2841 + $0x24] sm:$0xff]
      %v2849 = vld [vmem:[%s2841 + $0x2c] sm:$0xf]
      %v2850 = vld [vmem:[%s2841 + $0x30] sm:$0xff]
      %v2851 = vld [vmem:[%s2841 + $0x38] sm:$0xf]
      %v2852 = vld [vmem:[%s2841 + $0x3c] sm:$0xff]
      %v2853 = vld [vmem:[%s2841 + $0x44] sm:$0xf]
      %v2854 = vld [vmem:[%s2841 + $0x48] sm:$0xff]
      %v2855 = vld [vmem:[%s2841 + $0x50] sm:$0xf]
      %v2856 = vld [vmem:[%s2841 + $0x54] sm:$0xff]
      %v2857 = vld [vmem:[%s2841 + $0x5c] sm:$0xf]
      %v2858 = vld [vmem:[%s2841 + $0x60] sm:$0xff]
      %v2859 = vld [vmem:[%s2841 + $0x68] sm:$0xf]
      %v2860 = vld [vmem:[%s2841 + $0x6c] sm:$0xff]
      %v2861 = vld [vmem:[%s2841 + $0x74] sm:$0xf]
      %v2862 = vld [vmem:[%s2841 + $0x78] sm:$0xff]
      %v2863 = vld [vmem:[%s2841 + $0x80] sm:$0xf]
      %v2864 = vld [vmem:[%s2841 + $0x84] sm:$0xff]
      %v2865 = vld [vmem:[%s2841 + $0x8c] sm:$0xf]
      %v2866 = vld [vmem:[%s2841 + $0x90] sm:$0xff]
      %v2867 = vld [vmem:[%s2841 + $0x98] sm:$0xf]
      %v2868 = vld [vmem:[%s2841 + $0x9c] sm:$0xff]
      %v2869 = vld [vmem:[%s2841 + $0xa4] sm:$0xf]
      %v2870 = vld [vmem:[%s2841 + $0xa8] sm:$0xff]
      %v2871 = vld [vmem:[%s2841 + $0xb0] sm:$0xf]
      %v2872 = vld [vmem:[%s2841 + $0xb4] sm:$0xff]
      %v2873 = vld [vmem:[%s2841 + $0xbc] sm:$0xf]
      %v2874 = vld [vmem:[%s2841 + $0xc0] sm:$0xff]
      %v2875 = vld [vmem:[%s2841 + $0xc8] sm:$0xf]
      %v2876 = vld [vmem:[%s2841 + $0xcc] sm:$0xff]
      %v2877 = vld [vmem:[%s2841 + $0xd4] sm:$0xf]
      %v2878 = vld [vmem:[%s2841 + $0xd8] sm:$0xff]
      %v2879 = vld [vmem:[%s2841 + $0xe0] sm:$0xf]
      %v2880 = vld [vmem:[%s2841 + $0xe4] sm:$0xff]
      %v2881 = vld [vmem:[%s2841 + $0xec] sm:$0xf]
      %v2882 = vld [vmem:[%s2841 + $0xf0] sm:$0xff]
      %v2883 = vld [vmem:[%s2841 + $0xf8] sm:$0xf]
      %v2884 = vld [vmem:[%s2841 + $0xfc] sm:$0xff]
      %v2885 = vld [vmem:[%s2841 + $0x104] sm:$0xf]
      %v2886 = vld [vmem:[%s2841 + $0x108] sm:$0xff]
      %v2887 = vld [vmem:[%s2841 + $0x110] sm:$0xf]
      %v2888 = vld [vmem:[%s2841 + $0x114] sm:$0xff]
      %v2889 = vld [vmem:[%s2841 + $0x11c] sm:$0xf]
      %v2890 = vld [vmem:[%s2841 + $0x120] sm:$0xff]
      %v2891 = vld [vmem:[%s2841 + $0x128] sm:$0xf]
      %v2892 = vld [vmem:[%s2841 + $0x12c] sm:$0xff]
      %v2893 = vld [vmem:[%s2841 + $0x134] sm:$0xf]
      %v2894 = vld [vmem:[%s2841 + $0x138] sm:$0xff]
      %v2895 = vld [vmem:[%s2841 + $0x140] sm:$0xf]
      %v2896 = vld [vmem:[%s2841 + $0x144] sm:$0xff]
      %v2897 = vld [vmem:[%s2841 + $0x14c] sm:$0xf]
      %v2898 = vld [vmem:[%s2841 + $0x150] sm:$0xff]
      %v2899 = vld [vmem:[%s2841 + $0x158] sm:$0xf]
      %v2900 = vld [vmem:[%s2841 + $0x15c] sm:$0xff]
      %v2901 = vld [vmem:[%s2841 + $0x164] sm:$0xf]
      %v2902 = vld [vmem:[%s2841 + $0x168] sm:$0xff]
      %v2903 = vld [vmem:[%s2841 + $0x170] sm:$0xf]
      %v2904 = vld [vmem:[%s2841 + $0x174] sm:$0xff]
      %v2905 = vld [vmem:[%s2841 + $0x17c] sm:$0xf]
      %s2906 = scalar_lea.vmem %s5, 384
      %v2907 = vld [vmem:[%s2906] sm:$0xf]
      %v2908 = vld [vmem:[%s2906 + $0x4] sm:$0xf]
      %v2909 = vld [vmem:[%s2906 + $0x8] sm:$0xf]
      %v2910 = vld [vmem:[%s2906 + $0xc] sm:$0xf]
      %v2911 = vld [vmem:[%s2906 + $0x10] sm:$0xf]
      %v2912 = vld [vmem:[%s2906 + $0x14] sm:$0xf]
      %v2913 = vld [vmem:[%s2906 + $0x18] sm:$0xf]
      %v2914 = vld [vmem:[%s2906 + $0x1c] sm:$0xf]
      %v2915 = vld [vmem:[%s2906 + $0x20] sm:$0xf]
      %v2916 = vld [vmem:[%s2906 + $0x24] sm:$0xf]
      %v2917 = vld [vmem:[%s2906 + $0x28] sm:$0xf]
      %v2918 = vld [vmem:[%s2906 + $0x2c] sm:$0xf]
      %v2919 = vld [vmem:[%s2906 + $0x30] sm:$0xf]
      %v2920 = vld [vmem:[%s2906 + $0x34] sm:$0xf]
      %v2921 = vld [vmem:[%s2906 + $0x38] sm:$0xf]
      %v2922 = vld [vmem:[%s2906 + $0x3c] sm:$0xf]
      %v2923 = vld [vmem:[%s2906 + $0x40] sm:$0xf]
      %v2924 = vld [vmem:[%s2906 + $0x44] sm:$0xf]
      %v2925 = vld [vmem:[%s2906 + $0x48] sm:$0xf]
      %v2926 = vld [vmem:[%s2906 + $0x4c] sm:$0xf]
      %v2927 = vld [vmem:[%s2906 + $0x50] sm:$0xf]
      %v2928 = vld [vmem:[%s2906 + $0x54] sm:$0xf]
      %v2929 = vld [vmem:[%s2906 + $0x58] sm:$0xf]
      %v2930 = vld [vmem:[%s2906 + $0x5c] sm:$0xf]
      %v2931 = vld [vmem:[%s2906 + $0x60] sm:$0xf]
      %v2932 = vld [vmem:[%s2906 + $0x64] sm:$0xf]
      %v2933 = vld [vmem:[%s2906 + $0x68] sm:$0xf]
      %v2934 = vld [vmem:[%s2906 + $0x6c] sm:$0xf]
      %v2935 = vld [vmem:[%s2906 + $0x70] sm:$0xf]
      %v2936 = vld [vmem:[%s2906 + $0x74] sm:$0xf]
      %v2937 = vld [vmem:[%s2906 + $0x78] sm:$0xf]
      %v2938 = vld [vmem:[%s2906 + $0x7c] sm:$0xf]
      %v2939 = vld [vmem:[%s2906 + $0x80] sm:$0xf]
      %v2940 = vld [vmem:[%s2906 + $0x84] sm:$0xf]
      %v2941 = vld [vmem:[%s2906 + $0x88] sm:$0xf]
      %v2942 = vld [vmem:[%s2906 + $0x8c] sm:$0xf]
      %v2943 = vld [vmem:[%s2906 + $0x90] sm:$0xf]
      %v2944 = vld [vmem:[%s2906 + $0x94] sm:$0xf]
      %v2945 = vld [vmem:[%s2906 + $0x98] sm:$0xf]
      %v2946 = vld [vmem:[%s2906 + $0x9c] sm:$0xf]
      %v2947 = vld [vmem:[%s2906 + $0xa0] sm:$0xf]
      %v2948 = vld [vmem:[%s2906 + $0xa4] sm:$0xf]
      %v2949 = vld [vmem:[%s2906 + $0xa8] sm:$0xf]
      %v2950 = vld [vmem:[%s2906 + $0xac] sm:$0xf]
      %v2951 = vld [vmem:[%s2906 + $0xb0] sm:$0xf]
      %v2952 = vld [vmem:[%s2906 + $0xb4] sm:$0xf]
      %v2953 = vld [vmem:[%s2906 + $0xb8] sm:$0xf]
      %v2954 = vld [vmem:[%s2906 + $0xbc] sm:$0xf]
      %v3019 = vunpack.c.l.b16 %v2842
      %v3020 = vunpack.c.h.b16 %v2842
      %v3021 = vunpack.c.l.b16 %v2843
      %v3022 = vunpack.c.l.b16 %v2844
      %v3023 = vunpack.c.h.b16 %v2844
      %v3024 = vunpack.c.l.b16 %v2845
      %v3025 = vunpack.c.l.b16 %v2846
      %v3026 = vunpack.c.h.b16 %v2846
      %v3027 = vunpack.c.l.b16 %v2847
      %v3028 = vunpack.c.l.b16 %v2848
      %v3029 = vunpack.c.h.b16 %v2848
      %v3030 = vunpack.c.l.b16 %v2849
      %v3031 = vunpack.c.l.b16 %v2850
      %v3032 = vunpack.c.h.b16 %v2850
      %v3033 = vunpack.c.l.b16 %v2851
      %v3034 = vunpack.c.l.b16 %v2852
      %v3035 = vunpack.c.h.b16 %v2852
      %v3036 = vunpack.c.l.b16 %v2853
      %v3037 = vunpack.c.l.b16 %v2854
      %v3038 = vunpack.c.h.b16 %v2854
      %v3039 = vunpack.c.l.b16 %v2855
      %v3040 = vunpack.c.l.b16 %v2856
      %v3041 = vunpack.c.h.b16 %v2856
      %v3042 = vunpack.c.l.b16 %v2857
      %v3043 = vunpack.c.l.b16 %v2858
      %v3044 = vunpack.c.h.b16 %v2858
      %v3045 = vunpack.c.l.b16 %v2859
      %v3046 = vunpack.c.l.b16 %v2860
      %v3047 = vunpack.c.h.b16 %v2860
      %v3048 = vunpack.c.l.b16 %v2861
      %v3049 = vunpack.c.l.b16 %v2862
      %v3050 = vunpack.c.h.b16 %v2862
      %v3051 = vunpack.c.l.b16 %v2863
      %v3052 = vunpack.c.l.b16 %v2864
      %v3053 = vunpack.c.h.b16 %v2864
      %v3054 = vunpack.c.l.b16 %v2865
      %v3055 = vunpack.c.l.b16 %v2866
      %v3056 = vunpack.c.h.b16 %v2866
      %v3057 = vunpack.c.l.b16 %v2867
      %v3058 = vunpack.c.l.b16 %v2868
      %v3059 = vunpack.c.h.b16 %v2868
      %v3060 = vunpack.c.l.b16 %v2869
      %v3061 = vunpack.c.l.b16 %v2870
      %v3062 = vunpack.c.h.b16 %v2870
      %v3063 = vunpack.c.l.b16 %v2871
      %v3064 = vunpack.c.l.b16 %v2872
      %v3065 = vunpack.c.h.b16 %v2872
      %v3066 = vunpack.c.l.b16 %v2873
      %v3067 = vunpack.c.l.b16 %v2874
      %v3068 = vunpack.c.h.b16 %v2874
      %v3069 = vunpack.c.l.b16 %v2875
      %v3070 = vunpack.c.l.b16 %v2876
      %v3071 = vunpack.c.h.b16 %v2876
      %v3072 = vunpack.c.l.b16 %v2877
      %v3073 = vunpack.c.l.b16 %v2878
      %v3074 = vunpack.c.h.b16 %v2878
      %v3075 = vunpack.c.l.b16 %v2879
      %v3076 = vunpack.c.l.b16 %v2880
      %v3077 = vunpack.c.h.b16 %v2880
      %v3078 = vunpack.c.l.b16 %v2881
      %v3079 = vunpack.c.l.b16 %v2882
      %v3080 = vunpack.c.h.b16 %v2882
      %v3081 = vunpack.c.l.b16 %v2883
      %v3082 = vunpack.c.l.b16 %v2884
      %v3083 = vunpack.c.h.b16 %v2884
      %v3084 = vunpack.c.l.b16 %v2885
      %v3085 = vunpack.c.l.b16 %v2886
      %v3086 = vunpack.c.h.b16 %v2886
      %v3087 = vunpack.c.l.b16 %v2887
      %v3088 = vunpack.c.l.b16 %v2888
      %v3089 = vunpack.c.h.b16 %v2888
      %v3090 = vunpack.c.l.b16 %v2889
      %v3091 = vunpack.c.l.b16 %v2890
      %v3092 = vunpack.c.h.b16 %v2890
      %v3093 = vunpack.c.l.b16 %v2891
      %v3094 = vunpack.c.l.b16 %v2892
      %v3095 = vunpack.c.h.b16 %v2892
      %v3096 = vunpack.c.l.b16 %v2893
      %v3097 = vunpack.c.l.b16 %v2894
      %v3098 = vunpack.c.h.b16 %v2894
      %v3099 = vunpack.c.l.b16 %v2895
      %v3100 = vunpack.c.l.b16 %v2896
      %v3101 = vunpack.c.h.b16 %v2896
      %v3102 = vunpack.c.l.b16 %v2897
      %v3103 = vunpack.c.l.b16 %v2898
      %v3104 = vunpack.c.h.b16 %v2898
      %v3105 = vunpack.c.l.b16 %v2899
      %v3106 = vunpack.c.l.b16 %v2900
      %v3107 = vunpack.c.h.b16 %v2900
      %v3108 = vunpack.c.l.b16 %v2901
      %v3109 = vunpack.c.l.b16 %v2902
      %v3110 = vunpack.c.h.b16 %v2902
      %v3111 = vunpack.c.l.b16 %v2903
      %v3112 = vunpack.c.l.b16 %v2904
      %v3113 = vunpack.c.h.b16 %v2904
      %v3114 = vunpack.c.l.b16 %v2905
      %v3115 = vpack.c.b16 %v3022, %v3019
      %v3116 = vpack.c.b16 %v3023, %v3020
      %v3117 = vpack.c.b16 %v3024, %v3021
      %v3118 = vpack.c.b16 %v3028, %v3025
      %v3119 = vpack.c.b16 %v3029, %v3026
      %v3120 = vpack.c.b16 %v3030, %v3027
      %v3121 = vpack.c.b16 %v3034, %v3031
      %v3122 = vpack.c.b16 %v3035, %v3032
      %v3123 = vpack.c.b16 %v3036, %v3033
      %v3124 = vpack.c.b16 %v3040, %v3037
      %v3125 = vpack.c.b16 %v3041, %v3038
      %v3126 = vpack.c.b16 %v3042, %v3039
      %v3127 = vpack.c.b16 %v3046, %v3043
      %v3128 = vpack.c.b16 %v3047, %v3044
      %v3129 = vpack.c.b16 %v3048, %v3045
      %v3130 = vpack.c.b16 %v3052, %v3049
      %v3131 = vpack.c.b16 %v3053, %v3050
      %v3132 = vpack.c.b16 %v3054, %v3051
      %v3133 = vpack.c.b16 %v3058, %v3055
      %v3134 = vpack.c.b16 %v3059, %v3056
      %v3135 = vpack.c.b16 %v3060, %v3057
      %v3136 = vpack.c.b16 %v3064, %v3061
      %v3137 = vpack.c.b16 %v3065, %v3062
      %v3138 = vpack.c.b16 %v3066, %v3063
      %v3139 = vpack.c.b16 %v3070, %v3067
      %v3140 = vpack.c.b16 %v3071, %v3068
      %v3141 = vpack.c.b16 %v3072, %v3069
      %v3142 = vpack.c.b16 %v3076, %v3073
      %v3143 = vpack.c.b16 %v3077, %v3074
      %v3144 = vpack.c.b16 %v3078, %v3075
      %v3145 = vpack.c.b16 %v3082, %v3079
      %v3146 = vpack.c.b16 %v3083, %v3080
      %v3147 = vpack.c.b16 %v3084, %v3081
      %v3148 = vpack.c.b16 %v3088, %v3085
      %v3149 = vpack.c.b16 %v3089, %v3086
      %v3150 = vpack.c.b16 %v3090, %v3087
      %v3151 = vpack.c.b16 %v3094, %v3091
      %v3152 = vpack.c.b16 %v3095, %v3092
      %v3153 = vpack.c.b16 %v3096, %v3093
      %v3154 = vpack.c.b16 %v3100, %v3097
      %v3155 = vpack.c.b16 %v3101, %v3098
      %v3156 = vpack.c.b16 %v3102, %v3099
      %v3157 = vpack.c.b16 %v3106, %v3103
      %v3158 = vpack.c.b16 %v3107, %v3104
      %v3159 = vpack.c.b16 %v3108, %v3105
      %v3160 = vpack.c.b16 %v3112, %v3109
      %v3161 = vpack.c.b16 %v3113, %v3110
      %v3162 = vpack.c.b16 %v3114, %v3111
      %v3259 = vunpack.c.l.b16 %v2907
      %v3260 = vunpack.c.l.b16 %v2908
      %v3261 = vunpack.c.l.b16 %v2909
      %v3262 = vunpack.c.l.b16 %v2910
      %v3263 = vunpack.c.l.b16 %v2911
      %v3264 = vunpack.c.l.b16 %v2912
      %v3265 = vunpack.c.l.b16 %v2913
      %v3266 = vunpack.c.l.b16 %v2914
      %v3267 = vunpack.c.l.b16 %v2915
      %v3268 = vunpack.c.l.b16 %v2916
      %v3269 = vunpack.c.l.b16 %v2917
      %v3270 = vunpack.c.l.b16 %v2918
      %v3271 = vunpack.c.l.b16 %v2919
      %v3272 = vunpack.c.l.b16 %v2920
      %v3273 = vunpack.c.l.b16 %v2921
      %v3274 = vunpack.c.l.b16 %v2922
      %v3275 = vunpack.c.l.b16 %v2923
      %v3276 = vunpack.c.l.b16 %v2924
      %v3277 = vunpack.c.l.b16 %v2925
      %v3278 = vunpack.c.l.b16 %v2926
      %v3279 = vunpack.c.l.b16 %v2927
      %v3280 = vunpack.c.l.b16 %v2928
      %v3281 = vunpack.c.l.b16 %v2929
      %v3282 = vunpack.c.l.b16 %v2930
      %v3283 = vunpack.c.l.b16 %v2931
      %v3284 = vunpack.c.l.b16 %v2932
      %v3285 = vunpack.c.l.b16 %v2933
      %v3286 = vunpack.c.l.b16 %v2934
      %v3287 = vunpack.c.l.b16 %v2935
      %v3288 = vunpack.c.l.b16 %v2936
      %v3289 = vunpack.c.l.b16 %v2937
      %v3290 = vunpack.c.l.b16 %v2938
      %v3291 = vunpack.c.l.b16 %v2939
      %v3292 = vunpack.c.l.b16 %v2940
      %v3293 = vunpack.c.l.b16 %v2941
      %v3294 = vunpack.c.l.b16 %v2942
      %v3295 = vunpack.c.l.b16 %v2943
      %v3296 = vunpack.c.l.b16 %v2944
      %v3297 = vunpack.c.l.b16 %v2945
      %v3298 = vunpack.c.l.b16 %v2946
      %v3299 = vunpack.c.l.b16 %v2947
      %v3300 = vunpack.c.l.b16 %v2948
      %v3301 = vunpack.c.l.b16 %v2949
      %v3302 = vunpack.c.l.b16 %v2950
      %v3303 = vunpack.c.l.b16 %v2951
      %v3304 = vunpack.c.l.b16 %v2952
      %v3305 = vunpack.c.l.b16 %v2953
      %v3306 = vunpack.c.l.b16 %v2954
      %v3307 = vpack.c.b16 %v3260, %v3259
      %v3308 = vpack.c.b16 %v3262, %v3261
      %v3309 = vpack.c.b16 %v3264, %v3263
      %v3310 = vpack.c.b16 %v3266, %v3265
      %v3311 = vpack.c.b16 %v3268, %v3267
      %v3312 = vpack.c.b16 %v3270, %v3269
      %v3313 = vpack.c.b16 %v3272, %v3271
      %v3314 = vpack.c.b16 %v3274, %v3273
      %v3315 = vpack.c.b16 %v3276, %v3275
      %v3316 = vpack.c.b16 %v3278, %v3277
      %v3317 = vpack.c.b16 %v3280, %v3279
      %v3318 = vpack.c.b16 %v3282, %v3281
      %v3319 = vpack.c.b16 %v3284, %v3283
      %v3320 = vpack.c.b16 %v3286, %v3285
      %v3321 = vpack.c.b16 %v3288, %v3287
      %v3322 = vpack.c.b16 %v3290, %v3289
      %v3323 = vpack.c.b16 %v3292, %v3291
      %v3324 = vpack.c.b16 %v3294, %v3293
      %v3325 = vpack.c.b16 %v3296, %v3295
      %v3326 = vpack.c.b16 %v3298, %v3297
      %v3327 = vpack.c.b16 %v3300, %v3299
      %v3328 = vpack.c.b16 %v3302, %v3301
      %v3329 = vpack.c.b16 %v3304, %v3303
      %v3330 = vpack.c.b16 %v3306, %v3305
      %3355 = vmatpush.bf16.msra.mxu0 %v3314
      %3356 = vmatpush.bf16.msra.mxu0 %v3313
      %3357 = vmatpush.bf16.msra.mxu0 %v3312
      %3358 = vmatpush.bf16.msra.mxu0 %v3311
      %3359 = vmatpush.bf16.msra.mxu0 %v3310
      %3360 = vmatpush.bf16.msra.mxu0 %v3309
      %3361 = vmatpush.bf16.msra.mxu0 %v3308
      %3362 = vmatpush.bf16.msra.mxu0 %v3307
      %3363 = vmatmul.bf16.gmra.mxu0 %v3115
      %v3364 = vpop.f32.mrf.mxu0
      %v3365 = vadd.f32 0.0, %v3364
      %v3366 = vpop.f32.mrf.mxu0
      %v3367 = vadd.f32 0.0, %v3366
      %3368 = vmatmul.bf16.gmra.mxu0 %v3118
      %v3369 = vpop.f32.mrf.mxu0
      %v3370 = vadd.f32 0.0, %v3369
      %v3371 = vpop.f32.mrf.mxu0
      %v3372 = vadd.f32 0.0, %v3371
      %3373 = vmatmul.bf16.gmra.mxu0 %v3121
      %v3374 = vpop.f32.mrf.mxu0
      %v3375 = vadd.f32 0.0, %v3374
      %v3376 = vpop.f32.mrf.mxu0
      %v3377 = vadd.f32 0.0, %v3376
      %3378 = vmatmul.bf16.gmra.mxu0 %v3124
      %v3379 = vpop.f32.mrf.mxu0
      %v3380 = vadd.f32 0.0, %v3379
      %v3381 = vpop.f32.mrf.mxu0
      %v3382 = vadd.f32 0.0, %v3381
      %3383 = vmatmul.bf16.gmra.mxu0 %v3127
      %v3384 = vpop.f32.mrf.mxu0
      %v3385 = vadd.f32 0.0, %v3384
      %v3386 = vpop.f32.mrf.mxu0
      %v3387 = vadd.f32 0.0, %v3386
      %3388 = vmatmul.bf16.gmra.mxu0 %v3130
      %v3389 = vpop.f32.mrf.mxu0
      %v3390 = vadd.f32 0.0, %v3389
      %v3391 = vpop.f32.mrf.mxu0
      %v3392 = vadd.f32 0.0, %v3391
      %3393 = vmatmul.bf16.gmra.mxu0 %v3133
      %v3394 = vpop.f32.mrf.mxu0
      %v3395 = vadd.f32 0.0, %v3394
      %v3396 = vpop.f32.mrf.mxu0
      %v3397 = vadd.f32 0.0, %v3396
      %3398 = vmatmul.bf16.gmra.mxu0 %v3136
      %v3399 = vpop.f32.mrf.mxu0
      %v3400 = vadd.f32 0.0, %v3399
      %v3401 = vpop.f32.mrf.mxu0
      %v3402 = vadd.f32 0.0, %v3401
      %3403 = vmatmul.bf16.gmra.mxu0 %v3139
      %v3404 = vpop.f32.mrf.mxu0
      %v3405 = vadd.f32 0.0, %v3404
      %v3406 = vpop.f32.mrf.mxu0
      %v3407 = vadd.f32 0.0, %v3406
      %3408 = vmatmul.bf16.gmra.mxu0 %v3142
      %v3409 = vpop.f32.mrf.mxu0
      %v3410 = vadd.f32 0.0, %v3409
      %v3411 = vpop.f32.mrf.mxu0
      %v3412 = vadd.f32 0.0, %v3411
      %3413 = vmatmul.bf16.gmra.mxu0 %v3145
      %v3414 = vpop.f32.mrf.mxu0
      %v3415 = vadd.f32 0.0, %v3414
      %v3416 = vpop.f32.mrf.mxu0
      %v3417 = vadd.f32 0.0, %v3416
      %3418 = vmatmul.bf16.gmra.mxu0 %v3148
      %v3419 = vpop.f32.mrf.mxu0
      %v3420 = vadd.f32 0.0, %v3419
      %v3421 = vpop.f32.mrf.mxu0
      %v3422 = vadd.f32 0.0, %v3421
      %3423 = vmatmul.bf16.gmra.mxu0 %v3151
      %v3424 = vpop.f32.mrf.mxu0
      %v3425 = vadd.f32 0.0, %v3424
      %v3426 = vpop.f32.mrf.mxu0
      %v3427 = vadd.f32 0.0, %v3426
      %3428 = vmatmul.bf16.gmra.mxu0 %v3154
      %v3429 = vpop.f32.mrf.mxu0
      %v3430 = vadd.f32 0.0, %v3429
      %v3431 = vpop.f32.mrf.mxu0
      %v3432 = vadd.f32 0.0, %v3431
      %3433 = vmatmul.bf16.gmra.mxu0 %v3157
      %v3434 = vpop.f32.mrf.mxu0
      %v3435 = vadd.f32 0.0, %v3434
      %v3436 = vpop.f32.mrf.mxu0
      %v3437 = vadd.f32 0.0, %v3436
      %3438 = vmatmul.bf16.gmra.mxu0 %v3160
      %v3439 = vpop.f32.mrf.mxu0
      %v3440 = vadd.f32 0.0, %v3439
      %v3441 = vpop.f32.mrf.mxu0
      %v3442 = vadd.f32 0.0, %v3441
      %3443 = vdwg.mxu0
      %3444 = vmatpush.bf16.msra.mxu0 %v3322
      %3445 = vmatpush.bf16.msra.mxu0 %v3321
      %3446 = vmatpush.bf16.msra.mxu0 %v3320
      %3447 = vmatpush.bf16.msra.mxu0 %v3319
      %3448 = vmatpush.bf16.msra.mxu0 %v3318
      %3449 = vmatpush.bf16.msra.mxu0 %v3317
      %3450 = vmatpush.bf16.msra.mxu0 %v3316
      %3451 = vmatpush.bf16.msra.mxu0 %v3315
      %3452 = vmatmul.bf16.gmra.mxu0 %v3116
      %v3453 = vpop.f32.mrf.mxu0
      %v3454 = vadd.f32 %v3365, %v3453
      %v3455 = vpop.f32.mrf.mxu0
      %v3456 = vadd.f32 %v3367, %v3455
      %3457 = vmatmul.bf16.gmra.mxu0 %v3119
      %v3458 = vpop.f32.mrf.mxu0
      %v3459 = vadd.f32 %v3370, %v3458
      %v3460 = vpop.f32.mrf.mxu0
      %v3461 = vadd.f32 %v3372, %v3460
      %3462 = vmatmul.bf16.gmra.mxu0 %v3122
      %v3463 = vpop.f32.mrf.mxu0
      %v3464 = vadd.f32 %v3375, %v3463
      %v3465 = vpop.f32.mrf.mxu0
      %v3466 = vadd.f32 %v3377, %v3465
      %3467 = vmatmul.bf16.gmra.mxu0 %v3125
      %v3468 = vpop.f32.mrf.mxu0
      %v3469 = vadd.f32 %v3380, %v3468
      %v3470 = vpop.f32.mrf.mxu0
      %v3471 = vadd.f32 %v3382, %v3470
      %3472 = vmatmul.bf16.gmra.mxu0 %v3128
      %v3473 = vpop.f32.mrf.mxu0
      %v3474 = vadd.f32 %v3385, %v3473
      %v3475 = vpop.f32.mrf.mxu0
      %v3476 = vadd.f32 %v3387, %v3475
      %3477 = vmatmul.bf16.gmra.mxu0 %v3131
      %v3478 = vpop.f32.mrf.mxu0
      %v3479 = vadd.f32 %v3390, %v3478
      %v3480 = vpop.f32.mrf.mxu0
      %v3481 = vadd.f32 %v3392, %v3480
      %3482 = vmatmul.bf16.gmra.mxu0 %v3134
      %v3483 = vpop.f32.mrf.mxu0
      %v3484 = vadd.f32 %v3395, %v3483
      %v3485 = vpop.f32.mrf.mxu0
      %v3486 = vadd.f32 %v3397, %v3485
      %3487 = vmatmul.bf16.gmra.mxu0 %v3137
      %v3488 = vpop.f32.mrf.mxu0
      %v3489 = vadd.f32 %v3400, %v3488
      %v3490 = vpop.f32.mrf.mxu0
      %v3491 = vadd.f32 %v3402, %v3490
      %3492 = vmatmul.bf16.gmra.mxu0 %v3140
      %v3493 = vpop.f32.mrf.mxu0
      %v3494 = vadd.f32 %v3405, %v3493
      %v3495 = vpop.f32.mrf.mxu0
      %v3496 = vadd.f32 %v3407, %v3495
      %3497 = vmatmul.bf16.gmra.mxu0 %v3143
      %v3498 = vpop.f32.mrf.mxu0
      %v3499 = vadd.f32 %v3410, %v3498
      %v3500 = vpop.f32.mrf.mxu0
      %v3501 = vadd.f32 %v3412, %v3500
      %3502 = vmatmul.bf16.gmra.mxu0 %v3146
      %v3503 = vpop.f32.mrf.mxu0
      %v3504 = vadd.f32 %v3415, %v3503
      %v3505 = vpop.f32.mrf.mxu0
      %v3506 = vadd.f32 %v3417, %v3505
      %3507 = vmatmul.bf16.gmra.mxu0 %v3149
      %v3508 = vpop.f32.mrf.mxu0
      %v3509 = vadd.f32 %v3420, %v3508
      %v3510 = vpop.f32.mrf.mxu0
      %v3511 = vadd.f32 %v3422, %v3510
      %3512 = vmatmul.bf16.gmra.mxu0 %v3152
      %v3513 = vpop.f32.mrf.mxu0
      %v3514 = vadd.f32 %v3425, %v3513
      %v3515 = vpop.f32.mrf.mxu0
      %v3516 = vadd.f32 %v3427, %v3515
      %3517 = vmatmul.bf16.gmra.mxu0 %v3155
      %v3518 = vpop.f32.mrf.mxu0
      %v3519 = vadd.f32 %v3430, %v3518
      %v3520 = vpop.f32.mrf.mxu0
      %v3521 = vadd.f32 %v3432, %v3520
      %3522 = vmatmul.bf16.gmra.mxu0 %v3158
      %v3523 = vpop.f32.mrf.mxu0
      %v3524 = vadd.f32 %v3435, %v3523
      %v3525 = vpop.f32.mrf.mxu0
      %v3526 = vadd.f32 %v3437, %v3525
      %3527 = vmatmul.bf16.gmra.mxu0 %v3161
      %v3528 = vpop.f32.mrf.mxu0
      %v3529 = vadd.f32 %v3440, %v3528
      %v3530 = vpop.f32.mrf.mxu0
      %v3531 = vadd.f32 %v3442, %v3530
      %3532 = vdwg.mxu0
      %3533 = vmatpush.bf16.msra.mxu0 %v3330
      %3534 = vmatpush.bf16.msra.mxu0 %v3329
      %3535 = vmatpush.bf16.msra.mxu0 %v3328
      %3536 = vmatpush.bf16.msra.mxu0 %v3327
      %3537 = vmatpush.bf16.msra.mxu0 %v3326
      %3538 = vmatpush.bf16.msra.mxu0 %v3325
      %3539 = vmatpush.bf16.msra.mxu0 %v3324
      %3540 = vmatpush.bf16.msra.mxu0 %v3323
      %3541 = vmatmul.bf16.gmra.mxu0 %v3117
      %v3542 = vpop.f32.mrf.mxu0
      %v3543 = vadd.f32 %v3454, %v3542
      %v3544 = vpop.f32.mrf.mxu0
      %v3545 = vadd.f32 %v3456, %v3544
      %3546 = vmatmul.bf16.gmra.mxu0 %v3120
      %v3547 = vpop.f32.mrf.mxu0
      %v3548 = vadd.f32 %v3459, %v3547
      %v3549 = vpop.f32.mrf.mxu0
      %v3550 = vadd.f32 %v3461, %v3549
      %3551 = vmatmul.bf16.gmra.mxu0 %v3123
      %v3552 = vpop.f32.mrf.mxu0
      %v3553 = vadd.f32 %v3464, %v3552
      %v3554 = vpop.f32.mrf.mxu0
      %v3555 = vadd.f32 %v3466, %v3554
      %3556 = vmatmul.bf16.gmra.mxu0 %v3126
      %v3557 = vpop.f32.mrf.mxu0
      %v3558 = vadd.f32 %v3469, %v3557
      %v3559 = vpop.f32.mrf.mxu0
      %v3560 = vadd.f32 %v3471, %v3559
      %3561 = vmatmul.bf16.gmra.mxu0 %v3129
      %v3562 = vpop.f32.mrf.mxu0
      %v3563 = vadd.f32 %v3474, %v3562
      %v3564 = vpop.f32.mrf.mxu0
      %v3565 = vadd.f32 %v3476, %v3564
      %3566 = vmatmul.bf16.gmra.mxu0 %v3132
      %v3567 = vpop.f32.mrf.mxu0
      %v3568 = vadd.f32 %v3479, %v3567
      %v3569 = vpop.f32.mrf.mxu0
      %v3570 = vadd.f32 %v3481, %v3569
      %3571 = vmatmul.bf16.gmra.mxu0 %v3135
      %v3572 = vpop.f32.mrf.mxu0
      %v3573 = vadd.f32 %v3484, %v3572
      %v3574 = vpop.f32.mrf.mxu0
      %v3575 = vadd.f32 %v3486, %v3574
      %3576 = vmatmul.bf16.gmra.mxu0 %v3138
      %v3577 = vpop.f32.mrf.mxu0
      %v3578 = vadd.f32 %v3489, %v3577
      %v3579 = vpop.f32.mrf.mxu0
      %v3580 = vadd.f32 %v3491, %v3579
      %3581 = vmatmul.bf16.gmra.mxu0 %v3141
      %v3582 = vpop.f32.mrf.mxu0
      %v3583 = vadd.f32 %v3494, %v3582
      %v3584 = vpop.f32.mrf.mxu0
      %v3585 = vadd.f32 %v3496, %v3584
      %3586 = vmatmul.bf16.gmra.mxu0 %v3144
      %v3587 = vpop.f32.mrf.mxu0
      %v3588 = vadd.f32 %v3499, %v3587
      %v3589 = vpop.f32.mrf.mxu0
      %v3590 = vadd.f32 %v3501, %v3589
      %3591 = vmatmul.bf16.gmra.mxu0 %v3147
      %v3592 = vpop.f32.mrf.mxu0
      %v3593 = vadd.f32 %v3504, %v3592
      %v3594 = vpop.f32.mrf.mxu0
      %v3595 = vadd.f32 %v3506, %v3594
      %3596 = vmatmul.bf16.gmra.mxu0 %v3150
      %v3597 = vpop.f32.mrf.mxu0
      %v3598 = vadd.f32 %v3509, %v3597
      %v3599 = vpop.f32.mrf.mxu0
      %v3600 = vadd.f32 %v3511, %v3599
      %3601 = vmatmul.bf16.gmra.mxu0 %v3153
      %v3602 = vpop.f32.mrf.mxu0
      %v3603 = vadd.f32 %v3514, %v3602
      %v3604 = vpop.f32.mrf.mxu0
      %v3605 = vadd.f32 %v3516, %v3604
      %3606 = vmatmul.bf16.gmra.mxu0 %v3156
      %v3607 = vpop.f32.mrf.mxu0
      %v3608 = vadd.f32 %v3519, %v3607
      %v3609 = vpop.f32.mrf.mxu0
      %v3610 = vadd.f32 %v3521, %v3609
      %3611 = vmatmul.bf16.gmra.mxu0 %v3159
      %v3612 = vpop.f32.mrf.mxu0
      %v3613 = vadd.f32 %v3524, %v3612
      %v3614 = vpop.f32.mrf.mxu0
      %v3615 = vadd.f32 %v3526, %v3614
      %3616 = vmatmul.bf16.gmra.mxu0 %v3162
      %v3617 = vpop.f32.mrf.mxu0
      %v3618 = vadd.f32 %v3529, %v3617
      %v3619 = vpop.f32.mrf.mxu0
      %v3620 = vadd.f32 %v3531, %v3619
      %3621 = vdwg.mxu0
      %v3622 = vadd.f32 %v2762, %v3543
      %v3623 = vadd.f32 %v2764, %v3545
      %v3624 = vadd.f32 %v2767, %v3548
      %v3625 = vadd.f32 %v2769, %v3550
      %v3626 = vadd.f32 %v2772, %v3553
      %v3627 = vadd.f32 %v2774, %v3555
      %v3628 = vadd.f32 %v2777, %v3558
      %v3629 = vadd.f32 %v2779, %v3560
      %v3630 = vadd.f32 %v2782, %v3563
      %v3631 = vadd.f32 %v2784, %v3565
      %v3632 = vadd.f32 %v2787, %v3568
      %v3633 = vadd.f32 %v2789, %v3570
      %v3634 = vadd.f32 %v2792, %v3573
      %v3635 = vadd.f32 %v2794, %v3575
      %v3636 = vadd.f32 %v2797, %v3578
      %v3637 = vadd.f32 %v2799, %v3580
      %v3638 = vadd.f32 %v2802, %v3583
      %v3639 = vadd.f32 %v2804, %v3585
      %v3640 = vadd.f32 %v2807, %v3588
      %v3641 = vadd.f32 %v2809, %v3590
      %v3642 = vadd.f32 %v2812, %v3593
      %v3643 = vadd.f32 %v2814, %v3595
      %v3644 = vadd.f32 %v2817, %v3598
      %v3645 = vadd.f32 %v2819, %v3600
      %v3646 = vadd.f32 %v2822, %v3603
      %v3647 = vadd.f32 %v2824, %v3605
      %v3648 = vadd.f32 %v2827, %v3608
      %v3649 = vadd.f32 %v2829, %v3610
      %v3650 = vadd.f32 %v2832, %v3613
      %v3651 = vadd.f32 %v2834, %v3615
      %v3652 = vadd.f32 %v2837, %v3618
      %v3653 = vadd.f32 %v2839, %v3620
      %v3654 = vpack.c.bf16 %v3622, %v3622
      %v3655 = vpack.c.bf16 %v3623, %v3623
      %v3656 = vpack.c.bf16 %v3624, %v3624
      %v3657 = vpack.c.bf16 %v3625, %v3625
      %v3658 = vpack.c.bf16 %v3626, %v3626
      %v3659 = vpack.c.bf16 %v3627, %v3627
      %v3660 = vpack.c.bf16 %v3628, %v3628
      %v3661 = vpack.c.bf16 %v3629, %v3629
      %v3662 = vpack.c.bf16 %v3630, %v3630
      %v3663 = vpack.c.bf16 %v3631, %v3631
      %v3664 = vpack.c.bf16 %v3632, %v3632
      %v3665 = vpack.c.bf16 %v3633, %v3633
      %v3666 = vpack.c.bf16 %v3634, %v3634
      %v3667 = vpack.c.bf16 %v3635, %v3635
      %v3668 = vpack.c.bf16 %v3636, %v3636
      %v3669 = vpack.c.bf16 %v3637, %v3637
      %v3670 = vpack.c.bf16 %v3638, %v3638
      %v3671 = vpack.c.bf16 %v3639, %v3639
      %v3672 = vpack.c.bf16 %v3640, %v3640
      %v3673 = vpack.c.bf16 %v3641, %v3641
      %v3674 = vpack.c.bf16 %v3642, %v3642
      %v3675 = vpack.c.bf16 %v3643, %v3643
      %v3676 = vpack.c.bf16 %v3644, %v3644
      %v3677 = vpack.c.bf16 %v3645, %v3645
      %v3678 = vpack.c.bf16 %v3646, %v3646
      %v3679 = vpack.c.bf16 %v3647, %v3647
      %v3680 = vpack.c.bf16 %v3648, %v3648
      %v3681 = vpack.c.bf16 %v3649, %v3649
      %v3682 = vpack.c.bf16 %v3650, %v3650
      %v3683 = vpack.c.bf16 %v3651, %v3651
      %v3684 = vpack.c.bf16 %v3652, %v3652
      %v3685 = vpack.c.bf16 %v3653, %v3653
      %3686 = vst [vmem:[%s251] sm:$0xf] %v3654
      %3687 = vst [vmem:[%s251 + $0x4] sm:$0xf] %v3655
      %3688 = vst [vmem:[%s251 + $0x8] sm:$0xf] %v3656
      %3689 = vst [vmem:[%s251 + $0xc] sm:$0xf] %v3657
      %3690 = vst [vmem:[%s251 + $0x10] sm:$0xf] %v3658
      %3691 = vst [vmem:[%s251 + $0x14] sm:$0xf] %v3659
      %3692 = vst [vmem:[%s251 + $0x18] sm:$0xf] %v3660
      %3693 = vst [vmem:[%s251 + $0x1c] sm:$0xf] %v3661
      %3694 = vst [vmem:[%s251 + $0x20] sm:$0xf] %v3662
      %3695 = vst [vmem:[%s251 + $0x24] sm:$0xf] %v3663
      %3696 = vst [vmem:[%s251 + $0x28] sm:$0xf] %v3664
      %3697 = vst [vmem:[%s251 + $0x2c] sm:$0xf] %v3665
      %3698 = vst [vmem:[%s251 + $0x30] sm:$0xf] %v3666
      %3699 = vst [vmem:[%s251 + $0x34] sm:$0xf] %v3667
      %3700 = vst [vmem:[%s251 + $0x38] sm:$0xf] %v3668
      %3701 = vst [vmem:[%s251 + $0x3c] sm:$0xf] %v3669
      %3702 = vst [vmem:[%s251 + $0x40] sm:$0xf] %v3670
      %3703 = vst [vmem:[%s251 + $0x44] sm:$0xf] %v3671
      %3704 = vst [vmem:[%s251 + $0x48] sm:$0xf] %v3672
      %3705 = vst [vmem:[%s251 + $0x4c] sm:$0xf] %v3673
      %3706 = vst [vmem:[%s251 + $0x50] sm:$0xf] %v3674
      %3707 = vst [vmem:[%s251 + $0x54] sm:$0xf] %v3675
      %3708 = vst [vmem:[%s251 + $0x58] sm:$0xf] %v3676
      %3709 = vst [vmem:[%s251 + $0x5c] sm:$0xf] %v3677
      %3710 = vst [vmem:[%s251 + $0x60] sm:$0xf] %v3678
      %3711 = vst [vmem:[%s251 + $0x64] sm:$0xf] %v3679
      %3712 = vst [vmem:[%s251 + $0x68] sm:$0xf] %v3680
      %3713 = vst [vmem:[%s251 + $0x6c] sm:$0xf] %v3681
      %3714 = vst [vmem:[%s251 + $0x70] sm:$0xf] %v3682
      %3715 = vst [vmem:[%s251 + $0x74] sm:$0xf] %v3683
      %3716 = vst [vmem:[%s251 + $0x78] sm:$0xf] %v3684
      %3717 = vst [vmem:[%s251 + $0x7c] sm:$0xf] %v3685
      %p3718 = scmp.lt.s32.totalorder %s17, 1
      %s3719 = scalar_select %p3718, %s17, 1
      %s3720 = smul.addr %s3719, 32
      %s3721 = smul.addr %s3720, 4
      %s3722 = scalar_lea.vmem %s6, %s3721
      // Predicated region
      $region45: #{dense_layer_forward.1} parent=43 // pred_check
        %p3723 = pneg %p166
      $region46: #{dense_layer_forward.1} parent=43 // pred_check_branch
        %3725 = sbr.rel (%p3723) target = $region48
      $region47: #{dense_layer_forward.1} parent=43 // pred_region
        _
      $region48: #{dense_layer_forward.1} parent=43 // pred_fallthru
        _
    $region44: #{dense_layer_forward.1} parent=5 // pred_fallthru
      _
    %p3726 = scmp.le.s32.totalorder 2, %s12
    // Predicated region
    $region49: #{dense_layer_forward.1} parent=5 // pred_check
      %p3727 = pneg %p3726
    $region50: #{dense_layer_forward.1} parent=5 // pred_check_branch
      %3729 = sbr.rel (%p3727) target = $region52
    $region51: #{dense_layer_forward.1} parent=5 // pred_region
      %s3730 = ssub.s32 %s12, 2
      // Predicated region
      $region53: #{dense_layer_forward.1} parent=51 // pred_check
        %p3731 = pneg %p172
      $region54: #{dense_layer_forward.1} parent=51 // pred_check_branch
        %3733 = sbr.rel (%p3731) target = $region56
      $region55: #{dense_layer_forward.1} parent=51 // pred_region
        %p3734 = scmp.lt.s32.totalorder %s18, 1
        %s3735 = scalar_select %p3734, %s18, 1
        %s3736 = smul.addr %s3735, 32
        %s3737 = smul.addr %s3736, 4
        %s3738 = scalar_lea.vmem %s6, %s3737
      $region56: #{dense_layer_forward.1} parent=51 // pred_fallthru
        _
    $region52: #{dense_layer_forward.1} parent=5 // pred_fallthru
      _
  $region6: #{dense_layer_forward.1} parent=0 // loop_footer
    %s16 = sadd.s32 1, %s12
  $region7: #{dense_layer_forward.1} parent=0 // loop_footer_branch
    %11 = sbr.rel target = $region3
  $region8: #{dense_layer_forward.1} parent=0 // loop_exit
    _

</llo_original>
